<compile_context>
chip_gen: v7x
topology: tpu7x:2x2x1
jax: 0.10.0
libtpu: 0.0.40
codegen_flags: <defaults>
</compile_context>

<pallas_src>
import jax
import jax.numpy as jnp
from jax.experimental import pallas as pl
from jax.experimental.pallas import tpu as pltpu


def _fused_kernel(x_ref, w1_ref, b1_ref, w2_ref, b2_ref,
                  wl1_ref, bl1_ref, wl2_ref, bl2_ref, o_ref,
                  s1, s1b, pad2, s2, s2b, s2c):
    # x_ref : (1, H+2, W+2, 1)  zero-padded single-channel image
    # w1_ref: (3, 3, 1, C1)   b1_ref: (1, C1)
    # w2_ref: (9, C1, C2)     b2_ref: (1, C2)
    # wl1_ref: (R, C2, D1)    bl1_ref: (1, D1)   (R = Ho2*Wo2, rows pre-permuted)
    # wl2_ref: (D1, D2)       bl2_ref: (1, D2)
    # o_ref : (1, 1, D2)
    H = x_ref.shape[1] - 2
    W = x_ref.shape[2] - 2
    C1 = w1_ref.shape[3]
    C2 = w2_ref.shape[2]
    Ho1, Wo1 = H // 2, W // 2
    Ho2, Wo2 = Ho1 // 2, Wo1 // 2
    R = Ho2 * Wo2
    wpad = pad2.shape[1] - Wo1 - 1          # sublane-aligned left zero pad (= 8)

    # ---- conv1: 1 -> C1, 3x3, pad=1 (padding pre-applied), bias + ReLU ---------------
    acc1 = jnp.zeros((H, W, C1), jnp.float32)
    for dy in range(3):
        for dx in range(3):
            patch = x_ref[0, pl.ds(dy, H), pl.ds(dx, W), :]        # (H, W, 1)
            acc1 = acc1 + patch * w1_ref[dy, dx]                   # broadcast over (1, C1)
    acc1 = jnp.maximum(acc1 + b1_ref[...], 0.0)

    # ---- maxpool 2x2 stride 2 (rows then cols, via strided ref loads) ----------------
    s1[...] = acc1
    s1b[...] = jnp.maximum(s1[pl.ds(0, Ho1, stride=2)], s1[pl.ds(1, Ho1, stride=2)])
    pooled1 = jnp.maximum(s1b[:, pl.ds(0, Wo1, stride=2), :],
                          s1b[:, pl.ds(1, Wo1, stride=2), :])       # (Ho1, Wo1, C1)

    # ---- conv2: C1 -> C2, 3x3, pad=1, as 9 whole-image MXU matmuls -------------------
    # padded copy lives in VMEM; interior store is sublane-aligned (offset wpad = 8).
    pad2[...] = jnp.zeros_like(pad2)
    pad2[pl.ds(1, Ho1), pl.ds(wpad, Wo1), :] = pooled1
    acc2 = jnp.zeros((Ho1 * Wo1, C2), jnp.float32)
    for dy in range(3):
        for dx in range(3):
            tap = pad2[pl.ds(dy, Ho1), pl.ds(wpad - 1 + dx, Wo1), :]   # (Ho1, Wo1, C1)
            acc2 = acc2 + jnp.dot(tap.reshape(Ho1 * Wo1, C1),
                                  w2_ref[dy * 3 + dx],
                                  preferred_element_type=jnp.float32)  # (Ho1*Wo1, C2)
    acc2 = jnp.maximum(acc2 + b2_ref[...], 0.0)

    # ---- maxpool 2x2 stride 2 on the (h*w, C2) flattened layout ----------------------
    s2[...] = acc2
    for i in range(Ho2):
        s2b[pl.ds(i * Wo1, Wo1), :] = jnp.maximum(
            s2[pl.ds((2 * i) * Wo1, Wo1), :],
            s2[pl.ds((2 * i + 1) * Wo1, Wo1), :])
    pooled2 = jnp.maximum(s2b[pl.ds(0, R, stride=2), :],
                          s2b[pl.ds(1, R, stride=2), :])             # (R, C2), rows = (h2, w2)
    s2c[...] = pooled2

    # ---- head: Linear(flat, D1) + ReLU -> Dropout (eval id) -> Linear(D1, D2) -> L2 --
    # The flatten is implicit: wl1 was pre-reshaped/permuted to (R, C2, D1), so the first
    # linear is a sum of R small MXU matmuls with no runtime relayout of activations.
    acc_h = jnp.zeros((1, wl1_ref.shape[2]), jnp.float32)
    for r in range(R):
        acc_h = acc_h + jnp.dot(s2c[pl.ds(r, 1), :], wl1_ref[r],
                                preferred_element_type=jnp.float32)
    h = jnp.maximum(acc_h + bl1_ref[...], 0.0)
    # TODO(synk): nn.Dropout(p=0.3) is eval-mode identity here; a training-mode mask
    # would use pltpu.prng_seed + pltpu.prng_random_bits.
    f = jnp.dot(h, wl2_ref[...], preferred_element_type=jnp.float32) + bl2_ref[...]
    ss = jnp.sum(f * f, axis=1, keepdims=True)
    # F.normalize: x / max(||x||, 1e-12)  ==  x * rsqrt(max(||x||^2, 1e-24))
    o_ref[0] = f * jax.lax.rsqrt(jnp.maximum(ss, 1e-24))


def custom_cnn_minidrop_forward(x_nchw, w1, b1, w2, b2, wl1, bl1, wl2, bl2):
    """Forward pass of CustomCNNminidrop.

    x_nchw: (N, 1, H, W) with H, W divisible by 4.
    w1: (3, 3, 1, C1) HWIO,   b1: (1, C1)
    w2: (3, 3, C1, C2) HWIO,  b2: (1, C2)
    wl1: (C2*(H//4)*(W//4), D1) rows in torch NCHW-flatten order, bl1: (1, D1)
    wl2: (D1, D2), bl2: (1, D2)
    Returns (N, D2) L2-normalized features.
    """
    N, Cin, H, W = x_nchw.shape
    assert Cin == 1 and H % 4 == 0 and W % 4 == 0, "expects 1 channel and H, W % 4 == 0"
    C1 = w1.shape[-1]
    C2 = w2.shape[-1]
    Ho1, Wo1 = H // 2, W // 2
    Ho2, Wo2 = Ho1 // 2, Wo1 // 2
    R = Ho2 * Wo2
    D1 = wl1.shape[-1]
    D2 = wl2.shape[-1]
    assert wl1.shape[0] == C2 * R

    # NCHW (C=1) -> NHWC is a free reshape; the 1-pixel pad of the single-channel input
    # is tiny and left to XLA.  Conv2's padding is built inside the kernel in VMEM.
    x = x_nchw.astype(jnp.float32).reshape(N, H, W, 1)
    xp = jnp.pad(x, ((0, 0), (1, 1), (1, 1), (0, 0)))

    w1 = w1.astype(jnp.float32)
    w2r = w2.astype(jnp.float32).reshape(9, C1, C2)
    # Absorb torch's NCHW flatten (c2, h2, w2) into a trace-time weight permutation:
    # the kernel contracts over rows r = h2*Wo2 + w2 of the (R, C2) pooled feature map.
    wl1k = wl1.astype(jnp.float32).reshape(C2, R, D1).transpose(1, 0, 2)   # (R, C2, D1)

    wpadded = Wo1 + 9   # 8-column (sublane-aligned) left zero pad + image + 1 right zero pad

    out = pl.pallas_call(
        _fused_kernel,
        out_shape=jax.ShapeDtypeStruct((N, 1, D2), jnp.float32),
        grid=(N,),
        in_specs=[
            pl.BlockSpec((1, H + 2, W + 2, 1), lambda n: (n, 0, 0, 0)),
            pl.BlockSpec((3, 3, 1, C1), lambda n: (0, 0, 0, 0)),
            pl.BlockSpec((1, C1), lambda n: (0, 0)),
            pl.BlockSpec((9, C1, C2), lambda n: (0, 0, 0)),
            pl.BlockSpec((1, C2), lambda n: (0, 0)),
            pl.BlockSpec((R, C2, D1), lambda n: (0, 0, 0)),
            pl.BlockSpec((1, D1), lambda n: (0, 0)),
            pl.BlockSpec((D1, D2), lambda n: (0, 0)),
            pl.BlockSpec((1, D2), lambda n: (0, 0)),
        ],
        out_specs=pl.BlockSpec((1, 1, D2), lambda n: (n, 0, 0)),
        scratch_shapes=[
            pltpu.VMEM((H, W, C1), jnp.float32),              # conv1 pre-pool
            pltpu.VMEM((Ho1, W, C1), jnp.float32),            # conv1 row-pooled
            pltpu.VMEM((Ho1 + 2, wpadded, C1), jnp.float32),  # conv2 padded input (VMEM pad)
            pltpu.VMEM((Ho1 * Wo1, C2), jnp.float32),         # conv2 pre-pool (flattened)
            pltpu.VMEM((Ho2 * Wo1, C2), jnp.float32),         # conv2 row-pooled
            pltpu.VMEM((R, C2), jnp.float32),                 # pooled2 flat features
        ],
        compiler_params=pltpu.CompilerParams(
            dimension_semantics=("parallel",)),
    )(xp, w1, b1.astype(jnp.float32), w2r, b2.astype(jnp.float32),
      wl1k, bl1.astype(jnp.float32), wl2.astype(jnp.float32), bl2.astype(jnp.float32))
    return out.reshape(N, D2)


# ------------------------- pure-JAX reference (for checking) -------------------------
def _reference_forward(x_nchw, w1, b1, w2, b2, wl1, bl1, wl2, bl2):
    hp = jax.lax.Precision.HIGHEST

    def conv(x, w, b):
        dn = jax.lax.conv_dimension_numbers(x.shape, w.shape, ("NHWC", "HWIO", "NHWC"))
        y = jax.lax.conv_general_dilated(x, w, (1, 1), "SAME",
                                         dimension_numbers=dn, precision=hp)
        return jax.nn.relu(y + b.reshape(1, 1, 1, -1))

    def pool(y):
        n, h, w, c = y.shape
        return y.reshape(n, h // 2, 2, w // 2, 2, c).max(axis=(2, 4))

    x = x_nchw.astype(jnp.float32).transpose(0, 2, 3, 1)                 # NHWC
    y = pool(conv(x, w1, b1))
    y = pool(conv(y, w2, b2))
    flat = jnp.transpose(y, (0, 3, 1, 2)).reshape(y.shape[0], -1)        # torch NCHW flatten
    h = jax.nn.relu(jnp.dot(flat, wl1, precision=hp) + bl1)
    f = jnp.dot(h, wl2, precision=hp) + bl2
    nrm = jnp.sqrt(jnp.sum(f * f, axis=1, keepdims=True))
    return f / jnp.maximum(nrm, 1e-12)


if __name__ == "__main__":
    key = jax.random.PRNGKey(0)
    ks = jax.random.split(key, 9)

    # Small shapes consistent with the module: batch=2, 1 input channel, spatial 16x16,
    # so flatten_dim = 32 * 4 * 4 = 512 (the real module uses 32 * 125 * 125).
    N, H, W, feat_dim = 2, 16, 16, 64
    C1, C2, D1 = 128, 32, 128
    flatten_dim = C2 * (H // 4) * (W // 4)

    x = jax.random.normal(ks[0], (N, 1, H, W), jnp.float32)              # NCHW like PyTorch
    w1 = jax.random.normal(ks[1], (3, 3, 1, C1), jnp.float32) * 0.10     # HWIO
    b1 = jax.random.normal(ks[2], (1, C1), jnp.float32) * 0.10
    w2 = jax.random.normal(ks[3], (3, 3, C1, C2), jnp.float32) * 0.05
    b2 = jax.random.normal(ks[4], (1, C2), jnp.float32) * 0.10
    wl1 = jax.random.normal(ks[5], (flatten_dim, D1), jnp.float32) * 0.05
    bl1 = jax.random.normal(ks[6], (1, D1), jnp.float32) * 0.10
    wl2 = jax.random.normal(ks[7], (D1, feat_dim), jnp.float32) * 0.05
    bl2 = jax.random.normal(ks[8], (1, feat_dim), jnp.float32) * 0.10

    fwd = jax.jit(custom_cnn_minidrop_forward)
    feat = jax.block_until_ready(fwd(x, w1, b1, w2, b2, wl1, bl1, wl2, bl2))

    ref = jax.block_until_ready(
        jax.jit(_reference_forward)(x, w1, b1, w2, b2, wl1, bl1, wl2, bl2))

    assert feat.shape == (N, feat_dim)
    assert bool(jnp.all(jnp.isfinite(feat)))
    max_err = float(jnp.max(jnp.abs(feat - ref)))
    assert max_err < 2e-2, f"mismatch vs pure-JAX reference: max abs err = {max_err}"
    print("KERNEL_OK")
</pallas_src>

<mosaic_0001>
module attributes {stable_mosaic.version = 11 : i64} {
  func.func @_fused_kernel(%arg0: i32, %arg1: memref<1x18x18x1xf32, #tpu.memory_space<vmem>>, %arg2: memref<3x3x1x128xf32, #tpu.memory_space<vmem>>, %arg3: memref<1x128xf32, #tpu.memory_space<vmem>>, %arg4: memref<9x128x32xf32, #tpu.memory_space<vmem>>, %arg5: memref<1x32xf32, #tpu.memory_space<vmem>>, %arg6: memref<16x32x128xf32, #tpu.memory_space<vmem>>, %arg7: memref<1x128xf32, #tpu.memory_space<vmem>>, %arg8: memref<128x64xf32, #tpu.memory_space<vmem>>, %arg9: memref<1x64xf32, #tpu.memory_space<vmem>>, %arg10: memref<1x1x64xf32, #tpu.memory_space<vmem>>, %arg11: memref<16x16x128xf32, #tpu.memory_space<vmem>>, %arg12: memref<8x16x128xf32, #tpu.memory_space<vmem>>, %arg13: memref<10x17x128xf32, #tpu.memory_space<vmem>>, %arg14: memref<64x32xf32, #tpu.memory_space<vmem>>, %arg15: memref<32x32xf32, #tpu.memory_space<vmem>>, %arg16: memref<16x32xf32, #tpu.memory_space<vmem>>) attributes {dimension_semantics = [#tpu.dimension_semantics<parallel>], iteration_bounds = array<i64: 2>, scalar_prefetch = 0 : i64, scratch_operands = 6 : i64, tpu.core_type = #tpu.core_type<tc>, window_params = [{transform_indices = @transform_0, window_bounds = array<i64: 1, 18, 18, 1>}, {pipeline_mode = #tpu.pipeline_mode<synchronous>, transform_indices = @transform_1, window_bounds = array<i64: 3, 3, 1, 128>}, {pipeline_mode = #tpu.pipeline_mode<synchronous>, transform_indices = @transform_2, window_bounds = array<i64: 1, 128>}, {pipeline_mode = #tpu.pipeline_mode<synchronous>, transform_indices = @transform_3, window_bounds = array<i64: 9, 128, 32>}, {pipeline_mode = #tpu.pipeline_mode<synchronous>, transform_indices = @transform_4, window_bounds = array<i64: 1, 32>}, {pipeline_mode = #tpu.pipeline_mode<synchronous>, transform_indices = @transform_5, window_bounds = array<i64: 16, 32, 128>}, {pipeline_mode = #tpu.pipeline_mode<synchronous>, transform_indices = @transform_6, window_bounds = array<i64: 1, 128>}, {pipeline_mode = #tpu.pipeline_mode<synchronous>, transform_indices = @transform_7, window_bounds = array<i64: 128, 64>}, {pipeline_mode = #tpu.pipeline_mode<synchronous>, transform_indices = @transform_8, window_bounds = array<i64: 1, 64>}, {transform_indices = @transform_9, window_bounds = array<i64: 1, 1, 64>}]} {
    %cst = arith.constant 0.000000e+00 : f32
    %0 = vector.broadcast %cst : f32 to vector<16x16x128xf32>
    %c0 = arith.constant 0 : index
    %c0_0 = arith.constant 0 : index
    %c0_1 = arith.constant 0 : index
    %c0_2 = arith.constant 0 : index
    %1 = vector.load %arg1[%c0, %c0_0, %c0_1, %c0_2] : memref<1x18x18x1xf32, #tpu.memory_space<vmem>>, vector<1x16x16x1xf32>
    %2 = vector.shape_cast %1 : vector<1x16x16x1xf32> to vector<16x16x1xf32>
    %c0_3 = arith.constant 0 : index
    %c0_4 = arith.constant 0 : index
    %c0_5 = arith.constant 0 : index
    %c0_6 = arith.constant 0 : index
    %3 = vector.load %arg2[%c0_3, %c0_4, %c0_5, %c0_6] : memref<3x3x1x128xf32, #tpu.memory_space<vmem>>, vector<1x1x1x128xf32>
    %4 = vector.shape_cast %3 : vector<1x1x1x128xf32> to vector<1x128xf32>
    %5 = vector.shape_cast %4 : vector<1x128xf32> to vector<1x1x128xf32>
    %6 = vector.broadcast %2 : vector<16x16x1xf32> to vector<16x16x128xf32>
    %7 = vector.broadcast %5 : vector<1x1x128xf32> to vector<16x16x128xf32>
    %8 = arith.mulf %6, %7 : vector<16x16x128xf32>
    %9 = arith.addf %0, %8 : vector<16x16x128xf32>
    %c0_7 = arith.constant 0 : index
    %c0_8 = arith.constant 0 : index
    %c1 = arith.constant 1 : index
    %c0_9 = arith.constant 0 : index
    %10 = vector.load %arg1[%c0_7, %c0_8, %c1, %c0_9] : memref<1x18x18x1xf32, #tpu.memory_space<vmem>>, vector<1x16x16x1xf32>
    %11 = vector.shape_cast %10 : vector<1x16x16x1xf32> to vector<16x16x1xf32>
    %c0_10 = arith.constant 0 : index
    %c1_11 = arith.constant 1 : index
    %c0_12 = arith.constant 0 : index
    %c0_13 = arith.constant 0 : index
    %12 = vector.load %arg2[%c0_10, %c1_11, %c0_12, %c0_13] : memref<3x3x1x128xf32, #tpu.memory_space<vmem>>, vector<1x1x1x128xf32>
    %13 = vector.shape_cast %12 : vector<1x1x1x128xf32> to vector<1x128xf32>
    %14 = vector.shape_cast %13 : vector<1x128xf32> to vector<1x1x128xf32>
    %15 = vector.broadcast %11 : vector<16x16x1xf32> to vector<16x16x128xf32>
    %16 = vector.broadcast %14 : vector<1x1x128xf32> to vector<16x16x128xf32>
    %17 = arith.mulf %15, %16 : vector<16x16x128xf32>
    %18 = arith.addf %9, %17 : vector<16x16x128xf32>
    %c0_14 = arith.constant 0 : index
    %c0_15 = arith.constant 0 : index
    %c2 = arith.constant 2 : index
    %c0_16 = arith.constant 0 : index
    %19 = vector.load %arg1[%c0_14, %c0_15, %c2, %c0_16] : memref<1x18x18x1xf32, #tpu.memory_space<vmem>>, vector<1x16x16x1xf32>
    %20 = vector.shape_cast %19 : vector<1x16x16x1xf32> to vector<16x16x1xf32>
    %c0_17 = arith.constant 0 : index
    %c2_18 = arith.constant 2 : index
    %c0_19 = arith.constant 0 : index
    %c0_20 = arith.constant 0 : index
    %21 = vector.load %arg2[%c0_17, %c2_18, %c0_19, %c0_20] : memref<3x3x1x128xf32, #tpu.memory_space<vmem>>, vector<1x1x1x128xf32>
    %22 = vector.shape_cast %21 : vector<1x1x1x128xf32> to vector<1x128xf32>
    %23 = vector.shape_cast %22 : vector<1x128xf32> to vector<1x1x128xf32>
    %24 = vector.broadcast %20 : vector<16x16x1xf32> to vector<16x16x128xf32>
    %25 = vector.broadcast %23 : vector<1x1x128xf32> to vector<16x16x128xf32>
    %26 = arith.mulf %24, %25 : vector<16x16x128xf32>
    %27 = arith.addf %18, %26 : vector<16x16x128xf32>
    %c0_21 = arith.constant 0 : index
    %c1_22 = arith.constant 1 : index
    %c0_23 = arith.constant 0 : index
    %c0_24 = arith.constant 0 : index
    %28 = vector.load %arg1[%c0_21, %c1_22, %c0_23, %c0_24] : memref<1x18x18x1xf32, #tpu.memory_space<vmem>>, vector<1x16x16x1xf32>
    %29 = vector.shape_cast %28 : vector<1x16x16x1xf32> to vector<16x16x1xf32>
    %c1_25 = arith.constant 1 : index
    %c0_26 = arith.constant 0 : index
    %c0_27 = arith.constant 0 : index
    %c0_28 = arith.constant 0 : index
    %30 = vector.load %arg2[%c1_25, %c0_26, %c0_27, %c0_28] : memref<3x3x1x128xf32, #tpu.memory_space<vmem>>, vector<1x1x1x128xf32>
    %31 = vector.shape_cast %30 : vector<1x1x1x128xf32> to vector<1x128xf32>
    %32 = vector.shape_cast %31 : vector<1x128xf32> to vector<1x1x128xf32>
    %33 = vector.broadcast %29 : vector<16x16x1xf32> to vector<16x16x128xf32>
    %34 = vector.broadcast %32 : vector<1x1x128xf32> to vector<16x16x128xf32>
    %35 = arith.mulf %33, %34 : vector<16x16x128xf32>
    %36 = arith.addf %27, %35 : vector<16x16x128xf32>
    %c0_29 = arith.constant 0 : index
    %c1_30 = arith.constant 1 : index
    %c1_31 = arith.constant 1 : index
    %c0_32 = arith.constant 0 : index
    %37 = vector.load %arg1[%c0_29, %c1_30, %c1_31, %c0_32] : memref<1x18x18x1xf32, #tpu.memory_space<vmem>>, vector<1x16x16x1xf32>
    %38 = vector.shape_cast %37 : vector<1x16x16x1xf32> to vector<16x16x1xf32>
    %c1_33 = arith.constant 1 : index
    %c1_34 = arith.constant 1 : index
    %c0_35 = arith.constant 0 : index
    %c0_36 = arith.constant 0 : index
    %39 = vector.load %arg2[%c1_33, %c1_34, %c0_35, %c0_36] : memref<3x3x1x128xf32, #tpu.memory_space<vmem>>, vector<1x1x1x128xf32>
    %40 = vector.shape_cast %39 : vector<1x1x1x128xf32> to vector<1x128xf32>
    %41 = vector.shape_cast %40 : vector<1x128xf32> to vector<1x1x128xf32>
    %42 = vector.broadcast %38 : vector<16x16x1xf32> to vector<16x16x128xf32>
    %43 = vector.broadcast %41 : vector<1x1x128xf32> to vector<16x16x128xf32>
    %44 = arith.mulf %42, %43 : vector<16x16x128xf32>
    %45 = arith.addf %36, %44 : vector<16x16x128xf32>
    %c0_37 = arith.constant 0 : index
    %c1_38 = arith.constant 1 : index
    %c2_39 = arith.constant 2 : index
    %c0_40 = arith.constant 0 : index
    %46 = vector.load %arg1[%c0_37, %c1_38, %c2_39, %c0_40] : memref<1x18x18x1xf32, #tpu.memory_space<vmem>>, vector<1x16x16x1xf32>
    %47 = vector.shape_cast %46 : vector<1x16x16x1xf32> to vector<16x16x1xf32>
    %c1_41 = arith.constant 1 : index
    %c2_42 = arith.constant 2 : index
    %c0_43 = arith.constant 0 : index
    %c0_44 = arith.constant 0 : index
    %48 = vector.load %arg2[%c1_41, %c2_42, %c0_43, %c0_44] : memref<3x3x1x128xf32, #tpu.memory_space<vmem>>, vector<1x1x1x128xf32>
    %49 = vector.shape_cast %48 : vector<1x1x1x128xf32> to vector<1x128xf32>
    %50 = vector.shape_cast %49 : vector<1x128xf32> to vector<1x1x128xf32>
    %51 = vector.broadcast %47 : vector<16x16x1xf32> to vector<16x16x128xf32>
    %52 = vector.broadcast %50 : vector<1x1x128xf32> to vector<16x16x128xf32>
    %53 = arith.mulf %51, %52 : vector<16x16x128xf32>
    %54 = arith.addf %45, %53 : vector<16x16x128xf32>
    %c0_45 = arith.constant 0 : index
    %c2_46 = arith.constant 2 : index
    %c0_47 = arith.constant 0 : index
    %c0_48 = arith.constant 0 : index
    %55 = vector.load %arg1[%c0_45, %c2_46, %c0_47, %c0_48] : memref<1x18x18x1xf32, #tpu.memory_space<vmem>>, vector<1x16x16x1xf32>
    %56 = vector.shape_cast %55 : vector<1x16x16x1xf32> to vector<16x16x1xf32>
    %c2_49 = arith.constant 2 : index
    %c0_50 = arith.constant 0 : index
    %c0_51 = arith.constant 0 : index
    %c0_52 = arith.constant 0 : index
    %57 = vector.load %arg2[%c2_49, %c0_50, %c0_51, %c0_52] : memref<3x3x1x128xf32, #tpu.memory_space<vmem>>, vector<1x1x1x128xf32>
    %58 = vector.shape_cast %57 : vector<1x1x1x128xf32> to vector<1x128xf32>
    %59 = vector.shape_cast %58 : vector<1x128xf32> to vector<1x1x128xf32>
    %60 = vector.broadcast %56 : vector<16x16x1xf32> to vector<16x16x128xf32>
    %61 = vector.broadcast %59 : vector<1x1x128xf32> to vector<16x16x128xf32>
    %62 = arith.mulf %60, %61 : vector<16x16x128xf32>
    %63 = arith.addf %54, %62 : vector<16x16x128xf32>
    %c0_53 = arith.constant 0 : index
    %c2_54 = arith.constant 2 : index
    %c1_55 = arith.constant 1 : index
    %c0_56 = arith.constant 0 : index
    %64 = vector.load %arg1[%c0_53, %c2_54, %c1_55, %c0_56] : memref<1x18x18x1xf32, #tpu.memory_space<vmem>>, vector<1x16x16x1xf32>
    %65 = vector.shape_cast %64 : vector<1x16x16x1xf32> to vector<16x16x1xf32>
    %c2_57 = arith.constant 2 : index
    %c1_58 = arith.constant 1 : index
    %c0_59 = arith.constant 0 : index
    %c0_60 = arith.constant 0 : index
    %66 = vector.load %arg2[%c2_57, %c1_58, %c0_59, %c0_60] : memref<3x3x1x128xf32, #tpu.memory_space<vmem>>, vector<1x1x1x128xf32>
    %67 = vector.shape_cast %66 : vector<1x1x1x128xf32> to vector<1x128xf32>
    %68 = vector.shape_cast %67 : vector<1x128xf32> to vector<1x1x128xf32>
    %69 = vector.broadcast %65 : vector<16x16x1xf32> to vector<16x16x128xf32>
    %70 = vector.broadcast %68 : vector<1x1x128xf32> to vector<16x16x128xf32>
    %71 = arith.mulf %69, %70 : vector<16x16x128xf32>
    %72 = arith.addf %63, %71 : vector<16x16x128xf32>
    %c0_61 = arith.constant 0 : index
    %c2_62 = arith.constant 2 : index
    %c2_63 = arith.constant 2 : index
    %c0_64 = arith.constant 0 : index
    %73 = vector.load %arg1[%c0_61, %c2_62, %c2_63, %c0_64] : memref<1x18x18x1xf32, #tpu.memory_space<vmem>>, vector<1x16x16x1xf32>
    %74 = vector.shape_cast %73 : vector<1x16x16x1xf32> to vector<16x16x1xf32>
    %c2_65 = arith.constant 2 : index
    %c2_66 = arith.constant 2 : index
    %c0_67 = arith.constant 0 : index
    %c0_68 = arith.constant 0 : index
    %75 = vector.load %arg2[%c2_65, %c2_66, %c0_67, %c0_68] : memref<3x3x1x128xf32, #tpu.memory_space<vmem>>, vector<1x1x1x128xf32>
    %76 = vector.shape_cast %75 : vector<1x1x1x128xf32> to vector<1x128xf32>
    %77 = vector.shape_cast %76 : vector<1x128xf32> to vector<1x1x128xf32>
    %78 = vector.broadcast %74 : vector<16x16x1xf32> to vector<16x16x128xf32>
    %79 = vector.broadcast %77 : vector<1x1x128xf32> to vector<16x16x128xf32>
    %80 = arith.mulf %78, %79 : vector<16x16x128xf32>
    %81 = arith.addf %72, %80 : vector<16x16x128xf32>
    %c0_69 = arith.constant 0 : index
    %c0_70 = arith.constant 0 : index
    %82 = vector.load %arg3[%c0_69, %c0_70] : memref<1x128xf32, #tpu.memory_space<vmem>>, vector<1x128xf32>
    %83 = vector.shape_cast %82 : vector<1x128xf32> to vector<1x1x128xf32>
    %84 = vector.broadcast %83 : vector<1x1x128xf32> to vector<16x16x128xf32>
    %85 = arith.addf %81, %84 : vector<16x16x128xf32>
    %cst_71 = arith.constant 0.000000e+00 : f32
    %86 = vector.broadcast %cst_71 : f32 to vector<16x16x128xf32>
    %87 = arith.maximumf %85, %86 : vector<16x16x128xf32>
    %c0_72 = arith.constant 0 : index
    %c0_73 = arith.constant 0 : index
    %c0_74 = arith.constant 0 : index
    %88 = vector.load %arg11[%c0_72, %c0_73, %c0_74] : memref<16x16x128xf32, #tpu.memory_space<vmem>>, vector<16x16x128xf32>
    tpu.vector_store %arg11[%c0_72, %c0_73, %c0_74], %87 {strides = array<i32>} : memref<16x16x128xf32, #tpu.memory_space<vmem>>, vector<16x16x128xf32>,
    %c0_75 = arith.constant 0 : index
    %c0_76 = arith.constant 0 : index
    %c0_77 = arith.constant 0 : index
    %89 = tpu.strided_load %arg11[%c0_75, %c0_76, %c0_77] {strides = array<i32: 2, 1, 1>} : memref<16x16x128xf32, #tpu.memory_space<vmem>>, vector<8x16x128xf32>
    %c1_78 = arith.constant 1 : index
    %c0_79 = arith.constant 0 : index
    %c0_80 = arith.constant 0 : index
    %90 = tpu.strided_load %arg11[%c1_78, %c0_79, %c0_80] {strides = array<i32: 2, 1, 1>} : memref<16x16x128xf32, #tpu.memory_space<vmem>>, vector<8x16x128xf32>
    %91 = arith.maximumf %89, %90 : vector<8x16x128xf32>
    %c0_81 = arith.constant 0 : index
    %c0_82 = arith.constant 0 : index
    %c0_83 = arith.constant 0 : index
    %92 = vector.load %arg12[%c0_81, %c0_82, %c0_83] : memref<8x16x128xf32, #tpu.memory_space<vmem>>, vector<8x16x128xf32>
    tpu.vector_store %arg12[%c0_81, %c0_82, %c0_83], %91 {strides = array<i32>} : memref<8x16x128xf32, #tpu.memory_space<vmem>>, vector<8x16x128xf32>,
    %c0_84 = arith.constant 0 : index
    %c0_85 = arith.constant 0 : index
    %c0_86 = arith.constant 0 : index
    %93 = tpu.strided_load %arg12[%c0_84, %c0_85, %c0_86] {strides = array<i32: 1, 2, 1>} : memref<8x16x128xf32, #tpu.memory_space<vmem>>, vector<8x8x128xf32>
    %c0_87 = arith.constant 0 : index
    %c1_88 = arith.constant 1 : index
    %c0_89 = arith.constant 0 : index
    %94 = tpu.strided_load %arg12[%c0_87, %c1_88, %c0_89] {strides = array<i32: 1, 2, 1>} : memref<8x16x128xf32, #tpu.memory_space<vmem>>, vector<8x8x128xf32>
    %95 = arith.maximumf %93, %94 : vector<8x8x128xf32>
    %cst_90 = arith.constant 0.000000e+00 : f32
    %96 = vector.broadcast %cst_90 : f32 to vector<10x17x128xf32>
    %c0_91 = arith.constant 0 : index
    %c0_92 = arith.constant 0 : index
    %c0_93 = arith.constant 0 : index
    %97 = vector.load %arg13[%c0_91, %c0_92, %c0_93] : memref<10x17x128xf32, #tpu.memory_space<vmem>>, vector<10x17x128xf32>
    tpu.vector_store %arg13[%c0_91, %c0_92, %c0_93], %96 {strides = array<i32>} : memref<10x17x128xf32, #tpu.memory_space<vmem>>, vector<10x17x128xf32>,
    %c1_94 = arith.constant 1 : index
    %c8 = arith.constant 8 : index
    %c0_95 = arith.constant 0 : index
    %98 = vector.load %arg13[%c1_94, %c8, %c0_95] : memref<10x17x128xf32, #tpu.memory_space<vmem>>, vector<8x8x128xf32>
    tpu.vector_store %arg13[%c1_94, %c8, %c0_95], %95 {strides = array<i32>} : memref<10x17x128xf32, #tpu.memory_space<vmem>>, vector<8x8x128xf32>,
    %cst_96 = arith.constant 0.000000e+00 : f32
    %99 = vector.broadcast %cst_96 : f32 to vector<64x32xf32>
    %c0_97 = arith.constant 0 : index
    %c7 = arith.constant 7 : index
    %c0_98 = arith.constant 0 : index
    %100 = vector.load %arg13[%c0_97, %c7, %c0_98] : memref<10x17x128xf32, #tpu.memory_space<vmem>>, vector<8x8x128xf32>
    %101 = vector.shape_cast %100 : vector<8x8x128xf32> to vector<64x128xf32>
    %c0_99 = arith.constant 0 : index
    %c0_100 = arith.constant 0 : index
    %c0_101 = arith.constant 0 : index
    %102 = vector.load %arg4[%c0_99, %c0_100, %c0_101] : memref<9x128x32xf32, #tpu.memory_space<vmem>>, vector<1x128x32xf32>
    %103 = vector.shape_cast %102 : vector<1x128x32xf32> to vector<128x32xf32>
    %cst_102 = arith.constant dense<0.000000e+00> : vector<64x32xf32>
    %104 = tpu.matmul %101, %103, %cst_102 {dimension_numbers = #tpu.dot_dimension_numbers<[1], [0], [0], [1], [0, 0, 1, 1], [], []>} : vector<64x128xf32>, vector<128x32xf32>, vector<64x32xf32> -> vector<64x32xf32>
    %105 = arith.addf %99, %104 : vector<64x32xf32>
    %c0_103 = arith.constant 0 : index
    %c8_104 = arith.constant 8 : index
    %c0_105 = arith.constant 0 : index
    %106 = vector.load %arg13[%c0_103, %c8_104, %c0_105] : memref<10x17x128xf32, #tpu.memory_space<vmem>>, vector<8x8x128xf32>
    %107 = vector.shape_cast %106 : vector<8x8x128xf32> to vector<64x128xf32>
    %c1_106 = arith.constant 1 : index
    %c0_107 = arith.constant 0 : index
    %c0_108 = arith.constant 0 : index
    %108 = vector.load %arg4[%c1_106, %c0_107, %c0_108] : memref<9x128x32xf32, #tpu.memory_space<vmem>>, vector<1x128x32xf32>
    %109 = vector.shape_cast %108 : vector<1x128x32xf32> to vector<128x32xf32>
    %cst_109 = arith.constant dense<0.000000e+00> : vector<64x32xf32>
    %110 = tpu.matmul %107, %109, %cst_109 {dimension_numbers = #tpu.dot_dimension_numbers<[1], [0], [0], [1], [0, 0, 1, 1], [], []>} : vector<64x128xf32>, vector<128x32xf32>, vector<64x32xf32> -> vector<64x32xf32>
    %111 = arith.addf %105, %110 : vector<64x32xf32>
    %c0_110 = arith.constant 0 : index
    %c9 = arith.constant 9 : index
    %c0_111 = arith.constant 0 : index
    %112 = vector.load %arg13[%c0_110, %c9, %c0_111] : memref<10x17x128xf32, #tpu.memory_space<vmem>>, vector<8x8x128xf32>
    %113 = vector.shape_cast %112 : vector<8x8x128xf32> to vector<64x128xf32>
    %c2_112 = arith.constant 2 : index
    %c0_113 = arith.constant 0 : index
    %c0_114 = arith.constant 0 : index
    %114 = vector.load %arg4[%c2_112, %c0_113, %c0_114] : memref<9x128x32xf32, #tpu.memory_space<vmem>>, vector<1x128x32xf32>
    %115 = vector.shape_cast %114 : vector<1x128x32xf32> to vector<128x32xf32>
    %cst_115 = arith.constant dense<0.000000e+00> : vector<64x32xf32>
    %116 = tpu.matmul %113, %115, %cst_115 {dimension_numbers = #tpu.dot_dimension_numbers<[1], [0], [0], [1], [0, 0, 1, 1], [], []>} : vector<64x128xf32>, vector<128x32xf32>, vector<64x32xf32> -> vector<64x32xf32>
    %117 = arith.addf %111, %116 : vector<64x32xf32>
    %c1_116 = arith.constant 1 : index
    %c7_117 = arith.constant 7 : index
    %c0_118 = arith.constant 0 : index
    %118 = vector.load %arg13[%c1_116, %c7_117, %c0_118] : memref<10x17x128xf32, #tpu.memory_space<vmem>>, vector<8x8x128xf32>
    %119 = vector.shape_cast %118 : vector<8x8x128xf32> to vector<64x128xf32>
    %c3 = arith.constant 3 : index
    %c0_119 = arith.constant 0 : index
    %c0_120 = arith.constant 0 : index
    %120 = vector.load %arg4[%c3, %c0_119, %c0_120] : memref<9x128x32xf32, #tpu.memory_space<vmem>>, vector<1x128x32xf32>
    %121 = vector.shape_cast %120 : vector<1x128x32xf32> to vector<128x32xf32>
    %cst_121 = arith.constant dense<0.000000e+00> : vector<64x32xf32>
    %122 = tpu.matmul %119, %121, %cst_121 {dimension_numbers = #tpu.dot_dimension_numbers<[1], [0], [0], [1], [0, 0, 1, 1], [], []>} : vector<64x128xf32>, vector<128x32xf32>, vector<64x32xf32> -> vector<64x32xf32>
    %123 = arith.addf %117, %122 : vector<64x32xf32>
    %c1_122 = arith.constant 1 : index
    %c8_123 = arith.constant 8 : index
    %c0_124 = arith.constant 0 : index
    %124 = vector.load %arg13[%c1_122, %c8_123, %c0_124] : memref<10x17x128xf32, #tpu.memory_space<vmem>>, vector<8x8x128xf32>
    %125 = vector.shape_cast %124 : vector<8x8x128xf32> to vector<64x128xf32>
    %c4 = arith.constant 4 : index
    %c0_125 = arith.constant 0 : index
    %c0_126 = arith.constant 0 : index
    %126 = vector.load %arg4[%c4, %c0_125, %c0_126] : memref<9x128x32xf32, #tpu.memory_space<vmem>>, vector<1x128x32xf32>
    %127 = vector.shape_cast %126 : vector<1x128x32xf32> to vector<128x32xf32>
    %cst_127 = arith.constant dense<0.000000e+00> : vector<64x32xf32>
    %128 = tpu.matmul %125, %127, %cst_127 {dimension_numbers = #tpu.dot_dimension_numbers<[1], [0], [0], [1], [0, 0, 1, 1], [], []>} : vector<64x128xf32>, vector<128x32xf32>, vector<64x32xf32> -> vector<64x32xf32>
    %129 = arith.addf %123, %128 : vector<64x32xf32>
    %c1_128 = arith.constant 1 : index
    %c9_129 = arith.constant 9 : index
    %c0_130 = arith.constant 0 : index
    %130 = vector.load %arg13[%c1_128, %c9_129, %c0_130] : memref<10x17x128xf32, #tpu.memory_space<vmem>>, vector<8x8x128xf32>
    %131 = vector.shape_cast %130 : vector<8x8x128xf32> to vector<64x128xf32>
    %c5 = arith.constant 5 : index
    %c0_131 = arith.constant 0 : index
    %c0_132 = arith.constant 0 : index
    %132 = vector.load %arg4[%c5, %c0_131, %c0_132] : memref<9x128x32xf32, #tpu.memory_space<vmem>>, vector<1x128x32xf32>
    %133 = vector.shape_cast %132 : vector<1x128x32xf32> to vector<128x32xf32>
    %cst_133 = arith.constant dense<0.000000e+00> : vector<64x32xf32>
    %134 = tpu.matmul %131, %133, %cst_133 {dimension_numbers = #tpu.dot_dimension_numbers<[1], [0], [0], [1], [0, 0, 1, 1], [], []>} : vector<64x128xf32>, vector<128x32xf32>, vector<64x32xf32> -> vector<64x32xf32>
    %135 = arith.addf %129, %134 : vector<64x32xf32>
    %c2_134 = arith.constant 2 : index
    %c7_135 = arith.constant 7 : index
    %c0_136 = arith.constant 0 : index
    %136 = vector.load %arg13[%c2_134, %c7_135, %c0_136] : memref<10x17x128xf32, #tpu.memory_space<vmem>>, vector<8x8x128xf32>
    %137 = vector.shape_cast %136 : vector<8x8x128xf32> to vector<64x128xf32>
    %c6 = arith.constant 6 : index
    %c0_137 = arith.constant 0 : index
    %c0_138 = arith.constant 0 : index
    %138 = vector.load %arg4[%c6, %c0_137, %c0_138] : memref<9x128x32xf32, #tpu.memory_space<vmem>>, vector<1x128x32xf32>
    %139 = vector.shape_cast %138 : vector<1x128x32xf32> to vector<128x32xf32>
    %cst_139 = arith.constant dense<0.000000e+00> : vector<64x32xf32>
    %140 = tpu.matmul %137, %139, %cst_139 {dimension_numbers = #tpu.dot_dimension_numbers<[1], [0], [0], [1], [0, 0, 1, 1], [], []>} : vector<64x128xf32>, vector<128x32xf32>, vector<64x32xf32> -> vector<64x32xf32>
    %141 = arith.addf %135, %140 : vector<64x32xf32>
    %c2_140 = arith.constant 2 : index
    %c8_141 = arith.constant 8 : index
    %c0_142 = arith.constant 0 : index
    %142 = vector.load %arg13[%c2_140, %c8_141, %c0_142] : memref<10x17x128xf32, #tpu.memory_space<vmem>>, vector<8x8x128xf32>
    %143 = vector.shape_cast %142 : vector<8x8x128xf32> to vector<64x128xf32>
    %c7_143 = arith.constant 7 : index
    %c0_144 = arith.constant 0 : index
    %c0_145 = arith.constant 0 : index
    %144 = vector.load %arg4[%c7_143, %c0_144, %c0_145] : memref<9x128x32xf32, #tpu.memory_space<vmem>>, vector<1x128x32xf32>
    %145 = vector.shape_cast %144 : vector<1x128x32xf32> to vector<128x32xf32>
    %cst_146 = arith.constant dense<0.000000e+00> : vector<64x32xf32>
    %146 = tpu.matmul %143, %145, %cst_146 {dimension_numbers = #tpu.dot_dimension_numbers<[1], [0], [0], [1], [0, 0, 1, 1], [], []>} : vector<64x128xf32>, vector<128x32xf32>, vector<64x32xf32> -> vector<64x32xf32>
    %147 = arith.addf %141, %146 : vector<64x32xf32>
    %c2_147 = arith.constant 2 : index
    %c9_148 = arith.constant 9 : index
    %c0_149 = arith.constant 0 : index
    %148 = vector.load %arg13[%c2_147, %c9_148, %c0_149] : memref<10x17x128xf32, #tpu.memory_space<vmem>>, vector<8x8x128xf32>
    %149 = vector.shape_cast %148 : vector<8x8x128xf32> to vector<64x128xf32>
    %c8_150 = arith.constant 8 : index
    %c0_151 = arith.constant 0 : index
    %c0_152 = arith.constant 0 : index
    %150 = vector.load %arg4[%c8_150, %c0_151, %c0_152] : memref<9x128x32xf32, #tpu.memory_space<vmem>>, vector<1x128x32xf32>
    %151 = vector.shape_cast %150 : vector<1x128x32xf32> to vector<128x32xf32>
    %cst_153 = arith.constant dense<0.000000e+00> : vector<64x32xf32>
    %152 = tpu.matmul %149, %151, %cst_153 {dimension_numbers = #tpu.dot_dimension_numbers<[1], [0], [0], [1], [0, 0, 1, 1], [], []>} : vector<64x128xf32>, vector<128x32xf32>, vector<64x32xf32> -> vector<64x32xf32>
    %153 = arith.addf %147, %152 : vector<64x32xf32>
    %c0_154 = arith.constant 0 : index
    %c0_155 = arith.constant 0 : index
    %154 = vector.load %arg5[%c0_154, %c0_155] : memref<1x32xf32, #tpu.memory_space<vmem>>, vector<1x32xf32>
    %155 = vector.broadcast %154 : vector<1x32xf32> to vector<64x32xf32>
    %156 = arith.addf %153, %155 : vector<64x32xf32>
    %cst_156 = arith.constant 0.000000e+00 : f32
    %157 = vector.broadcast %cst_156 : f32 to vector<64x32xf32>
    %158 = arith.maximumf %156, %157 : vector<64x32xf32>
    %c0_157 = arith.constant 0 : index
    %c0_158 = arith.constant 0 : index
    %159 = vector.load %arg14[%c0_157, %c0_158] : memref<64x32xf32, #tpu.memory_space<vmem>>, vector<64x32xf32>
    tpu.vector_store %arg14[%c0_157, %c0_158], %158 {strides = array<i32>} : memref<64x32xf32, #tpu.memory_space<vmem>>, vector<64x32xf32>,
    %c0_159 = arith.constant 0 : index
    %c0_160 = arith.constant 0 : index
    %160 = vector.load %arg14[%c0_159, %c0_160] : memref<64x32xf32, #tpu.memory_space<vmem>>, vector<8x32xf32>
    %c8_161 = arith.constant 8 : index
    %c0_162 = arith.constant 0 : index
    %161 = vector.load %arg14[%c8_161, %c0_162] : memref<64x32xf32, #tpu.memory_space<vmem>>, vector<8x32xf32>
    %162 = arith.maximumf %160, %161 : vector<8x32xf32>
    %c0_163 = arith.constant 0 : index
    %c0_164 = arith.constant 0 : index
    %163 = vector.load %arg15[%c0_163, %c0_164] : memref<32x32xf32, #tpu.memory_space<vmem>>, vector<8x32xf32>
    tpu.vector_store %arg15[%c0_163, %c0_164], %162 {strides = array<i32>} : memref<32x32xf32, #tpu.memory_space<vmem>>, vector<8x32xf32>,
    %c16 = arith.constant 16 : index
    %c0_165 = arith.constant 0 : index
    %164 = vector.load %arg14[%c16, %c0_165] : memref<64x32xf32, #tpu.memory_space<vmem>>, vector<8x32xf32>
    %c24 = arith.constant 24 : index
    %c0_166 = arith.constant 0 : index
    %165 = vector.load %arg14[%c24, %c0_166] : memref<64x32xf32, #tpu.memory_space<vmem>>, vector<8x32xf32>
    %166 = arith.maximumf %164, %165 : vector<8x32xf32>
    %c8_167 = arith.constant 8 : index
    %c0_168 = arith.constant 0 : index
    %167 = vector.load %arg15[%c8_167, %c0_168] : memref<32x32xf32, #tpu.memory_space<vmem>>, vector<8x32xf32>
    tpu.vector_store %arg15[%c8_167, %c0_168], %166 {strides = array<i32>} : memref<32x32xf32, #tpu.memory_space<vmem>>, vector<8x32xf32>,
    %c32 = arith.constant 32 : index
    %c0_169 = arith.constant 0 : index
    %168 = vector.load %arg14[%c32, %c0_169] : memref<64x32xf32, #tpu.memory_space<vmem>>, vector<8x32xf32>
    %c40 = arith.constant 40 : index
    %c0_170 = arith.constant 0 : index
    %169 = vector.load %arg14[%c40, %c0_170] : memref<64x32xf32, #tpu.memory_space<vmem>>, vector<8x32xf32>
    %170 = arith.maximumf %168, %169 : vector<8x32xf32>
    %c16_171 = arith.constant 16 : index
    %c0_172 = arith.constant 0 : index
    %171 = vector.load %arg15[%c16_171, %c0_172] : memref<32x32xf32, #tpu.memory_space<vmem>>, vector<8x32xf32>
    tpu.vector_store %arg15[%c16_171, %c0_172], %170 {strides = array<i32>} : memref<32x32xf32, #tpu.memory_space<vmem>>, vector<8x32xf32>,
    %c48 = arith.constant 48 : index
    %c0_173 = arith.constant 0 : index
    %172 = vector.load %arg14[%c48, %c0_173] : memref<64x32xf32, #tpu.memory_space<vmem>>, vector<8x32xf32>
    %c56 = arith.constant 56 : index
    %c0_174 = arith.constant 0 : index
    %173 = vector.load %arg14[%c56, %c0_174] : memref<64x32xf32, #tpu.memory_space<vmem>>, vector<8x32xf32>
    %174 = arith.maximumf %172, %173 : vector<8x32xf32>
    %c24_175 = arith.constant 24 : index
    %c0_176 = arith.constant 0 : index
    %175 = vector.load %arg15[%c24_175, %c0_176] : memref<32x32xf32, #tpu.memory_space<vmem>>, vector<8x32xf32>
    tpu.vector_store %arg15[%c24_175, %c0_176], %174 {strides = array<i32>} : memref<32x32xf32, #tpu.memory_space<vmem>>, vector<8x32xf32>,
    %c0_177 = arith.constant 0 : index
    %c0_178 = arith.constant 0 : index
    %176 = tpu.strided_load %arg15[%c0_177, %c0_178] {strides = array<i32: 2, 1>} : memref<32x32xf32, #tpu.memory_space<vmem>>, vector<16x32xf32>
    %c1_179 = arith.constant 1 : index
    %c0_180 = arith.constant 0 : index
    %177 = tpu.strided_load %arg15[%c1_179, %c0_180] {strides = array<i32: 2, 1>} : memref<32x32xf32, #tpu.memory_space<vmem>>, vector<16x32xf32>
    %178 = arith.maximumf %176, %177 : vector<16x32xf32>
    %c0_181 = arith.constant 0 : index
    %c0_182 = arith.constant 0 : index
    %179 = vector.load %arg16[%c0_181, %c0_182] : memref<16x32xf32, #tpu.memory_space<vmem>>, vector<16x32xf32>
    tpu.vector_store %arg16[%c0_181, %c0_182], %178 {strides = array<i32>} : memref<16x32xf32, #tpu.memory_space<vmem>>, vector<16x32xf32>,
    %cst_183 = arith.constant 0.000000e+00 : f32
    %180 = vector.broadcast %cst_183 : f32 to vector<1x128xf32>
    %c0_184 = arith.constant 0 : index
    %c0_185 = arith.constant 0 : index
    %181 = vector.load %arg16[%c0_184, %c0_185] : memref<16x32xf32, #tpu.memory_space<vmem>>, vector<1x32xf32>
    %c0_186 = arith.constant 0 : index
    %c0_187 = arith.constant 0 : index
    %c0_188 = arith.constant 0 : index
    %182 = vector.load %arg6[%c0_186, %c0_187, %c0_188] : memref<16x32x128xf32, #tpu.memory_space<vmem>>, vector<1x32x128xf32>
    %183 = vector.shape_cast %182 : vector<1x32x128xf32> to vector<32x128xf32>
    %cst_189 = arith.constant dense<0.000000e+00> : vector<1x128xf32>
    %184 = tpu.matmul %181, %183, %cst_189 {dimension_numbers = #tpu.dot_dimension_numbers<[1], [0], [0], [1], [0, 0, 1, 1], [], []>} : vector<1x32xf32>, vector<32x128xf32>, vector<1x128xf32> -> vector<1x128xf32>
    %185 = arith.addf %180, %184 : vector<1x128xf32>
    %c1_190 = arith.constant 1 : index
    %c0_191 = arith.constant 0 : index
    %186 = vector.load %arg16[%c1_190, %c0_191] : memref<16x32xf32, #tpu.memory_space<vmem>>, vector<1x32xf32>
    %c1_192 = arith.constant 1 : index
    %c0_193 = arith.constant 0 : index
    %c0_194 = arith.constant 0 : index
    %187 = vector.load %arg6[%c1_192, %c0_193, %c0_194] : memref<16x32x128xf32, #tpu.memory_space<vmem>>, vector<1x32x128xf32>
    %188 = vector.shape_cast %187 : vector<1x32x128xf32> to vector<32x128xf32>
    %cst_195 = arith.constant dense<0.000000e+00> : vector<1x128xf32>
    %189 = tpu.matmul %186, %188, %cst_195 {dimension_numbers = #tpu.dot_dimension_numbers<[1], [0], [0], [1], [0, 0, 1, 1], [], []>} : vector<1x32xf32>, vector<32x128xf32>, vector<1x128xf32> -> vector<1x128xf32>
    %190 = arith.addf %185, %189 : vector<1x128xf32>
    %c2_196 = arith.constant 2 : index
    %c0_197 = arith.constant 0 : index
    %191 = vector.load %arg16[%c2_196, %c0_197] : memref<16x32xf32, #tpu.memory_space<vmem>>, vector<1x32xf32>
    %c2_198 = arith.constant 2 : index
    %c0_199 = arith.constant 0 : index
    %c0_200 = arith.constant 0 : index
    %192 = vector.load %arg6[%c2_198, %c0_199, %c0_200] : memref<16x32x128xf32, #tpu.memory_space<vmem>>, vector<1x32x128xf32>
    %193 = vector.shape_cast %192 : vector<1x32x128xf32> to vector<32x128xf32>
    %cst_201 = arith.constant dense<0.000000e+00> : vector<1x128xf32>
    %194 = tpu.matmul %191, %193, %cst_201 {dimension_numbers = #tpu.dot_dimension_numbers<[1], [0], [0], [1], [0, 0, 1, 1], [], []>} : vector<1x32xf32>, vector<32x128xf32>, vector<1x128xf32> -> vector<1x128xf32>
    %195 = arith.addf %190, %194 : vector<1x128xf32>
    %c3_202 = arith.constant 3 : index
    %c0_203 = arith.constant 0 : index
    %196 = vector.load %arg16[%c3_202, %c0_203] : memref<16x32xf32, #tpu.memory_space<vmem>>, vector<1x32xf32>
    %c3_204 = arith.constant 3 : index
    %c0_205 = arith.constant 0 : index
    %c0_206 = arith.constant 0 : index
    %197 = vector.load %arg6[%c3_204, %c0_205, %c0_206] : memref<16x32x128xf32, #tpu.memory_space<vmem>>, vector<1x32x128xf32>
    %198 = vector.shape_cast %197 : vector<1x32x128xf32> to vector<32x128xf32>
    %cst_207 = arith.constant dense<0.000000e+00> : vector<1x128xf32>
    %199 = tpu.matmul %196, %198, %cst_207 {dimension_numbers = #tpu.dot_dimension_numbers<[1], [0], [0], [1], [0, 0, 1, 1], [], []>} : vector<1x32xf32>, vector<32x128xf32>, vector<1x128xf32> -> vector<1x128xf32>
    %200 = arith.addf %195, %199 : vector<1x128xf32>
    %c4_208 = arith.constant 4 : index
    %c0_209 = arith.constant 0 : index
    %201 = vector.load %arg16[%c4_208, %c0_209] : memref<16x32xf32, #tpu.memory_space<vmem>>, vector<1x32xf32>
    %c4_210 = arith.constant 4 : index
    %c0_211 = arith.constant 0 : index
    %c0_212 = arith.constant 0 : index
    %202 = vector.load %arg6[%c4_210, %c0_211, %c0_212] : memref<16x32x128xf32, #tpu.memory_space<vmem>>, vector<1x32x128xf32>
    %203 = vector.shape_cast %202 : vector<1x32x128xf32> to vector<32x128xf32>
    %cst_213 = arith.constant dense<0.000000e+00> : vector<1x128xf32>
    %204 = tpu.matmul %201, %203, %cst_213 {dimension_numbers = #tpu.dot_dimension_numbers<[1], [0], [0], [1], [0, 0, 1, 1], [], []>} : vector<1x32xf32>, vector<32x128xf32>, vector<1x128xf32> -> vector<1x128xf32>
    %205 = arith.addf %200, %204 : vector<1x128xf32>
    %c5_214 = arith.constant 5 : index
    %c0_215 = arith.constant 0 : index
    %206 = vector.load %arg16[%c5_214, %c0_215] : memref<16x32xf32, #tpu.memory_space<vmem>>, vector<1x32xf32>
    %c5_216 = arith.constant 5 : index
    %c0_217 = arith.constant 0 : index
    %c0_218 = arith.constant 0 : index
    %207 = vector.load %arg6[%c5_216, %c0_217, %c0_218] : memref<16x32x128xf32, #tpu.memory_space<vmem>>, vector<1x32x128xf32>
    %208 = vector.shape_cast %207 : vector<1x32x128xf32> to vector<32x128xf32>
    %cst_219 = arith.constant dense<0.000000e+00> : vector<1x128xf32>
    %209 = tpu.matmul %206, %208, %cst_219 {dimension_numbers = #tpu.dot_dimension_numbers<[1], [0], [0], [1], [0, 0, 1, 1], [], []>} : vector<1x32xf32>, vector<32x128xf32>, vector<1x128xf32> -> vector<1x128xf32>
    %210 = arith.addf %205, %209 : vector<1x128xf32>
    %c6_220 = arith.constant 6 : index
    %c0_221 = arith.constant 0 : index
    %211 = vector.load %arg16[%c6_220, %c0_221] : memref<16x32xf32, #tpu.memory_space<vmem>>, vector<1x32xf32>
    %c6_222 = arith.constant 6 : index
    %c0_223 = arith.constant 0 : index
    %c0_224 = arith.constant 0 : index
    %212 = vector.load %arg6[%c6_222, %c0_223, %c0_224] : memref<16x32x128xf32, #tpu.memory_space<vmem>>, vector<1x32x128xf32>
    %213 = vector.shape_cast %212 : vector<1x32x128xf32> to vector<32x128xf32>
    %cst_225 = arith.constant dense<0.000000e+00> : vector<1x128xf32>
    %214 = tpu.matmul %211, %213, %cst_225 {dimension_numbers = #tpu.dot_dimension_numbers<[1], [0], [0], [1], [0, 0, 1, 1], [], []>} : vector<1x32xf32>, vector<32x128xf32>, vector<1x128xf32> -> vector<1x128xf32>
    %215 = arith.addf %210, %214 : vector<1x128xf32>
    %c7_226 = arith.constant 7 : index
    %c0_227 = arith.constant 0 : index
    %216 = vector.load %arg16[%c7_226, %c0_227] : memref<16x32xf32, #tpu.memory_space<vmem>>, vector<1x32xf32>
    %c7_228 = arith.constant 7 : index
    %c0_229 = arith.constant 0 : index
    %c0_230 = arith.constant 0 : index
    %217 = vector.load %arg6[%c7_228, %c0_229, %c0_230] : memref<16x32x128xf32, #tpu.memory_space<vmem>>, vector<1x32x128xf32>
    %218 = vector.shape_cast %217 : vector<1x32x128xf32> to vector<32x128xf32>
    %cst_231 = arith.constant dense<0.000000e+00> : vector<1x128xf32>
    %219 = tpu.matmul %216, %218, %cst_231 {dimension_numbers = #tpu.dot_dimension_numbers<[1], [0], [0], [1], [0, 0, 1, 1], [], []>} : vector<1x32xf32>, vector<32x128xf32>, vector<1x128xf32> -> vector<1x128xf32>
    %220 = arith.addf %215, %219 : vector<1x128xf32>
    %c8_232 = arith.constant 8 : index
    %c0_233 = arith.constant 0 : index
    %221 = vector.load %arg16[%c8_232, %c0_233] : memref<16x32xf32, #tpu.memory_space<vmem>>, vector<1x32xf32>
    %c8_234 = arith.constant 8 : index
    %c0_235 = arith.constant 0 : index
    %c0_236 = arith.constant 0 : index
    %222 = vector.load %arg6[%c8_234, %c0_235, %c0_236] : memref<16x32x128xf32, #tpu.memory_space<vmem>>, vector<1x32x128xf32>
    %223 = vector.shape_cast %222 : vector<1x32x128xf32> to vector<32x128xf32>
    %cst_237 = arith.constant dense<0.000000e+00> : vector<1x128xf32>
    %224 = tpu.matmul %221, %223, %cst_237 {dimension_numbers = #tpu.dot_dimension_numbers<[1], [0], [0], [1], [0, 0, 1, 1], [], []>} : vector<1x32xf32>, vector<32x128xf32>, vector<1x128xf32> -> vector<1x128xf32>
    %225 = arith.addf %220, %224 : vector<1x128xf32>
    %c9_238 = arith.constant 9 : index
    %c0_239 = arith.constant 0 : index
    %226 = vector.load %arg16[%c9_238, %c0_239] : memref<16x32xf32, #tpu.memory_space<vmem>>, vector<1x32xf32>
    %c9_240 = arith.constant 9 : index
    %c0_241 = arith.constant 0 : index
    %c0_242 = arith.constant 0 : index
    %227 = vector.load %arg6[%c9_240, %c0_241, %c0_242] : memref<16x32x128xf32, #tpu.memory_space<vmem>>, vector<1x32x128xf32>
    %228 = vector.shape_cast %227 : vector<1x32x128xf32> to vector<32x128xf32>
    %cst_243 = arith.constant dense<0.000000e+00> : vector<1x128xf32>
    %229 = tpu.matmul %226, %228, %cst_243 {dimension_numbers = #tpu.dot_dimension_numbers<[1], [0], [0], [1], [0, 0, 1, 1], [], []>} : vector<1x32xf32>, vector<32x128xf32>, vector<1x128xf32> -> vector<1x128xf32>
    %230 = arith.addf %225, %229 : vector<1x128xf32>
    %c10 = arith.constant 10 : index
    %c0_244 = arith.constant 0 : index
    %231 = vector.load %arg16[%c10, %c0_244] : memref<16x32xf32, #tpu.memory_space<vmem>>, vector<1x32xf32>
    %c10_245 = arith.constant 10 : index
    %c0_246 = arith.constant 0 : index
    %c0_247 = arith.constant 0 : index
    %232 = vector.load %arg6[%c10_245, %c0_246, %c0_247] : memref<16x32x128xf32, #tpu.memory_space<vmem>>, vector<1x32x128xf32>
    %233 = vector.shape_cast %232 : vector<1x32x128xf32> to vector<32x128xf32>
    %cst_248 = arith.constant dense<0.000000e+00> : vector<1x128xf32>
    %234 = tpu.matmul %231, %233, %cst_248 {dimension_numbers = #tpu.dot_dimension_numbers<[1], [0], [0], [1], [0, 0, 1, 1], [], []>} : vector<1x32xf32>, vector<32x128xf32>, vector<1x128xf32> -> vector<1x128xf32>
    %235 = arith.addf %230, %234 : vector<1x128xf32>
    %c11 = arith.constant 11 : index
    %c0_249 = arith.constant 0 : index
    %236 = vector.load %arg16[%c11, %c0_249] : memref<16x32xf32, #tpu.memory_space<vmem>>, vector<1x32xf32>
    %c11_250 = arith.constant 11 : index
    %c0_251 = arith.constant 0 : index
    %c0_252 = arith.constant 0 : index
    %237 = vector.load %arg6[%c11_250, %c0_251, %c0_252] : memref<16x32x128xf32, #tpu.memory_space<vmem>>, vector<1x32x128xf32>
    %238 = vector.shape_cast %237 : vector<1x32x128xf32> to vector<32x128xf32>
    %cst_253 = arith.constant dense<0.000000e+00> : vector<1x128xf32>
    %239 = tpu.matmul %236, %238, %cst_253 {dimension_numbers = #tpu.dot_dimension_numbers<[1], [0], [0], [1], [0, 0, 1, 1], [], []>} : vector<1x32xf32>, vector<32x128xf32>, vector<1x128xf32> -> vector<1x128xf32>
    %240 = arith.addf %235, %239 : vector<1x128xf32>
    %c12 = arith.constant 12 : index
    %c0_254 = arith.constant 0 : index
    %241 = vector.load %arg16[%c12, %c0_254] : memref<16x32xf32, #tpu.memory_space<vmem>>, vector<1x32xf32>
    %c12_255 = arith.constant 12 : index
    %c0_256 = arith.constant 0 : index
    %c0_257 = arith.constant 0 : index
    %242 = vector.load %arg6[%c12_255, %c0_256, %c0_257] : memref<16x32x128xf32, #tpu.memory_space<vmem>>, vector<1x32x128xf32>
    %243 = vector.shape_cast %242 : vector<1x32x128xf32> to vector<32x128xf32>
    %cst_258 = arith.constant dense<0.000000e+00> : vector<1x128xf32>
    %244 = tpu.matmul %241, %243, %cst_258 {dimension_numbers = #tpu.dot_dimension_numbers<[1], [0], [0], [1], [0, 0, 1, 1], [], []>} : vector<1x32xf32>, vector<32x128xf32>, vector<1x128xf32> -> vector<1x128xf32>
    %245 = arith.addf %240, %244 : vector<1x128xf32>
    %c13 = arith.constant 13 : index
    %c0_259 = arith.constant 0 : index
    %246 = vector.load %arg16[%c13, %c0_259] : memref<16x32xf32, #tpu.memory_space<vmem>>, vector<1x32xf32>
    %c13_260 = arith.constant 13 : index
    %c0_261 = arith.constant 0 : index
    %c0_262 = arith.constant 0 : index
    %247 = vector.load %arg6[%c13_260, %c0_261, %c0_262] : memref<16x32x128xf32, #tpu.memory_space<vmem>>, vector<1x32x128xf32>
    %248 = vector.shape_cast %247 : vector<1x32x128xf32> to vector<32x128xf32>
    %cst_263 = arith.constant dense<0.000000e+00> : vector<1x128xf32>
    %249 = tpu.matmul %246, %248, %cst_263 {dimension_numbers = #tpu.dot_dimension_numbers<[1], [0], [0], [1], [0, 0, 1, 1], [], []>} : vector<1x32xf32>, vector<32x128xf32>, vector<1x128xf32> -> vector<1x128xf32>
    %250 = arith.addf %245, %249 : vector<1x128xf32>
    %c14 = arith.constant 14 : index
    %c0_264 = arith.constant 0 : index
    %251 = vector.load %arg16[%c14, %c0_264] : memref<16x32xf32, #tpu.memory_space<vmem>>, vector<1x32xf32>
    %c14_265 = arith.constant 14 : index
    %c0_266 = arith.constant 0 : index
    %c0_267 = arith.constant 0 : index
    %252 = vector.load %arg6[%c14_265, %c0_266, %c0_267] : memref<16x32x128xf32, #tpu.memory_space<vmem>>, vector<1x32x128xf32>
    %253 = vector.shape_cast %252 : vector<1x32x128xf32> to vector<32x128xf32>
    %cst_268 = arith.constant dense<0.000000e+00> : vector<1x128xf32>
    %254 = tpu.matmul %251, %253, %cst_268 {dimension_numbers = #tpu.dot_dimension_numbers<[1], [0], [0], [1], [0, 0, 1, 1], [], []>} : vector<1x32xf32>, vector<32x128xf32>, vector<1x128xf32> -> vector<1x128xf32>
    %255 = arith.addf %250, %254 : vector<1x128xf32>
    %c15 = arith.constant 15 : index
    %c0_269 = arith.constant 0 : index
    %256 = vector.load %arg16[%c15, %c0_269] : memref<16x32xf32, #tpu.memory_space<vmem>>, vector<1x32xf32>
    %c15_270 = arith.constant 15 : index
    %c0_271 = arith.constant 0 : index
    %c0_272 = arith.constant 0 : index
    %257 = vector.load %arg6[%c15_270, %c0_271, %c0_272] : memref<16x32x128xf32, #tpu.memory_space<vmem>>, vector<1x32x128xf32>
    %258 = vector.shape_cast %257 : vector<1x32x128xf32> to vector<32x128xf32>
    %cst_273 = arith.constant dense<0.000000e+00> : vector<1x128xf32>
    %259 = tpu.matmul %256, %258, %cst_273 {dimension_numbers = #tpu.dot_dimension_numbers<[1], [0], [0], [1], [0, 0, 1, 1], [], []>} : vector<1x32xf32>, vector<32x128xf32>, vector<1x128xf32> -> vector<1x128xf32>
    %260 = arith.addf %255, %259 : vector<1x128xf32>
    %c0_274 = arith.constant 0 : index
    %c0_275 = arith.constant 0 : index
    %261 = vector.load %arg7[%c0_274, %c0_275] : memref<1x128xf32, #tpu.memory_space<vmem>>, vector<1x128xf32>
    %262 = arith.addf %260, %261 : vector<1x128xf32>
    %cst_276 = arith.constant 0.000000e+00 : f32
    %263 = vector.broadcast %cst_276 : f32 to vector<1x128xf32>
    %264 = arith.maximumf %262, %263 : vector<1x128xf32>
    %c0_277 = arith.constant 0 : index
    %c0_278 = arith.constant 0 : index
    %265 = vector.load %arg8[%c0_277, %c0_278] : memref<128x64xf32, #tpu.memory_space<vmem>>, vector<128x64xf32>
    %cst_279 = arith.constant dense<0.000000e+00> : vector<1x64xf32>
    %266 = tpu.matmul %264, %265, %cst_279 {dimension_numbers = #tpu.dot_dimension_numbers<[1], [0], [0], [1], [0, 0, 1, 1], [], []>} : vector<1x128xf32>, vector<128x64xf32>, vector<1x64xf32> -> vector<1x64xf32>
    %c0_280 = arith.constant 0 : index
    %c0_281 = arith.constant 0 : index
    %267 = vector.load %arg9[%c0_280, %c0_281] : memref<1x64xf32, #tpu.memory_space<vmem>>, vector<1x64xf32>
    %268 = arith.addf %266, %267 : vector<1x64xf32>
    %269 = arith.mulf %268, %268 : vector<1x64xf32>
    %cst_282 = arith.constant dense<0.000000e+00> : vector<1xf32>
    %270 = vector.multi_reduction <add>, %269, %cst_282 [1] : vector<1x64xf32> to vector<1xf32>
    %271 = vector.shape_cast %270 : vector<1xf32> to vector<1x1xf32>
    %cst_283 = arith.constant 1.000000e-24 : f32
    %272 = vector.broadcast %cst_283 : f32 to vector<1x1xf32>
    %273 = arith.maximumf %271, %272 : vector<1x1xf32>
    %274 = math.rsqrt %273 : vector<1x1xf32>
    %275 = vector.broadcast %274 : vector<1x1xf32> to vector<1x64xf32>
    %276 = arith.mulf %268, %275 : vector<1x64xf32>
    %c0_284 = arith.constant 0 : index
    %c0_285 = arith.constant 0 : index
    %c0_286 = arith.constant 0 : index
    %277 = vector.load %arg10[%c0_284, %c0_285, %c0_286] : memref<1x1x64xf32, #tpu.memory_space<vmem>>, vector<1x1x64xf32>
    %278 = vector.shape_cast %277 : vector<1x1x64xf32> to vector<1x64xf32>
    %279 = vector.shape_cast %276 : vector<1x64xf32> to vector<1x1x64xf32>
    tpu.vector_store %arg10[%c0_284, %c0_285, %c0_286], %279 {strides = array<i32>} : memref<1x1x64xf32, #tpu.memory_space<vmem>>, vector<1x1x64xf32>,
    return
  }
  func.func @transform_0(%arg0: i32) -> (i32, i32, i32, i32) {
    %c0_i32 = arith.constant 0 : i32
    %c0_i32_0 = arith.constant 0 : i32
    %c0_i32_1 = arith.constant 0 : i32
    %c0_i32_2 = arith.constant 0 : i32
    return %arg0, %c0_i32, %c0_i32_0, %c0_i32_1 : i32, i32, i32, i32
  }
  func.func @transform_1(%arg0: i32) -> (i32, i32, i32, i32) {
    %c0_i32 = arith.constant 0 : i32
    %c0_i32_0 = arith.constant 0 : i32
    %c0_i32_1 = arith.constant 0 : i32
    %c0_i32_2 = arith.constant 0 : i32
    %c0_i32_3 = arith.constant 0 : i32
    return %c0_i32, %c0_i32_0, %c0_i32_1, %c0_i32_2 : i32, i32, i32, i32
  }
  func.func @transform_2(%arg0: i32) -> (i32, i32) {
    %c0_i32 = arith.constant 0 : i32
    %c0_i32_0 = arith.constant 0 : i32
    %c0_i32_1 = arith.constant 0 : i32
    return %c0_i32, %c0_i32_0 : i32, i32
  }
  func.func @transform_3(%arg0: i32) -> (i32, i32, i32) {
    %c0_i32 = arith.constant 0 : i32
    %c0_i32_0 = arith.constant 0 : i32
    %c0_i32_1 = arith.constant 0 : i32
    %c0_i32_2 = arith.constant 0 : i32
    return %c0_i32, %c0_i32_0, %c0_i32_1 : i32, i32, i32
  }
  func.func @transform_4(%arg0: i32) -> (i32, i32) {
    %c0_i32 = arith.constant 0 : i32
    %c0_i32_0 = arith.constant 0 : i32
    %c0_i32_1 = arith.constant 0 : i32
    return %c0_i32, %c0_i32_0 : i32, i32
  }
  func.func @transform_5(%arg0: i32) -> (i32, i32, i32) {
    %c0_i32 = arith.constant 0 : i32
    %c0_i32_0 = arith.constant 0 : i32
    %c0_i32_1 = arith.constant 0 : i32
    %c0_i32_2 = arith.constant 0 : i32
    return %c0_i32, %c0_i32_0, %c0_i32_1 : i32, i32, i32
  }
  func.func @transform_6(%arg0: i32) -> (i32, i32) {
    %c0_i32 = arith.constant 0 : i32
    %c0_i32_0 = arith.constant 0 : i32
    %c0_i32_1 = arith.constant 0 : i32
    return %c0_i32, %c0_i32_0 : i32, i32
  }
  func.func @transform_7(%arg0: i32) -> (i32, i32) {
    %c0_i32 = arith.constant 0 : i32
    %c0_i32_0 = arith.constant 0 : i32
    %c0_i32_1 = arith.constant 0 : i32
    return %c0_i32, %c0_i32_0 : i32, i32
  }
  func.func @transform_8(%arg0: i32) -> (i32, i32) {
    %c0_i32 = arith.constant 0 : i32
    %c0_i32_0 = arith.constant 0 : i32
    %c0_i32_1 = arith.constant 0 : i32
    return %c0_i32, %c0_i32_0 : i32, i32
  }
  func.func @transform_9(%arg0: i32) -> (i32, i32, i32) {
    %c0_i32 = arith.constant 0 : i32
    %c0_i32_0 = arith.constant 0 : i32
    %c0_i32_1 = arith.constant 0 : i32
    return %arg0, %c0_i32, %c0_i32_0 : i32, i32, i32
  }
}

</mosaic_0001>

<llo_original>
// kernel: custom_cnn_minidrop_forward.1
$region0: #{custom_cnn_minidrop_forward.1}
  #allocation0 [shape = 'u32[]', space=smem, size = 0x4, offset = 0x4, fixed_abs, tag = 'smem constant byte address 0x4 - core index']
  #allocation1 [shape = 'u32[144,128]{1,0:T(1,128)}', space=vmem, size = 0x12000, scoped, tag = 'internal scratch']
  #allocation2 [shape = 'f32[16,16,128]{2,1,0:T(8,128)}', space=vmem, size = 0x20000, scoped, tag = 'scratch operand']
  #allocation3 [shape = 'f32[8,16,128]{2,1,0:T(8,128)}', space=vmem, size = 0x10000, scoped, tag = 'scratch operand']
  #allocation4 [shape = 'f32[10,17,128]{2,1,0:T(8,128)}', space=vmem, size = 0x1e000, scoped, tag = 'scratch operand']
  #allocation5 [shape = 'f32[64,32]{1,0:T(8,128)}', space=vmem, size = 0x8000, scoped, tag = 'scratch operand']
  #allocation6 [shape = 'f32[32,32]{1,0:T(8,128)}', space=vmem, size = 0x4000, scoped, tag = 'scratch operand']
  #allocation7 [shape = 'f32[16,32]{1,0:T(8,128)}', space=vmem, size = 0x2000, scoped, tag = 'scratch operand']
  %s0 = inlined_call_operand.vmem [shape: f32[2,18,18,1], index: 0, kind: input, shape index: {}]
  %s1 = inlined_call_operand.vmem [shape: f32[3,3,1,128], index: 1, kind: input, shape index: {}]
  %s2 = inlined_call_operand.vmem [shape: f32[1,128], index: 2, kind: input, shape index: {}]
  %s3 = inlined_call_operand.vmem [shape: f32[9,128,32], index: 3, kind: input, shape index: {}]
  %s4 = inlined_call_operand.vmem [shape: f32[1,32], index: 4, kind: input, shape index: {}]
  %s5 = inlined_call_operand.vmem [shape: f32[16,32,128], index: 5, kind: input, shape index: {}]
  %s6 = inlined_call_operand.vmem [shape: f32[1,128], index: 6, kind: input, shape index: {}]
  %s7 = inlined_call_operand.vmem [shape: f32[128,64], index: 7, kind: input, shape index: {}]
  %s8 = inlined_call_operand.vmem [shape: f32[1,64], index: 8, kind: input, shape index: {}]
  %s9 = inlined_call_operand.hbm [shape: f32[2,1,64], index: 9, kind: output, shape index: {}]
  %s10 = sld [smem:[#allocation0]]
  $region69: #{custom_cnn_minidrop_forward.1} parent=0
    _
  %s12 = ssub.s32 1, %s10
  %s13 = scalar_select 0, %s12, %s10
  $region1: #{custom_cnn_minidrop_forward.1} parent=0
    #allocation8 [shape = 'u8[1024]{0}', space=vmem, size = 0x400, scoped, tag = 'output window, operand 0']
    #allocation9 [shape = 's32[2]{0}', space=sflag, size = 0x8, scoped, tag = 'scoped memory for custom_cnn_minidrop_forward.1']
    %14 = vsyncpa [#allocation9], 0
    %s15 = scalar_lea.sflag [#allocation9], 1
    %16 = vsyncpa %s15, 0
    loop: start=0, step=1, limit=4
    $region2: #{custom_cnn_minidrop_forward.1} parent=1 // loop_pre_header
      _
    $region3: #{custom_cnn_minidrop_forward.1} parent=1 // loop_header
      %s18 = sphi 0, %s22
      %p19 = scmp.ge.s32.totalorder %s18, 4
      %s28 = sphi 0, %s30
      %s31 = sphi 0, %s28
      %s32 = sphi 0, %s31
      %s48 = sphi 0, %s32
      %s52 = sphi 0, %s52
      %s54 = sphi 0, %s52
      %s55 = sphi 0, %s54
      %s69 = sphi 0, %s55
      %s73 = sphi 0, %s73
      %s75 = sphi 0, %s73
      %s76 = sphi 0, %s75
      %s90 = sphi 0, %s76
      %s94 = sphi 0, %s94
      %s96 = sphi 0, %s94
      %s97 = sphi 0, %s96
      %s111 = sphi 0, %s97
      %s115 = sphi 0, %s115
      %s117 = sphi 0, %s115
      %s118 = sphi 0, %s117
      %s132 = sphi 0, %s118
      %s136 = sphi 0, %s136
      %s138 = sphi 0, %s136
      %s139 = sphi 0, %s138
      %s153 = sphi 0, %s139
      %s157 = sphi 0, %s157
      %s159 = sphi 0, %s157
      %s160 = sphi 0, %s159
      %s174 = sphi 0, %s160
      %s178 = sphi 0, %s178
      %s180 = sphi 0, %s178
      %s181 = sphi 0, %s180
      %s195 = sphi 0, %s181
      %s199 = sphi 0, %s199
      %s201 = sphi 0, %s199
      %s202 = sphi 0, %s201
      %s216 = sphi 0, %s202
      %s222 = sphi 0, %s224
      %s225 = sphi 0, %s222
      %s226 = sphi 0, %s225
      %s242 = sphi 0, %s226
    $region4: #{custom_cnn_minidrop_forward.1} parent=1 // loop_header_branch
      %21 = sbr.rel (%p19) target = $region8
    $region5: #{custom_cnn_minidrop_forward.1} parent=1 // loop_body
      %s23 = ssub.s32 %s18, 1
      %s24 = ssub.s32 %s18, 2
      %s25 = sadd.s32 %s18, 1
      %s26 = ssub.s32 %s18, %s25
      %p27 = scmp.eq.s32.totalorder %s26, 0
      %s29 = sadd.s32 %s28, 1
      %s30 = scalar_select %p27, %s28, %s29
      %p33 = pneg %p27
      %p34 = scmp.eq.s32.totalorder %s18, 1
      %p35 = por %p33, %p34
      %p36 = scmp.ne.s32.totalorder %s28, %s31
      %p37 = scmp.eq.s32.totalorder %s18, 0
      %p38 = por %p36, %p37
      %p39 = scmp.ne.s32.totalorder %s28, %s31
      %p40 = scmp.eq.s32.totalorder %s23, 1
      %p41 = por %p39, %p40
      %p42 = scmp.ne.s32.totalorder %s31, %s32
      %p43 = scmp.eq.s32.totalorder %s23, 0
      %p44 = por %p42, %p43
      %p45 = scmp.ne.s32.totalorder %s31, %s32
      %p46 = scmp.eq.s32.totalorder %s24, 1
      %p47 = por %p45, %p46
      %p49 = scmp.ne.s32.totalorder %s32, %s48
      %p50 = scmp.eq.s32.totalorder %s24, 0
      %p51 = por %p49, %p50
      %s53 = sadd.s32 %s52, 1
      %p56 = scmp.eq.s32.totalorder %s18, 1
      %p57 = scmp.ne.s32.totalorder %s52, %s54
      %p58 = scmp.eq.s32.totalorder %s18, 0
      %p59 = por %p57, %p58
      %p60 = scmp.ne.s32.totalorder %s52, %s54
      %p61 = scmp.eq.s32.totalorder %s23, 1
      %p62 = por %p60, %p61
      %p63 = scmp.ne.s32.totalorder %s54, %s55
      %p64 = scmp.eq.s32.totalorder %s23, 0
      %p65 = por %p63, %p64
      %p66 = scmp.ne.s32.totalorder %s54, %s55
      %p67 = scmp.eq.s32.totalorder %s24, 1
      %p68 = por %p66, %p67
      %p70 = scmp.ne.s32.totalorder %s55, %s69
      %p71 = scmp.eq.s32.totalorder %s24, 0
      %p72 = por %p70, %p71
      %s74 = sadd.s32 %s73, 1
      %p77 = scmp.eq.s32.totalorder %s18, 1
      %p78 = scmp.ne.s32.totalorder %s73, %s75
      %p79 = scmp.eq.s32.totalorder %s18, 0
      %p80 = por %p78, %p79
      %p81 = scmp.ne.s32.totalorder %s73, %s75
      %p82 = scmp.eq.s32.totalorder %s23, 1
      %p83 = por %p81, %p82
      %p84 = scmp.ne.s32.totalorder %s75, %s76
      %p85 = scmp.eq.s32.totalorder %s23, 0
      %p86 = por %p84, %p85
      %p87 = scmp.ne.s32.totalorder %s75, %s76
      %p88 = scmp.eq.s32.totalorder %s24, 1
      %p89 = por %p87, %p88
      %p91 = scmp.ne.s32.totalorder %s76, %s90
      %p92 = scmp.eq.s32.totalorder %s24, 0
      %p93 = por %p91, %p92
      %s95 = sadd.s32 %s94, 1
      %p98 = scmp.eq.s32.totalorder %s18, 1
      %p99 = scmp.ne.s32.totalorder %s94, %s96
      %p100 = scmp.eq.s32.totalorder %s18, 0
      %p101 = por %p99, %p100
      %p102 = scmp.ne.s32.totalorder %s94, %s96
      %p103 = scmp.eq.s32.totalorder %s23, 1
      %p104 = por %p102, %p103
      %p105 = scmp.ne.s32.totalorder %s96, %s97
      %p106 = scmp.eq.s32.totalorder %s23, 0
      %p107 = por %p105, %p106
      %p108 = scmp.ne.s32.totalorder %s96, %s97
      %p109 = scmp.eq.s32.totalorder %s24, 1
      %p110 = por %p108, %p109
      %p112 = scmp.ne.s32.totalorder %s97, %s111
      %p113 = scmp.eq.s32.totalorder %s24, 0
      %p114 = por %p112, %p113
      %s116 = sadd.s32 %s115, 1
      %p119 = scmp.eq.s32.totalorder %s18, 1
      %p120 = scmp.ne.s32.totalorder %s115, %s117
      %p121 = scmp.eq.s32.totalorder %s18, 0
      %p122 = por %p120, %p121
      %p123 = scmp.ne.s32.totalorder %s115, %s117
      %p124 = scmp.eq.s32.totalorder %s23, 1
      %p125 = por %p123, %p124
      %p126 = scmp.ne.s32.totalorder %s117, %s118
      %p127 = scmp.eq.s32.totalorder %s23, 0
      %p128 = por %p126, %p127
      %p129 = scmp.ne.s32.totalorder %s117, %s118
      %p130 = scmp.eq.s32.totalorder %s24, 1
      %p131 = por %p129, %p130
      %p133 = scmp.ne.s32.totalorder %s118, %s132
      %p134 = scmp.eq.s32.totalorder %s24, 0
      %p135 = por %p133, %p134
      %s137 = sadd.s32 %s136, 1
      %p140 = scmp.eq.s32.totalorder %s18, 1
      %p141 = scmp.ne.s32.totalorder %s136, %s138
      %p142 = scmp.eq.s32.totalorder %s18, 0
      %p143 = por %p141, %p142
      %p144 = scmp.ne.s32.totalorder %s136, %s138
      %p145 = scmp.eq.s32.totalorder %s23, 1
      %p146 = por %p144, %p145
      %p147 = scmp.ne.s32.totalorder %s138, %s139
      %p148 = scmp.eq.s32.totalorder %s23, 0
      %p149 = por %p147, %p148
      %p150 = scmp.ne.s32.totalorder %s138, %s139
      %p151 = scmp.eq.s32.totalorder %s24, 1
      %p152 = por %p150, %p151
      %p154 = scmp.ne.s32.totalorder %s139, %s153
      %p155 = scmp.eq.s32.totalorder %s24, 0
      %p156 = por %p154, %p155
      %s158 = sadd.s32 %s157, 1
      %p161 = scmp.eq.s32.totalorder %s18, 1
      %p162 = scmp.ne.s32.totalorder %s157, %s159
      %p163 = scmp.eq.s32.totalorder %s18, 0
      %p164 = por %p162, %p163
      %p165 = scmp.ne.s32.totalorder %s157, %s159
      %p166 = scmp.eq.s32.totalorder %s23, 1
      %p167 = por %p165, %p166
      %p168 = scmp.ne.s32.totalorder %s159, %s160
      %p169 = scmp.eq.s32.totalorder %s23, 0
      %p170 = por %p168, %p169
      %p171 = scmp.ne.s32.totalorder %s159, %s160
      %p172 = scmp.eq.s32.totalorder %s24, 1
      %p173 = por %p171, %p172
      %p175 = scmp.ne.s32.totalorder %s160, %s174
      %p176 = scmp.eq.s32.totalorder %s24, 0
      %p177 = por %p175, %p176
      %s179 = sadd.s32 %s178, 1
      %p182 = scmp.eq.s32.totalorder %s18, 1
      %p183 = scmp.ne.s32.totalorder %s178, %s180
      %p184 = scmp.eq.s32.totalorder %s18, 0
      %p185 = por %p183, %p184
      %p186 = scmp.ne.s32.totalorder %s178, %s180
      %p187 = scmp.eq.s32.totalorder %s23, 1
      %p188 = por %p186, %p187
      %p189 = scmp.ne.s32.totalorder %s180, %s181
      %p190 = scmp.eq.s32.totalorder %s23, 0
      %p191 = por %p189, %p190
      %p192 = scmp.ne.s32.totalorder %s180, %s181
      %p193 = scmp.eq.s32.totalorder %s24, 1
      %p194 = por %p192, %p193
      %p196 = scmp.ne.s32.totalorder %s181, %s195
      %p197 = scmp.eq.s32.totalorder %s24, 0
      %p198 = por %p196, %p197
      %s200 = sadd.s32 %s199, 1
      %p203 = scmp.eq.s32.totalorder %s18, 1
      %p204 = scmp.ne.s32.totalorder %s199, %s201
      %p205 = scmp.eq.s32.totalorder %s18, 0
      %p206 = por %p204, %p205
      %p207 = scmp.ne.s32.totalorder %s199, %s201
      %p208 = scmp.eq.s32.totalorder %s23, 1
      %p209 = por %p207, %p208
      %p210 = scmp.ne.s32.totalorder %s201, %s202
      %p211 = scmp.eq.s32.totalorder %s23, 0
      %p212 = por %p210, %p211
      %p213 = scmp.ne.s32.totalorder %s201, %s202
      %p214 = scmp.eq.s32.totalorder %s24, 1
      %p215 = por %p213, %p214
      %p217 = scmp.ne.s32.totalorder %s202, %s216
      %p218 = scmp.eq.s32.totalorder %s24, 0
      %p219 = por %p217, %p218
      %s220 = ssub.s32 %s18, %s25
      %p221 = scmp.eq.s32.totalorder %s220, 0
      %s223 = sadd.s32 %s222, 1
      %s224 = scalar_select %p221, %s222, %s223
      %p227 = pneg %p221
      %p228 = scmp.eq.s32.totalorder %s18, 1
      %p229 = por %p227, %p228
      %p230 = scmp.ne.s32.totalorder %s222, %s225
      %p231 = scmp.eq.s32.totalorder %s18, 0
      %p232 = por %p230, %p231
      %p233 = scmp.ne.s32.totalorder %s222, %s225
      %p234 = scmp.eq.s32.totalorder %s23, 1
      %p235 = por %p233, %p234
      %p236 = scmp.ne.s32.totalorder %s225, %s226
      %p237 = scmp.eq.s32.totalorder %s23, 0
      %p238 = por %p236, %p237
      %p239 = scmp.ne.s32.totalorder %s225, %s226
      %p240 = scmp.eq.s32.totalorder %s24, 1
      %p241 = por %p239, %p240
      %p243 = scmp.ne.s32.totalorder %s226, %s242
      %p244 = scmp.eq.s32.totalorder %s24, 0
      %p245 = por %p243, %p244
      %p246 = scmp.le.s32.totalorder 1, %s18
      %p247 = scmp.lt.s32.totalorder %s18, 3
      %p248 = pnand %p246, %p247
      %p249 = pneg %p248
      // Predicated region
      $region9: #{custom_cnn_minidrop_forward.1} parent=5 // pred_check
        _
      $region10: #{custom_cnn_minidrop_forward.1} parent=5 // pred_check_branch
        %251 = sbr.rel (%p248) target = $region12
      $region11: #{custom_cnn_minidrop_forward.1} parent=5 // pred_region
        %s252 = ssub.s32 %s18, 1
        // Predicated region
        $region13: #{custom_cnn_minidrop_forward.1} parent=11 // pred_check
          %p253 = pneg %p65
        $region14: #{custom_cnn_minidrop_forward.1} parent=11 // pred_check_branch
          %255 = sbr.rel (%p253) target = $region16
        $region15: #{custom_cnn_minidrop_forward.1} parent=11 // pred_region
          _
        $region16: #{custom_cnn_minidrop_forward.1} parent=11 // pred_fallthru
          _
        // Predicated region
        $region17: #{custom_cnn_minidrop_forward.1} parent=11 // pred_check
          %p256 = pneg %p86
        $region18: #{custom_cnn_minidrop_forward.1} parent=11 // pred_check_branch
          %258 = sbr.rel (%p256) target = $region20
        $region19: #{custom_cnn_minidrop_forward.1} parent=11 // pred_region
          _
        $region20: #{custom_cnn_minidrop_forward.1} parent=11 // pred_fallthru
          _
        // Predicated region
        $region21: #{custom_cnn_minidrop_forward.1} parent=11 // pred_check
          %p259 = pneg %p107
        $region22: #{custom_cnn_minidrop_forward.1} parent=11 // pred_check_branch
          %261 = sbr.rel (%p259) target = $region24
        $region23: #{custom_cnn_minidrop_forward.1} parent=11 // pred_region
          _
        $region24: #{custom_cnn_minidrop_forward.1} parent=11 // pred_fallthru
          _
        // Predicated region
        $region25: #{custom_cnn_minidrop_forward.1} parent=11 // pred_check
          %p262 = pneg %p128
        $region26: #{custom_cnn_minidrop_forward.1} parent=11 // pred_check_branch
          %264 = sbr.rel (%p262) target = $region28
        $region27: #{custom_cnn_minidrop_forward.1} parent=11 // pred_region
          _
        $region28: #{custom_cnn_minidrop_forward.1} parent=11 // pred_fallthru
          _
        // Predicated region
        $region29: #{custom_cnn_minidrop_forward.1} parent=11 // pred_check
          %p265 = pneg %p149
        $region30: #{custom_cnn_minidrop_forward.1} parent=11 // pred_check_branch
          %267 = sbr.rel (%p265) target = $region32
        $region31: #{custom_cnn_minidrop_forward.1} parent=11 // pred_region
          _
        $region32: #{custom_cnn_minidrop_forward.1} parent=11 // pred_fallthru
          _
        // Predicated region
        $region33: #{custom_cnn_minidrop_forward.1} parent=11 // pred_check
          %p268 = pneg %p170
        $region34: #{custom_cnn_minidrop_forward.1} parent=11 // pred_check_branch
          %270 = sbr.rel (%p268) target = $region36
        $region35: #{custom_cnn_minidrop_forward.1} parent=11 // pred_region
          _
        $region36: #{custom_cnn_minidrop_forward.1} parent=11 // pred_fallthru
          _
        // Predicated region
        $region37: #{custom_cnn_minidrop_forward.1} parent=11 // pred_check
          %p271 = pneg %p191
        $region38: #{custom_cnn_minidrop_forward.1} parent=11 // pred_check_branch
          %273 = sbr.rel (%p271) target = $region40
        $region39: #{custom_cnn_minidrop_forward.1} parent=11 // pred_region
          _
        $region40: #{custom_cnn_minidrop_forward.1} parent=11 // pred_fallthru
          _
        // Predicated region
        $region41: #{custom_cnn_minidrop_forward.1} parent=11 // pred_check
          %p274 = pneg %p212
        $region42: #{custom_cnn_minidrop_forward.1} parent=11 // pred_check_branch
          %276 = sbr.rel (%p274) target = $region44
        $region43: #{custom_cnn_minidrop_forward.1} parent=11 // pred_region
          _
        $region44: #{custom_cnn_minidrop_forward.1} parent=11 // pred_fallthru
          _
      $region12: #{custom_cnn_minidrop_forward.1} parent=5 // pred_fallthru
        _
      %p277 = scmp.lt.s32.totalorder %s18, 2
      // Predicated region
      $region45: #{custom_cnn_minidrop_forward.1} parent=5 // pred_check
        %p278 = pneg %p277
      $region46: #{custom_cnn_minidrop_forward.1} parent=5 // pred_check_branch
        %280 = sbr.rel (%p278) target = $region48
      $region47: #{custom_cnn_minidrop_forward.1} parent=5 // pred_region
        // Predicated region
        $region49: #{custom_cnn_minidrop_forward.1} parent=47 // pred_check
          %p281 = pneg %p38
        $region50: #{custom_cnn_minidrop_forward.1} parent=47 // pred_check_branch
          %283 = sbr.rel (%p281) target = $region52
        $region51: #{custom_cnn_minidrop_forward.1} parent=47 // pred_region
          %p284 = scmp.lt.s32.totalorder %s18, 1
          %s285 = scalar_select %p284, %s18, 1
          %s286 = smul.addr %s285, 54
          %s287 = smul.addr %s286, 8
          %s288 = scalar_lea.vmem %s0, %s287
        $region52: #{custom_cnn_minidrop_forward.1} parent=47 // pred_fallthru
          _
      $region48: #{custom_cnn_minidrop_forward.1} parent=5 // pred_fallthru
        _
      %p289 = scmp.le.s32.totalorder 1, %s18
      %p290 = scmp.lt.s32.totalorder %s18, 3
      %p291 = pnand %p289, %p290
      %p292 = pneg %p291
      // Predicated region
      $region53: #{custom_cnn_minidrop_forward.1} parent=5 // pred_check
        _
      $region54: #{custom_cnn_minidrop_forward.1} parent=5 // pred_check_branch
        %294 = sbr.rel (%p291) target = $region56
      $region55: #{custom_cnn_minidrop_forward.1} parent=5 // pred_region
        %s295 = ssub.s32 %s18, 1
        %p296 = scmp.lt.s32.totalorder %s23, 1
        %s297 = scalar_select %p296, %s23, 1
        %s298 = smul.addr %s297, 54
        %s299 = smul.addr %s298, 8
        %s300 = scalar_lea.vmem %s0, %s299
        %p301 = pneg %p44
        %p302 = pneg %p41
        %p303 = pneg %p65
        %p304 = pneg %p62
        %p305 = pneg %p86
        %p306 = pneg %p83
        %p307 = pneg %p107
        %p308 = pneg %p104
        %p309 = pneg %p128
        %p310 = pneg %p125
        %p311 = pneg %p149
        %p312 = pneg %p146
        %p313 = pneg %p170
        %p314 = pneg %p167
        %p315 = pneg %p191
        %p316 = pneg %p188
        %p317 = pneg %p212
        %p318 = pneg %p209
        %p319 = pneg %p238
        %p320 = pneg %p235
        %s321 = sand.u32 %s225, 1
        %s322 = scalar_lea.sflag [#allocation9], %s321
        %s323 = sand.u32 %s225, 1
        %s324 = scalar_lea.vmem [#allocation8], %s323
        %p325 = scmp.lt.s32.totalorder %s23, 1
        %s326 = scalar_select %p325, %s23, 1
        %s327 = smul.addr %s326, 54
        %s328 = smul.addr %s327, 8
        %s329 = scalar_lea.vmem %s0, %s328
        %v330 = vld [vmem:[%s329] sm:$0xff]
        %v331 = vld [vmem:[%s329 + $0x8] sm:$0xff]
        %v332 = vld [vmem:[%s329 + $0x18] sm:$0xff]
        %v333 = vld [vmem:[%s329 + $0x20] sm:$0xff]
        %v334 = vld [vmem:[%s329 + $0x30] sm:$0xff]
        %v335 = vld [vmem:[%s329 + $0x38] sm:$0xff]
        %v336 = vld [vmem:[%s329 + $0x48] sm:$0xff]
        %v337 = vld [vmem:[%s329 + $0x50] sm:$0xff]
        %v338 = vld [vmem:[%s329 + $0x60] sm:$0xff]
        %v339 = vld [vmem:[%s329 + $0x68] sm:$0xff]
        %v340 = vld [vmem:[%s329 + $0x78] sm:$0xff]
        %v341 = vld [vmem:[%s329 + $0x80] sm:$0xff]
        %v342 = vld [vmem:[%s329 + $0x90] sm:$0xff]
        %v343 = vld [vmem:[%s329 + $0x98] sm:$0xff]
        %v344 = vld [vmem:[%s329 + $0xa8] sm:$0xff]
        %v345 = vld [vmem:[%s329 + $0xb0] sm:$0xff]
        %v346 = vld [vmem:[%s329 + $0xc0] sm:$0xff]
        %v347 = vld [vmem:[%s329 + $0xc8] sm:$0xff]
        %v348 = vld [vmem:[%s329 + $0xd8] sm:$0xff]
        %v349 = vld [vmem:[%s329 + $0xe0] sm:$0xff]
        %v350 = vld [vmem:[%s329 + $0xf0] sm:$0xff]
        %v351 = vld [vmem:[%s329 + $0xf8] sm:$0xff]
        %v352 = vld [vmem:[%s329 + $0x108] sm:$0xff]
        %v353 = vld [vmem:[%s329 + $0x110] sm:$0xff]
        %v354 = vld [vmem:[%s329 + $0x120] sm:$0xff]
        %v355 = vld [vmem:[%s329 + $0x128] sm:$0xff]
        %v356 = vld [vmem:[%s329 + $0x138] sm:$0xff]
        %v357 = vld [vmem:[%s329 + $0x140] sm:$0xff]
        %v358 = vld [vmem:[%s329 + $0x150] sm:$0xff]
        %v359 = vld [vmem:[%s329 + $0x158] sm:$0xff]
        %v360 = vld [vmem:[%s329 + $0x168] sm:$0xff]
        %v361 = vld [vmem:[%s329 + $0x170] sm:$0xff]
        %v362 = vld [vmem:[%s1] sm:$0x1]
        %364 = vset.pattern.permute.xlu0 0
        %365 = vperm.xlu0 %364, %v330
        %v366 = vpop.permute.xlu0 %365
        %369 = vset.pattern.permute.xlu0 0
        %370 = vperm.xlu0 %369, %v331
        %v371 = vpop.permute.xlu0 %370
        %374 = vset.pattern.permute.xlu0 0
        %375 = vperm.xlu0 %374, %v332
        %v376 = vpop.permute.xlu0 %375
        %379 = vset.pattern.permute.xlu0 0
        %380 = vperm.xlu0 %379, %v333
        %v381 = vpop.permute.xlu0 %380
        %384 = vset.pattern.permute.xlu0 0
        %385 = vperm.xlu0 %384, %v334
        %v386 = vpop.permute.xlu0 %385
        %389 = vset.pattern.permute.xlu0 0
        %390 = vperm.xlu0 %389, %v335
        %v391 = vpop.permute.xlu0 %390
        %394 = vset.pattern.permute.xlu0 0
        %395 = vperm.xlu0 %394, %v336
        %v396 = vpop.permute.xlu0 %395
        %399 = vset.pattern.permute.xlu0 0
        %400 = vperm.xlu0 %399, %v337
        %v401 = vpop.permute.xlu0 %400
        %404 = vset.pattern.permute.xlu0 0
        %405 = vperm.xlu0 %404, %v338
        %v406 = vpop.permute.xlu0 %405
        %409 = vset.pattern.permute.xlu0 0
        %410 = vperm.xlu0 %409, %v339
        %v411 = vpop.permute.xlu0 %410
        %414 = vset.pattern.permute.xlu0 0
        %415 = vperm.xlu0 %414, %v340
        %v416 = vpop.permute.xlu0 %415
        %419 = vset.pattern.permute.xlu0 0
        %420 = vperm.xlu0 %419, %v341
        %v421 = vpop.permute.xlu0 %420
        %424 = vset.pattern.permute.xlu0 0
        %425 = vperm.xlu0 %424, %v342
        %v426 = vpop.permute.xlu0 %425
        %429 = vset.pattern.permute.xlu0 0
        %430 = vperm.xlu0 %429, %v343
        %v431 = vpop.permute.xlu0 %430
        %434 = vset.pattern.permute.xlu0 0
        %435 = vperm.xlu0 %434, %v344
        %v436 = vpop.permute.xlu0 %435
        %439 = vset.pattern.permute.xlu0 0
        %440 = vperm.xlu0 %439, %v345
        %v441 = vpop.permute.xlu0 %440
        %444 = vset.pattern.permute.xlu0 0
        %445 = vperm.xlu0 %444, %v346
        %v446 = vpop.permute.xlu0 %445
        %449 = vset.pattern.permute.xlu0 0
        %450 = vperm.xlu0 %449, %v347
        %v451 = vpop.permute.xlu0 %450
        %454 = vset.pattern.permute.xlu0 0
        %455 = vperm.xlu0 %454, %v348
        %v456 = vpop.permute.xlu0 %455
        %459 = vset.pattern.permute.xlu0 0
        %460 = vperm.xlu0 %459, %v349
        %v461 = vpop.permute.xlu0 %460
        %464 = vset.pattern.permute.xlu0 0
        %465 = vperm.xlu0 %464, %v350
        %v466 = vpop.permute.xlu0 %465
        %469 = vset.pattern.permute.xlu0 0
        %470 = vperm.xlu0 %469, %v351
        %v471 = vpop.permute.xlu0 %470
        %474 = vset.pattern.permute.xlu0 0
        %475 = vperm.xlu0 %474, %v352
        %v476 = vpop.permute.xlu0 %475
        %479 = vset.pattern.permute.xlu0 0
        %480 = vperm.xlu0 %479, %v353
        %v481 = vpop.permute.xlu0 %480
        %484 = vset.pattern.permute.xlu0 0
        %485 = vperm.xlu0 %484, %v354
        %v486 = vpop.permute.xlu0 %485
        %489 = vset.pattern.permute.xlu0 0
        %490 = vperm.xlu0 %489, %v355
        %v491 = vpop.permute.xlu0 %490
        %494 = vset.pattern.permute.xlu0 0
        %495 = vperm.xlu0 %494, %v356
        %v496 = vpop.permute.xlu0 %495
        %499 = vset.pattern.permute.xlu0 0
        %500 = vperm.xlu0 %499, %v357
        %v501 = vpop.permute.xlu0 %500
        %504 = vset.pattern.permute.xlu0 0
        %505 = vperm.xlu0 %504, %v358
        %v506 = vpop.permute.xlu0 %505
        %509 = vset.pattern.permute.xlu0 0
        %510 = vperm.xlu0 %509, %v359
        %v511 = vpop.permute.xlu0 %510
        %514 = vset.pattern.permute.xlu0 0
        %515 = vperm.xlu0 %514, %v360
        %v516 = vpop.permute.xlu0 %515
        %519 = vset.pattern.permute.xlu0 0
        %520 = vperm.xlu0 %519, %v361
        %v521 = vpop.permute.xlu0 %520
        %v524 = vlaneseq
        %v525 = vshrl.u32 %v524, 7
        %v526 = vsub.s32 0, %v525
        %v527 = vrot.slane %v362, %v526
        %v529 = vmul.f32 %v366, %v527
        %v530 = vmul.f32 %v371, %v527
        %v531 = vmul.f32 %v376, %v527
        %v532 = vmul.f32 %v381, %v527
        %v533 = vmul.f32 %v386, %v527
        %v534 = vmul.f32 %v391, %v527
        %v535 = vmul.f32 %v396, %v527
        %v536 = vmul.f32 %v401, %v527
        %v537 = vmul.f32 %v406, %v527
        %v538 = vmul.f32 %v411, %v527
        %v539 = vmul.f32 %v416, %v527
        %v540 = vmul.f32 %v421, %v527
        %v541 = vmul.f32 %v426, %v527
        %v542 = vmul.f32 %v431, %v527
        %v543 = vmul.f32 %v436, %v527
        %v544 = vmul.f32 %v441, %v527
        %v545 = vmul.f32 %v446, %v527
        %v546 = vmul.f32 %v451, %v527
        %v547 = vmul.f32 %v456, %v527
        %v548 = vmul.f32 %v461, %v527
        %v549 = vmul.f32 %v466, %v527
        %v550 = vmul.f32 %v471, %v527
        %v551 = vmul.f32 %v476, %v527
        %v552 = vmul.f32 %v481, %v527
        %v553 = vmul.f32 %v486, %v527
        %v554 = vmul.f32 %v491, %v527
        %v555 = vmul.f32 %v496, %v527
        %v556 = vmul.f32 %v501, %v527
        %v557 = vmul.f32 %v506, %v527
        %v558 = vmul.f32 %v511, %v527
        %v559 = vmul.f32 %v516, %v527
        %v560 = vmul.f32 %v521, %v527
        %v561 = vadd.f32 %v529, 0.0
        %v562 = vadd.f32 %v530, 0.0
        %v563 = vadd.f32 %v531, 0.0
        %v564 = vadd.f32 %v532, 0.0
        %v565 = vadd.f32 %v533, 0.0
        %v566 = vadd.f32 %v534, 0.0
        %v567 = vadd.f32 %v535, 0.0
        %v568 = vadd.f32 %v536, 0.0
        %v569 = vadd.f32 %v537, 0.0
        %v570 = vadd.f32 %v538, 0.0
        %v571 = vadd.f32 %v539, 0.0
        %v572 = vadd.f32 %v540, 0.0
        %v573 = vadd.f32 %v541, 0.0
        %v574 = vadd.f32 %v542, 0.0
        %v575 = vadd.f32 %v543, 0.0
        %v576 = vadd.f32 %v544, 0.0
        %v577 = vadd.f32 %v545, 0.0
        %v578 = vadd.f32 %v546, 0.0
        %v579 = vadd.f32 %v547, 0.0
        %v580 = vadd.f32 %v548, 0.0
        %v581 = vadd.f32 %v549, 0.0
        %v582 = vadd.f32 %v550, 0.0
        %v583 = vadd.f32 %v551, 0.0
        %v584 = vadd.f32 %v552, 0.0
        %v585 = vadd.f32 %v553, 0.0
        %v586 = vadd.f32 %v554, 0.0
        %v587 = vadd.f32 %v555, 0.0
        %v588 = vadd.f32 %v556, 0.0
        %v589 = vadd.f32 %v557, 0.0
        %v590 = vadd.f32 %v558, 0.0
        %v591 = vadd.f32 %v559, 0.0
        %v592 = vadd.f32 %v560, 0.0
        %v593 = vld [vmem:[%s329 + $0x1] sm:$0xff]
        %v594 = vld [vmem:[%s329 + $0x9] sm:$0xff]
        %v595 = vld [vmem:[%s329 + $0x19] sm:$0xff]
        %v596 = vld [vmem:[%s329 + $0x21] sm:$0xff]
        %v597 = vld [vmem:[%s329 + $0x31] sm:$0xff]
        %v598 = vld [vmem:[%s329 + $0x39] sm:$0xff]
        %v599 = vld [vmem:[%s329 + $0x49] sm:$0xff]
        %v600 = vld [vmem:[%s329 + $0x51] sm:$0xff]
        %v601 = vld [vmem:[%s329 + $0x61] sm:$0xff]
        %v602 = vld [vmem:[%s329 + $0x69] sm:$0xff]
        %v603 = vld [vmem:[%s329 + $0x79] sm:$0xff]
        %v604 = vld [vmem:[%s329 + $0x81] sm:$0xff]
        %v605 = vld [vmem:[%s329 + $0x91] sm:$0xff]
        %v606 = vld [vmem:[%s329 + $0x99] sm:$0xff]
        %v607 = vld [vmem:[%s329 + $0xa9] sm:$0xff]
        %v608 = vld [vmem:[%s329 + $0xb1] sm:$0xff]
        %v609 = vld [vmem:[%s329 + $0xc1] sm:$0xff]
        %v610 = vld [vmem:[%s329 + $0xc9] sm:$0xff]
        %v611 = vld [vmem:[%s329 + $0xd9] sm:$0xff]
        %v612 = vld [vmem:[%s329 + $0xe1] sm:$0xff]
        %v613 = vld [vmem:[%s329 + $0xf1] sm:$0xff]
        %v614 = vld [vmem:[%s329 + $0xf9] sm:$0xff]
        %v615 = vld [vmem:[%s329 + $0x109] sm:$0xff]
        %v616 = vld [vmem:[%s329 + $0x111] sm:$0xff]
        %v617 = vld [vmem:[%s329 + $0x121] sm:$0xff]
        %v618 = vld [vmem:[%s329 + $0x129] sm:$0xff]
        %v619 = vld [vmem:[%s329 + $0x139] sm:$0xff]
        %v620 = vld [vmem:[%s329 + $0x141] sm:$0xff]
        %v621 = vld [vmem:[%s329 + $0x151] sm:$0xff]
        %v622 = vld [vmem:[%s329 + $0x159] sm:$0xff]
        %v623 = vld [vmem:[%s329 + $0x169] sm:$0xff]
        %v624 = vld [vmem:[%s329 + $0x171] sm:$0xff]
        %s625 = scalar_lea.vmem %s1, 1
        %v626 = vld [vmem:[%s625] sm:$0x1]
        %628 = vset.pattern.permute.xlu0 0
        %629 = vperm.xlu0 %628, %v593
        %v630 = vpop.permute.xlu0 %629
        %633 = vset.pattern.permute.xlu0 0
        %634 = vperm.xlu0 %633, %v594
        %v635 = vpop.permute.xlu0 %634
        %638 = vset.pattern.permute.xlu0 0
        %639 = vperm.xlu0 %638, %v595
        %v640 = vpop.permute.xlu0 %639
        %643 = vset.pattern.permute.xlu0 0
        %644 = vperm.xlu0 %643, %v596
        %v645 = vpop.permute.xlu0 %644
        %648 = vset.pattern.permute.xlu0 0
        %649 = vperm.xlu0 %648, %v597
        %v650 = vpop.permute.xlu0 %649
        %653 = vset.pattern.permute.xlu0 0
        %654 = vperm.xlu0 %653, %v598
        %v655 = vpop.permute.xlu0 %654
        %658 = vset.pattern.permute.xlu0 0
        %659 = vperm.xlu0 %658, %v599
        %v660 = vpop.permute.xlu0 %659
        %663 = vset.pattern.permute.xlu0 0
        %664 = vperm.xlu0 %663, %v600
        %v665 = vpop.permute.xlu0 %664
        %668 = vset.pattern.permute.xlu0 0
        %669 = vperm.xlu0 %668, %v601
        %v670 = vpop.permute.xlu0 %669
        %673 = vset.pattern.permute.xlu0 0
        %674 = vperm.xlu0 %673, %v602
        %v675 = vpop.permute.xlu0 %674
        %678 = vset.pattern.permute.xlu0 0
        %679 = vperm.xlu0 %678, %v603
        %v680 = vpop.permute.xlu0 %679
        %683 = vset.pattern.permute.xlu0 0
        %684 = vperm.xlu0 %683, %v604
        %v685 = vpop.permute.xlu0 %684
        %688 = vset.pattern.permute.xlu0 0
        %689 = vperm.xlu0 %688, %v605
        %v690 = vpop.permute.xlu0 %689
        %693 = vset.pattern.permute.xlu0 0
        %694 = vperm.xlu0 %693, %v606
        %v695 = vpop.permute.xlu0 %694
        %698 = vset.pattern.permute.xlu0 0
        %699 = vperm.xlu0 %698, %v607
        %v700 = vpop.permute.xlu0 %699
        %703 = vset.pattern.permute.xlu0 0
        %704 = vperm.xlu0 %703, %v608
        %v705 = vpop.permute.xlu0 %704
        %708 = vset.pattern.permute.xlu0 0
        %709 = vperm.xlu0 %708, %v609
        %v710 = vpop.permute.xlu0 %709
        %713 = vset.pattern.permute.xlu0 0
        %714 = vperm.xlu0 %713, %v610
        %v715 = vpop.permute.xlu0 %714
        %718 = vset.pattern.permute.xlu0 0
        %719 = vperm.xlu0 %718, %v611
        %v720 = vpop.permute.xlu0 %719
        %723 = vset.pattern.permute.xlu0 0
        %724 = vperm.xlu0 %723, %v612
        %v725 = vpop.permute.xlu0 %724
        %728 = vset.pattern.permute.xlu0 0
        %729 = vperm.xlu0 %728, %v613
        %v730 = vpop.permute.xlu0 %729
        %733 = vset.pattern.permute.xlu0 0
        %734 = vperm.xlu0 %733, %v614
        %v735 = vpop.permute.xlu0 %734
        %738 = vset.pattern.permute.xlu0 0
        %739 = vperm.xlu0 %738, %v615
        %v740 = vpop.permute.xlu0 %739
        %743 = vset.pattern.permute.xlu0 0
        %744 = vperm.xlu0 %743, %v616
        %v745 = vpop.permute.xlu0 %744
        %748 = vset.pattern.permute.xlu0 0
        %749 = vperm.xlu0 %748, %v617
        %v750 = vpop.permute.xlu0 %749
        %753 = vset.pattern.permute.xlu0 0
        %754 = vperm.xlu0 %753, %v618
        %v755 = vpop.permute.xlu0 %754
        %758 = vset.pattern.permute.xlu0 0
        %759 = vperm.xlu0 %758, %v619
        %v760 = vpop.permute.xlu0 %759
        %763 = vset.pattern.permute.xlu0 0
        %764 = vperm.xlu0 %763, %v620
        %v765 = vpop.permute.xlu0 %764
        %768 = vset.pattern.permute.xlu0 0
        %769 = vperm.xlu0 %768, %v621
        %v770 = vpop.permute.xlu0 %769
        %773 = vset.pattern.permute.xlu0 0
        %774 = vperm.xlu0 %773, %v622
        %v775 = vpop.permute.xlu0 %774
        %778 = vset.pattern.permute.xlu0 0
        %779 = vperm.xlu0 %778, %v623
        %v780 = vpop.permute.xlu0 %779
        %783 = vset.pattern.permute.xlu0 0
        %784 = vperm.xlu0 %783, %v624
        %v785 = vpop.permute.xlu0 %784
        %v788 = vlaneseq
        %v789 = vshrl.u32 %v788, 7
        %v790 = vsub.s32 0, %v789
        %v791 = vrot.slane %v626, %v790
        %v793 = vmul.f32 %v630, %v791
        %v794 = vmul.f32 %v635, %v791
        %v795 = vmul.f32 %v640, %v791
        %v796 = vmul.f32 %v645, %v791
        %v797 = vmul.f32 %v650, %v791
        %v798 = vmul.f32 %v655, %v791
        %v799 = vmul.f32 %v660, %v791
        %v800 = vmul.f32 %v665, %v791
        %v801 = vmul.f32 %v670, %v791
        %v802 = vmul.f32 %v675, %v791
        %v803 = vmul.f32 %v680, %v791
        %v804 = vmul.f32 %v685, %v791
        %v805 = vmul.f32 %v690, %v791
        %v806 = vmul.f32 %v695, %v791
        %v807 = vmul.f32 %v700, %v791
        %v808 = vmul.f32 %v705, %v791
        %v809 = vmul.f32 %v710, %v791
        %v810 = vmul.f32 %v715, %v791
        %v811 = vmul.f32 %v720, %v791
        %v812 = vmul.f32 %v725, %v791
        %v813 = vmul.f32 %v730, %v791
        %v814 = vmul.f32 %v735, %v791
        %v815 = vmul.f32 %v740, %v791
        %v816 = vmul.f32 %v745, %v791
        %v817 = vmul.f32 %v750, %v791
        %v818 = vmul.f32 %v755, %v791
        %v819 = vmul.f32 %v760, %v791
        %v820 = vmul.f32 %v765, %v791
        %v821 = vmul.f32 %v770, %v791
        %v822 = vmul.f32 %v775, %v791
        %v823 = vmul.f32 %v780, %v791
        %v824 = vmul.f32 %v785, %v791
        %v825 = vadd.f32 %v561, %v793
        %v826 = vadd.f32 %v562, %v794
        %v827 = vadd.f32 %v563, %v795
        %v828 = vadd.f32 %v564, %v796
        %v829 = vadd.f32 %v565, %v797
        %v830 = vadd.f32 %v566, %v798
        %v831 = vadd.f32 %v567, %v799
        %v832 = vadd.f32 %v568, %v800
        %v833 = vadd.f32 %v569, %v801
        %v834 = vadd.f32 %v570, %v802
        %v835 = vadd.f32 %v571, %v803
        %v836 = vadd.f32 %v572, %v804
        %v837 = vadd.f32 %v573, %v805
        %v838 = vadd.f32 %v574, %v806
        %v839 = vadd.f32 %v575, %v807
        %v840 = vadd.f32 %v576, %v808
        %v841 = vadd.f32 %v577, %v809
        %v842 = vadd.f32 %v578, %v810
        %v843 = vadd.f32 %v579, %v811
        %v844 = vadd.f32 %v580, %v812
        %v845 = vadd.f32 %v581, %v813
        %v846 = vadd.f32 %v582, %v814
        %v847 = vadd.f32 %v583, %v815
        %v848 = vadd.f32 %v584, %v816
        %v849 = vadd.f32 %v585, %v817
        %v850 = vadd.f32 %v586, %v818
        %v851 = vadd.f32 %v587, %v819
        %v852 = vadd.f32 %v588, %v820
        %v853 = vadd.f32 %v589, %v821
        %v854 = vadd.f32 %v590, %v822
        %v855 = vadd.f32 %v591, %v823
        %v856 = vadd.f32 %v592, %v824
        %v857 = vld [vmem:[%s329 + $0x2] sm:$0xff]
        %v858 = vld [vmem:[%s329 + $0xa] sm:$0xff]
        %v859 = vld [vmem:[%s329 + $0x1a] sm:$0xff]
        %v860 = vld [vmem:[%s329 + $0x22] sm:$0xff]
        %v861 = vld [vmem:[%s329 + $0x32] sm:$0xff]
        %v862 = vld [vmem:[%s329 + $0x3a] sm:$0xff]
        %v863 = vld [vmem:[%s329 + $0x4a] sm:$0xff]
        %v864 = vld [vmem:[%s329 + $0x52] sm:$0xff]
        %v865 = vld [vmem:[%s329 + $0x62] sm:$0xff]
        %v866 = vld [vmem:[%s329 + $0x6a] sm:$0xff]
        %v867 = vld [vmem:[%s329 + $0x7a] sm:$0xff]
        %v868 = vld [vmem:[%s329 + $0x82] sm:$0xff]
        %v869 = vld [vmem:[%s329 + $0x92] sm:$0xff]
        %v870 = vld [vmem:[%s329 + $0x9a] sm:$0xff]
        %v871 = vld [vmem:[%s329 + $0xaa] sm:$0xff]
        %v872 = vld [vmem:[%s329 + $0xb2] sm:$0xff]
        %v873 = vld [vmem:[%s329 + $0xc2] sm:$0xff]
        %v874 = vld [vmem:[%s329 + $0xca] sm:$0xff]
        %v875 = vld [vmem:[%s329 + $0xda] sm:$0xff]
        %v876 = vld [vmem:[%s329 + $0xe2] sm:$0xff]
        %v877 = vld [vmem:[%s329 + $0xf2] sm:$0xff]
        %v878 = vld [vmem:[%s329 + $0xfa] sm:$0xff]
        %v879 = vld [vmem:[%s329 + $0x10a] sm:$0xff]
        %v880 = vld [vmem:[%s329 + $0x112] sm:$0xff]
        %v881 = vld [vmem:[%s329 + $0x122] sm:$0xff]
        %v882 = vld [vmem:[%s329 + $0x12a] sm:$0xff]
        %v883 = vld [vmem:[%s329 + $0x13a] sm:$0xff]
        %v884 = vld [vmem:[%s329 + $0x142] sm:$0xff]
        %v885 = vld [vmem:[%s329 + $0x152] sm:$0xff]
        %v886 = vld [vmem:[%s329 + $0x15a] sm:$0xff]
        %v887 = vld [vmem:[%s329 + $0x16a] sm:$0xff]
        %v888 = vld [vmem:[%s329 + $0x172] sm:$0xff]
        %s889 = scalar_lea.vmem %s1, 2
        %v890 = vld [vmem:[%s889] sm:$0x1]
        %892 = vset.pattern.permute.xlu0 0
        %893 = vperm.xlu0 %892, %v857
        %v894 = vpop.permute.xlu0 %893
        %897 = vset.pattern.permute.xlu0 0
        %898 = vperm.xlu0 %897, %v858
        %v899 = vpop.permute.xlu0 %898
        %902 = vset.pattern.permute.xlu0 0
        %903 = vperm.xlu0 %902, %v859
        %v904 = vpop.permute.xlu0 %903
        %907 = vset.pattern.permute.xlu0 0
        %908 = vperm.xlu0 %907, %v860
        %v909 = vpop.permute.xlu0 %908
        %912 = vset.pattern.permute.xlu0 0
        %913 = vperm.xlu0 %912, %v861
        %v914 = vpop.permute.xlu0 %913
        %917 = vset.pattern.permute.xlu0 0
        %918 = vperm.xlu0 %917, %v862
        %v919 = vpop.permute.xlu0 %918
        %922 = vset.pattern.permute.xlu0 0
        %923 = vperm.xlu0 %922, %v863
        %v924 = vpop.permute.xlu0 %923
        %927 = vset.pattern.permute.xlu0 0
        %928 = vperm.xlu0 %927, %v864
        %v929 = vpop.permute.xlu0 %928
        %932 = vset.pattern.permute.xlu0 0
        %933 = vperm.xlu0 %932, %v865
        %v934 = vpop.permute.xlu0 %933
        %937 = vset.pattern.permute.xlu0 0
        %938 = vperm.xlu0 %937, %v866
        %v939 = vpop.permute.xlu0 %938
        %942 = vset.pattern.permute.xlu0 0
        %943 = vperm.xlu0 %942, %v867
        %v944 = vpop.permute.xlu0 %943
        %947 = vset.pattern.permute.xlu0 0
        %948 = vperm.xlu0 %947, %v868
        %v949 = vpop.permute.xlu0 %948
        %952 = vset.pattern.permute.xlu0 0
        %953 = vperm.xlu0 %952, %v869
        %v954 = vpop.permute.xlu0 %953
        %957 = vset.pattern.permute.xlu0 0
        %958 = vperm.xlu0 %957, %v870
        %v959 = vpop.permute.xlu0 %958
        %962 = vset.pattern.permute.xlu0 0
        %963 = vperm.xlu0 %962, %v871
        %v964 = vpop.permute.xlu0 %963
        %967 = vset.pattern.permute.xlu0 0
        %968 = vperm.xlu0 %967, %v872
        %v969 = vpop.permute.xlu0 %968
        %972 = vset.pattern.permute.xlu0 0
        %973 = vperm.xlu0 %972, %v873
        %v974 = vpop.permute.xlu0 %973
        %977 = vset.pattern.permute.xlu0 0
        %978 = vperm.xlu0 %977, %v874
        %v979 = vpop.permute.xlu0 %978
        %982 = vset.pattern.permute.xlu0 0
        %983 = vperm.xlu0 %982, %v875
        %v984 = vpop.permute.xlu0 %983
        %987 = vset.pattern.permute.xlu0 0
        %988 = vperm.xlu0 %987, %v876
        %v989 = vpop.permute.xlu0 %988
        %992 = vset.pattern.permute.xlu0 0
        %993 = vperm.xlu0 %992, %v877
        %v994 = vpop.permute.xlu0 %993
        %997 = vset.pattern.permute.xlu0 0
        %998 = vperm.xlu0 %997, %v878
        %v999 = vpop.permute.xlu0 %998
        %1002 = vset.pattern.permute.xlu0 0
        %1003 = vperm.xlu0 %1002, %v879
        %v1004 = vpop.permute.xlu0 %1003
        %1007 = vset.pattern.permute.xlu0 0
        %1008 = vperm.xlu0 %1007, %v880
        %v1009 = vpop.permute.xlu0 %1008
        %1012 = vset.pattern.permute.xlu0 0
        %1013 = vperm.xlu0 %1012, %v881
        %v1014 = vpop.permute.xlu0 %1013
        %1017 = vset.pattern.permute.xlu0 0
        %1018 = vperm.xlu0 %1017, %v882
        %v1019 = vpop.permute.xlu0 %1018
        %1022 = vset.pattern.permute.xlu0 0
        %1023 = vperm.xlu0 %1022, %v883
        %v1024 = vpop.permute.xlu0 %1023
        %1027 = vset.pattern.permute.xlu0 0
        %1028 = vperm.xlu0 %1027, %v884
        %v1029 = vpop.permute.xlu0 %1028
        %1032 = vset.pattern.permute.xlu0 0
        %1033 = vperm.xlu0 %1032, %v885
        %v1034 = vpop.permute.xlu0 %1033
        %1037 = vset.pattern.permute.xlu0 0
        %1038 = vperm.xlu0 %1037, %v886
        %v1039 = vpop.permute.xlu0 %1038
        %1042 = vset.pattern.permute.xlu0 0
        %1043 = vperm.xlu0 %1042, %v887
        %v1044 = vpop.permute.xlu0 %1043
        %1047 = vset.pattern.permute.xlu0 0
        %1048 = vperm.xlu0 %1047, %v888
        %v1049 = vpop.permute.xlu0 %1048
        %v1052 = vlaneseq
        %v1053 = vshrl.u32 %v1052, 7
        %v1054 = vsub.s32 0, %v1053
        %v1055 = vrot.slane %v890, %v1054
        %v1057 = vmul.f32 %v894, %v1055
        %v1058 = vmul.f32 %v899, %v1055
        %v1059 = vmul.f32 %v904, %v1055
        %v1060 = vmul.f32 %v909, %v1055
        %v1061 = vmul.f32 %v914, %v1055
        %v1062 = vmul.f32 %v919, %v1055
        %v1063 = vmul.f32 %v924, %v1055
        %v1064 = vmul.f32 %v929, %v1055
        %v1065 = vmul.f32 %v934, %v1055
        %v1066 = vmul.f32 %v939, %v1055
        %v1067 = vmul.f32 %v944, %v1055
        %v1068 = vmul.f32 %v949, %v1055
        %v1069 = vmul.f32 %v954, %v1055
        %v1070 = vmul.f32 %v959, %v1055
        %v1071 = vmul.f32 %v964, %v1055
        %v1072 = vmul.f32 %v969, %v1055
        %v1073 = vmul.f32 %v974, %v1055
        %v1074 = vmul.f32 %v979, %v1055
        %v1075 = vmul.f32 %v984, %v1055
        %v1076 = vmul.f32 %v989, %v1055
        %v1077 = vmul.f32 %v994, %v1055
        %v1078 = vmul.f32 %v999, %v1055
        %v1079 = vmul.f32 %v1004, %v1055
        %v1080 = vmul.f32 %v1009, %v1055
        %v1081 = vmul.f32 %v1014, %v1055
        %v1082 = vmul.f32 %v1019, %v1055
        %v1083 = vmul.f32 %v1024, %v1055
        %v1084 = vmul.f32 %v1029, %v1055
        %v1085 = vmul.f32 %v1034, %v1055
        %v1086 = vmul.f32 %v1039, %v1055
        %v1087 = vmul.f32 %v1044, %v1055
        %v1088 = vmul.f32 %v1049, %v1055
        %v1089 = vadd.f32 %v825, %v1057
        %v1090 = vadd.f32 %v826, %v1058
        %v1091 = vadd.f32 %v827, %v1059
        %v1092 = vadd.f32 %v828, %v1060
        %v1093 = vadd.f32 %v829, %v1061
        %v1094 = vadd.f32 %v830, %v1062
        %v1095 = vadd.f32 %v831, %v1063
        %v1096 = vadd.f32 %v832, %v1064
        %v1097 = vadd.f32 %v833, %v1065
        %v1098 = vadd.f32 %v834, %v1066
        %v1099 = vadd.f32 %v835, %v1067
        %v1100 = vadd.f32 %v836, %v1068
        %v1101 = vadd.f32 %v837, %v1069
        %v1102 = vadd.f32 %v838, %v1070
        %v1103 = vadd.f32 %v839, %v1071
        %v1104 = vadd.f32 %v840, %v1072
        %v1105 = vadd.f32 %v841, %v1073
        %v1106 = vadd.f32 %v842, %v1074
        %v1107 = vadd.f32 %v843, %v1075
        %v1108 = vadd.f32 %v844, %v1076
        %v1109 = vadd.f32 %v845, %v1077
        %v1110 = vadd.f32 %v846, %v1078
        %v1111 = vadd.f32 %v847, %v1079
        %v1112 = vadd.f32 %v848, %v1080
        %v1113 = vadd.f32 %v849, %v1081
        %v1114 = vadd.f32 %v850, %v1082
        %v1115 = vadd.f32 %v851, %v1083
        %v1116 = vadd.f32 %v852, %v1084
        %v1117 = vadd.f32 %v853, %v1085
        %v1118 = vadd.f32 %v854, %v1086
        %v1119 = vadd.f32 %v855, %v1087
        %v1120 = vadd.f32 %v856, %v1088
        %s1121 = scalar_lea.vmem %s329, 24
        %v1122 = vld [vmem:[%s1121] sm:$0xff]
        %v1123 = vld [vmem:[%s1121 + $0x8] sm:$0xff]
        %v1124 = vld [vmem:[%s1121 + $0x18] sm:$0xff]
        %v1125 = vld [vmem:[%s1121 + $0x20] sm:$0xff]
        %v1126 = vld [vmem:[%s1121 + $0x30] sm:$0xff]
        %v1127 = vld [vmem:[%s1121 + $0x38] sm:$0xff]
        %v1128 = vld [vmem:[%s1121 + $0x48] sm:$0xff]
        %v1129 = vld [vmem:[%s1121 + $0x50] sm:$0xff]
        %v1130 = vld [vmem:[%s1121 + $0x60] sm:$0xff]
        %v1131 = vld [vmem:[%s1121 + $0x68] sm:$0xff]
        %v1132 = vld [vmem:[%s1121 + $0x78] sm:$0xff]
        %v1133 = vld [vmem:[%s1121 + $0x80] sm:$0xff]
        %v1134 = vld [vmem:[%s1121 + $0x90] sm:$0xff]
        %v1135 = vld [vmem:[%s1121 + $0x98] sm:$0xff]
        %v1136 = vld [vmem:[%s1121 + $0xa8] sm:$0xff]
        %v1137 = vld [vmem:[%s1121 + $0xb0] sm:$0xff]
        %v1138 = vld [vmem:[%s1121 + $0xc0] sm:$0xff]
        %v1139 = vld [vmem:[%s1121 + $0xc8] sm:$0xff]
        %v1140 = vld [vmem:[%s1121 + $0xd8] sm:$0xff]
        %v1141 = vld [vmem:[%s1121 + $0xe0] sm:$0xff]
        %v1142 = vld [vmem:[%s1121 + $0xf0] sm:$0xff]
        %v1143 = vld [vmem:[%s1121 + $0xf8] sm:$0xff]
        %v1144 = vld [vmem:[%s1121 + $0x108] sm:$0xff]
        %v1145 = vld [vmem:[%s1121 + $0x110] sm:$0xff]
        %v1146 = vld [vmem:[%s1121 + $0x120] sm:$0xff]
        %v1147 = vld [vmem:[%s1121 + $0x128] sm:$0xff]
        %v1148 = vld [vmem:[%s1121 + $0x138] sm:$0xff]
        %v1149 = vld [vmem:[%s1121 + $0x140] sm:$0xff]
        %v1150 = vld [vmem:[%s1121 + $0x150] sm:$0xff]
        %v1151 = vld [vmem:[%s1121 + $0x158] sm:$0xff]
        %v1152 = vld [vmem:[%s1121 + $0x168] sm:$0xff]
        %v1153 = vld [vmem:[%s1121 + $0x170] sm:$0xff]
        %s1154 = scalar_lea.vmem %s1, 3
        %v1155 = vld [vmem:[%s1154] sm:$0x1]
        %1157 = vset.pattern.permute.xlu0 0
        %1158 = vperm.xlu0 %1157, %v1122
        %v1159 = vpop.permute.xlu0 %1158
        %1162 = vset.pattern.permute.xlu0 0
        %1163 = vperm.xlu0 %1162, %v1123
        %v1164 = vpop.permute.xlu0 %1163
        %1167 = vset.pattern.permute.xlu0 0
        %1168 = vperm.xlu0 %1167, %v1124
        %v1169 = vpop.permute.xlu0 %1168
        %1172 = vset.pattern.permute.xlu0 0
        %1173 = vperm.xlu0 %1172, %v1125
        %v1174 = vpop.permute.xlu0 %1173
        %1177 = vset.pattern.permute.xlu0 0
        %1178 = vperm.xlu0 %1177, %v1126
        %v1179 = vpop.permute.xlu0 %1178
        %1182 = vset.pattern.permute.xlu0 0
        %1183 = vperm.xlu0 %1182, %v1127
        %v1184 = vpop.permute.xlu0 %1183
        %1187 = vset.pattern.permute.xlu0 0
        %1188 = vperm.xlu0 %1187, %v1128
        %v1189 = vpop.permute.xlu0 %1188
        %1192 = vset.pattern.permute.xlu0 0
        %1193 = vperm.xlu0 %1192, %v1129
        %v1194 = vpop.permute.xlu0 %1193
        %1197 = vset.pattern.permute.xlu0 0
        %1198 = vperm.xlu0 %1197, %v1130
        %v1199 = vpop.permute.xlu0 %1198
        %1202 = vset.pattern.permute.xlu0 0
        %1203 = vperm.xlu0 %1202, %v1131
        %v1204 = vpop.permute.xlu0 %1203
        %1207 = vset.pattern.permute.xlu0 0
        %1208 = vperm.xlu0 %1207, %v1132
        %v1209 = vpop.permute.xlu0 %1208
        %1212 = vset.pattern.permute.xlu0 0
        %1213 = vperm.xlu0 %1212, %v1133
        %v1214 = vpop.permute.xlu0 %1213
        %1217 = vset.pattern.permute.xlu0 0
        %1218 = vperm.xlu0 %1217, %v1134
        %v1219 = vpop.permute.xlu0 %1218
        %1222 = vset.pattern.permute.xlu0 0
        %1223 = vperm.xlu0 %1222, %v1135
        %v1224 = vpop.permute.xlu0 %1223
        %1227 = vset.pattern.permute.xlu0 0
        %1228 = vperm.xlu0 %1227, %v1136
        %v1229 = vpop.permute.xlu0 %1228
        %1232 = vset.pattern.permute.xlu0 0
        %1233 = vperm.xlu0 %1232, %v1137
        %v1234 = vpop.permute.xlu0 %1233
        %1237 = vset.pattern.permute.xlu0 0
        %1238 = vperm.xlu0 %1237, %v1138
        %v1239 = vpop.permute.xlu0 %1238
        %1242 = vset.pattern.permute.xlu0 0
        %1243 = vperm.xlu0 %1242, %v1139
        %v1244 = vpop.permute.xlu0 %1243
        %1247 = vset.pattern.permute.xlu0 0
        %1248 = vperm.xlu0 %1247, %v1140
        %v1249 = vpop.permute.xlu0 %1248
        %1252 = vset.pattern.permute.xlu0 0
        %1253 = vperm.xlu0 %1252, %v1141
        %v1254 = vpop.permute.xlu0 %1253
        %1257 = vset.pattern.permute.xlu0 0
        %1258 = vperm.xlu0 %1257, %v1142
        %v1259 = vpop.permute.xlu0 %1258
        %1262 = vset.pattern.permute.xlu0 0
        %1263 = vperm.xlu0 %1262, %v1143
        %v1264 = vpop.permute.xlu0 %1263
        %1267 = vset.pattern.permute.xlu0 0
        %1268 = vperm.xlu0 %1267, %v1144
        %v1269 = vpop.permute.xlu0 %1268
        %1272 = vset.pattern.permute.xlu0 0
        %1273 = vperm.xlu0 %1272, %v1145
        %v1274 = vpop.permute.xlu0 %1273
        %1277 = vset.pattern.permute.xlu0 0
        %1278 = vperm.xlu0 %1277, %v1146
        %v1279 = vpop.permute.xlu0 %1278
        %1282 = vset.pattern.permute.xlu0 0
        %1283 = vperm.xlu0 %1282, %v1147
        %v1284 = vpop.permute.xlu0 %1283
        %1287 = vset.pattern.permute.xlu0 0
        %1288 = vperm.xlu0 %1287, %v1148
        %v1289 = vpop.permute.xlu0 %1288
        %1292 = vset.pattern.permute.xlu0 0
        %1293 = vperm.xlu0 %1292, %v1149
        %v1294 = vpop.permute.xlu0 %1293
        %1297 = vset.pattern.permute.xlu0 0
        %1298 = vperm.xlu0 %1297, %v1150
        %v1299 = vpop.permute.xlu0 %1298
        %1302 = vset.pattern.permute.xlu0 0
        %1303 = vperm.xlu0 %1302, %v1151
        %v1304 = vpop.permute.xlu0 %1303
        %1307 = vset.pattern.permute.xlu0 0
        %1308 = vperm.xlu0 %1307, %v1152
        %v1309 = vpop.permute.xlu0 %1308
        %1312 = vset.pattern.permute.xlu0 0
        %1313 = vperm.xlu0 %1312, %v1153
        %v1314 = vpop.permute.xlu0 %1313
        %v1317 = vlaneseq
        %v1318 = vshrl.u32 %v1317, 7
        %v1319 = vsub.s32 0, %v1318
        %v1320 = vrot.slane %v1155, %v1319
        %v1322 = vmul.f32 %v1159, %v1320
        %v1323 = vmul.f32 %v1164, %v1320
        %v1324 = vmul.f32 %v1169, %v1320
        %v1325 = vmul.f32 %v1174, %v1320
        %v1326 = vmul.f32 %v1179, %v1320
        %v1327 = vmul.f32 %v1184, %v1320
        %v1328 = vmul.f32 %v1189, %v1320
        %v1329 = vmul.f32 %v1194, %v1320
        %v1330 = vmul.f32 %v1199, %v1320
        %v1331 = vmul.f32 %v1204, %v1320
        %v1332 = vmul.f32 %v1209, %v1320
        %v1333 = vmul.f32 %v1214, %v1320
        %v1334 = vmul.f32 %v1219, %v1320
        %v1335 = vmul.f32 %v1224, %v1320
        %v1336 = vmul.f32 %v1229, %v1320
        %v1337 = vmul.f32 %v1234, %v1320
        %v1338 = vmul.f32 %v1239, %v1320
        %v1339 = vmul.f32 %v1244, %v1320
        %v1340 = vmul.f32 %v1249, %v1320
        %v1341 = vmul.f32 %v1254, %v1320
        %v1342 = vmul.f32 %v1259, %v1320
        %v1343 = vmul.f32 %v1264, %v1320
        %v1344 = vmul.f32 %v1269, %v1320
        %v1345 = vmul.f32 %v1274, %v1320
        %v1346 = vmul.f32 %v1279, %v1320
        %v1347 = vmul.f32 %v1284, %v1320
        %v1348 = vmul.f32 %v1289, %v1320
        %v1349 = vmul.f32 %v1294, %v1320
        %v1350 = vmul.f32 %v1299, %v1320
        %v1351 = vmul.f32 %v1304, %v1320
        %v1352 = vmul.f32 %v1309, %v1320
        %v1353 = vmul.f32 %v1314, %v1320
        %v1354 = vadd.f32 %v1089, %v1322
        %v1355 = vadd.f32 %v1090, %v1323
        %v1356 = vadd.f32 %v1091, %v1324
        %v1357 = vadd.f32 %v1092, %v1325
        %v1358 = vadd.f32 %v1093, %v1326
        %v1359 = vadd.f32 %v1094, %v1327
        %v1360 = vadd.f32 %v1095, %v1328
        %v1361 = vadd.f32 %v1096, %v1329
        %v1362 = vadd.f32 %v1097, %v1330
        %v1363 = vadd.f32 %v1098, %v1331
        %v1364 = vadd.f32 %v1099, %v1332
        %v1365 = vadd.f32 %v1100, %v1333
        %v1366 = vadd.f32 %v1101, %v1334
        %v1367 = vadd.f32 %v1102, %v1335
        %v1368 = vadd.f32 %v1103, %v1336
        %v1369 = vadd.f32 %v1104, %v1337
        %v1370 = vadd.f32 %v1105, %v1338
        %v1371 = vadd.f32 %v1106, %v1339
        %v1372 = vadd.f32 %v1107, %v1340
        %v1373 = vadd.f32 %v1108, %v1341
        %v1374 = vadd.f32 %v1109, %v1342
        %v1375 = vadd.f32 %v1110, %v1343
        %v1376 = vadd.f32 %v1111, %v1344
        %v1377 = vadd.f32 %v1112, %v1345
        %v1378 = vadd.f32 %v1113, %v1346
        %v1379 = vadd.f32 %v1114, %v1347
        %v1380 = vadd.f32 %v1115, %v1348
        %v1381 = vadd.f32 %v1116, %v1349
        %v1382 = vadd.f32 %v1117, %v1350
        %v1383 = vadd.f32 %v1118, %v1351
        %v1384 = vadd.f32 %v1119, %v1352
        %v1385 = vadd.f32 %v1120, %v1353
        %v1386 = vld [vmem:[%s1121 + $0x1] sm:$0xff]
        %v1387 = vld [vmem:[%s1121 + $0x9] sm:$0xff]
        %v1388 = vld [vmem:[%s1121 + $0x19] sm:$0xff]
        %v1389 = vld [vmem:[%s1121 + $0x21] sm:$0xff]
        %v1390 = vld [vmem:[%s1121 + $0x31] sm:$0xff]
        %v1391 = vld [vmem:[%s1121 + $0x39] sm:$0xff]
        %v1392 = vld [vmem:[%s1121 + $0x49] sm:$0xff]
        %v1393 = vld [vmem:[%s1121 + $0x51] sm:$0xff]
        %v1394 = vld [vmem:[%s1121 + $0x61] sm:$0xff]
        %v1395 = vld [vmem:[%s1121 + $0x69] sm:$0xff]
        %v1396 = vld [vmem:[%s1121 + $0x79] sm:$0xff]
        %v1397 = vld [vmem:[%s1121 + $0x81] sm:$0xff]
        %v1398 = vld [vmem:[%s1121 + $0x91] sm:$0xff]
        %v1399 = vld [vmem:[%s1121 + $0x99] sm:$0xff]
        %v1400 = vld [vmem:[%s1121 + $0xa9] sm:$0xff]
        %v1401 = vld [vmem:[%s1121 + $0xb1] sm:$0xff]
        %v1402 = vld [vmem:[%s1121 + $0xc1] sm:$0xff]
        %v1403 = vld [vmem:[%s1121 + $0xc9] sm:$0xff]
        %v1404 = vld [vmem:[%s1121 + $0xd9] sm:$0xff]
        %v1405 = vld [vmem:[%s1121 + $0xe1] sm:$0xff]
        %v1406 = vld [vmem:[%s1121 + $0xf1] sm:$0xff]
        %v1407 = vld [vmem:[%s1121 + $0xf9] sm:$0xff]
        %v1408 = vld [vmem:[%s1121 + $0x109] sm:$0xff]
        %v1409 = vld [vmem:[%s1121 + $0x111] sm:$0xff]
        %v1410 = vld [vmem:[%s1121 + $0x121] sm:$0xff]
        %v1411 = vld [vmem:[%s1121 + $0x129] sm:$0xff]
        %v1412 = vld [vmem:[%s1121 + $0x139] sm:$0xff]
        %v1413 = vld [vmem:[%s1121 + $0x141] sm:$0xff]
        %v1414 = vld [vmem:[%s1121 + $0x151] sm:$0xff]
        %v1415 = vld [vmem:[%s1121 + $0x159] sm:$0xff]
        %v1416 = vld [vmem:[%s1121 + $0x169] sm:$0xff]
        %v1417 = vld [vmem:[%s1121 + $0x171] sm:$0xff]
        %s1418 = scalar_lea.vmem %s1, 4
        %v1419 = vld [vmem:[%s1418] sm:$0x1]
        %1421 = vset.pattern.permute.xlu0 0
        %1422 = vperm.xlu0 %1421, %v1386
        %v1423 = vpop.permute.xlu0 %1422
        %1426 = vset.pattern.permute.xlu0 0
        %1427 = vperm.xlu0 %1426, %v1387
        %v1428 = vpop.permute.xlu0 %1427
        %1431 = vset.pattern.permute.xlu0 0
        %1432 = vperm.xlu0 %1431, %v1388
        %v1433 = vpop.permute.xlu0 %1432
        %1436 = vset.pattern.permute.xlu0 0
        %1437 = vperm.xlu0 %1436, %v1389
        %v1438 = vpop.permute.xlu0 %1437
        %1441 = vset.pattern.permute.xlu0 0
        %1442 = vperm.xlu0 %1441, %v1390
        %v1443 = vpop.permute.xlu0 %1442
        %1446 = vset.pattern.permute.xlu0 0
        %1447 = vperm.xlu0 %1446, %v1391
        %v1448 = vpop.permute.xlu0 %1447
        %1451 = vset.pattern.permute.xlu0 0
        %1452 = vperm.xlu0 %1451, %v1392
        %v1453 = vpop.permute.xlu0 %1452
        %1456 = vset.pattern.permute.xlu0 0
        %1457 = vperm.xlu0 %1456, %v1393
        %v1458 = vpop.permute.xlu0 %1457
        %1461 = vset.pattern.permute.xlu0 0
        %1462 = vperm.xlu0 %1461, %v1394
        %v1463 = vpop.permute.xlu0 %1462
        %1466 = vset.pattern.permute.xlu0 0
        %1467 = vperm.xlu0 %1466, %v1395
        %v1468 = vpop.permute.xlu0 %1467
        %1471 = vset.pattern.permute.xlu0 0
        %1472 = vperm.xlu0 %1471, %v1396
        %v1473 = vpop.permute.xlu0 %1472
        %1476 = vset.pattern.permute.xlu0 0
        %1477 = vperm.xlu0 %1476, %v1397
        %v1478 = vpop.permute.xlu0 %1477
        %1481 = vset.pattern.permute.xlu0 0
        %1482 = vperm.xlu0 %1481, %v1398
        %v1483 = vpop.permute.xlu0 %1482
        %1486 = vset.pattern.permute.xlu0 0
        %1487 = vperm.xlu0 %1486, %v1399
        %v1488 = vpop.permute.xlu0 %1487
        %1491 = vset.pattern.permute.xlu0 0
        %1492 = vperm.xlu0 %1491, %v1400
        %v1493 = vpop.permute.xlu0 %1492
        %1496 = vset.pattern.permute.xlu0 0
        %1497 = vperm.xlu0 %1496, %v1401
        %v1498 = vpop.permute.xlu0 %1497
        %1501 = vset.pattern.permute.xlu0 0
        %1502 = vperm.xlu0 %1501, %v1402
        %v1503 = vpop.permute.xlu0 %1502
        %1506 = vset.pattern.permute.xlu0 0
        %1507 = vperm.xlu0 %1506, %v1403
        %v1508 = vpop.permute.xlu0 %1507
        %1511 = vset.pattern.permute.xlu0 0
        %1512 = vperm.xlu0 %1511, %v1404
        %v1513 = vpop.permute.xlu0 %1512
        %1516 = vset.pattern.permute.xlu0 0
        %1517 = vperm.xlu0 %1516, %v1405
        %v1518 = vpop.permute.xlu0 %1517
        %1521 = vset.pattern.permute.xlu0 0
        %1522 = vperm.xlu0 %1521, %v1406
        %v1523 = vpop.permute.xlu0 %1522
        %1526 = vset.pattern.permute.xlu0 0
        %1527 = vperm.xlu0 %1526, %v1407
        %v1528 = vpop.permute.xlu0 %1527
        %1531 = vset.pattern.permute.xlu0 0
        %1532 = vperm.xlu0 %1531, %v1408
        %v1533 = vpop.permute.xlu0 %1532
        %1536 = vset.pattern.permute.xlu0 0
        %1537 = vperm.xlu0 %1536, %v1409
        %v1538 = vpop.permute.xlu0 %1537
        %1541 = vset.pattern.permute.xlu0 0
        %1542 = vperm.xlu0 %1541, %v1410
        %v1543 = vpop.permute.xlu0 %1542
        %1546 = vset.pattern.permute.xlu0 0
        %1547 = vperm.xlu0 %1546, %v1411
        %v1548 = vpop.permute.xlu0 %1547
        %1551 = vset.pattern.permute.xlu0 0
        %1552 = vperm.xlu0 %1551, %v1412
        %v1553 = vpop.permute.xlu0 %1552
        %1556 = vset.pattern.permute.xlu0 0
        %1557 = vperm.xlu0 %1556, %v1413
        %v1558 = vpop.permute.xlu0 %1557
        %1561 = vset.pattern.permute.xlu0 0
        %1562 = vperm.xlu0 %1561, %v1414
        %v1563 = vpop.permute.xlu0 %1562
        %1566 = vset.pattern.permute.xlu0 0
        %1567 = vperm.xlu0 %1566, %v1415
        %v1568 = vpop.permute.xlu0 %1567
        %1571 = vset.pattern.permute.xlu0 0
        %1572 = vperm.xlu0 %1571, %v1416
        %v1573 = vpop.permute.xlu0 %1572
        %1576 = vset.pattern.permute.xlu0 0
        %1577 = vperm.xlu0 %1576, %v1417
        %v1578 = vpop.permute.xlu0 %1577
        %v1581 = vlaneseq
        %v1582 = vshrl.u32 %v1581, 7
        %v1583 = vsub.s32 0, %v1582
        %v1584 = vrot.slane %v1419, %v1583
        %v1586 = vmul.f32 %v1423, %v1584
        %v1587 = vmul.f32 %v1428, %v1584
        %v1588 = vmul.f32 %v1433, %v1584
        %v1589 = vmul.f32 %v1438, %v1584
        %v1590 = vmul.f32 %v1443, %v1584
        %v1591 = vmul.f32 %v1448, %v1584
        %v1592 = vmul.f32 %v1453, %v1584
        %v1593 = vmul.f32 %v1458, %v1584
        %v1594 = vmul.f32 %v1463, %v1584
        %v1595 = vmul.f32 %v1468, %v1584
        %v1596 = vmul.f32 %v1473, %v1584
        %v1597 = vmul.f32 %v1478, %v1584
        %v1598 = vmul.f32 %v1483, %v1584
        %v1599 = vmul.f32 %v1488, %v1584
        %v1600 = vmul.f32 %v1493, %v1584
        %v1601 = vmul.f32 %v1498, %v1584
        %v1602 = vmul.f32 %v1503, %v1584
        %v1603 = vmul.f32 %v1508, %v1584
        %v1604 = vmul.f32 %v1513, %v1584
        %v1605 = vmul.f32 %v1518, %v1584
        %v1606 = vmul.f32 %v1523, %v1584
        %v1607 = vmul.f32 %v1528, %v1584
        %v1608 = vmul.f32 %v1533, %v1584
        %v1609 = vmul.f32 %v1538, %v1584
        %v1610 = vmul.f32 %v1543, %v1584
        %v1611 = vmul.f32 %v1548, %v1584
        %v1612 = vmul.f32 %v1553, %v1584
        %v1613 = vmul.f32 %v1558, %v1584
        %v1614 = vmul.f32 %v1563, %v1584
        %v1615 = vmul.f32 %v1568, %v1584
        %v1616 = vmul.f32 %v1573, %v1584
        %v1617 = vmul.f32 %v1578, %v1584
        %v1618 = vadd.f32 %v1354, %v1586
        %v1619 = vadd.f32 %v1355, %v1587
        %v1620 = vadd.f32 %v1356, %v1588
        %v1621 = vadd.f32 %v1357, %v1589
        %v1622 = vadd.f32 %v1358, %v1590
        %v1623 = vadd.f32 %v1359, %v1591
        %v1624 = vadd.f32 %v1360, %v1592
        %v1625 = vadd.f32 %v1361, %v1593
        %v1626 = vadd.f32 %v1362, %v1594
        %v1627 = vadd.f32 %v1363, %v1595
        %v1628 = vadd.f32 %v1364, %v1596
        %v1629 = vadd.f32 %v1365, %v1597
        %v1630 = vadd.f32 %v1366, %v1598
        %v1631 = vadd.f32 %v1367, %v1599
        %v1632 = vadd.f32 %v1368, %v1600
        %v1633 = vadd.f32 %v1369, %v1601
        %v1634 = vadd.f32 %v1370, %v1602
        %v1635 = vadd.f32 %v1371, %v1603
        %v1636 = vadd.f32 %v1372, %v1604
        %v1637 = vadd.f32 %v1373, %v1605
        %v1638 = vadd.f32 %v1374, %v1606
        %v1639 = vadd.f32 %v1375, %v1607
        %v1640 = vadd.f32 %v1376, %v1608
        %v1641 = vadd.f32 %v1377, %v1609
        %v1642 = vadd.f32 %v1378, %v1610
        %v1643 = vadd.f32 %v1379, %v1611
        %v1644 = vadd.f32 %v1380, %v1612
        %v1645 = vadd.f32 %v1381, %v1613
        %v1646 = vadd.f32 %v1382, %v1614
        %v1647 = vadd.f32 %v1383, %v1615
        %v1648 = vadd.f32 %v1384, %v1616
        %v1649 = vadd.f32 %v1385, %v1617
        %v1650 = vld [vmem:[%s1121 + $0x2] sm:$0xff]
        %v1651 = vld [vmem:[%s1121 + $0xa] sm:$0xff]
        %v1652 = vld [vmem:[%s1121 + $0x1a] sm:$0xff]
        %v1653 = vld [vmem:[%s1121 + $0x22] sm:$0xff]
        %v1654 = vld [vmem:[%s1121 + $0x32] sm:$0xff]
        %v1655 = vld [vmem:[%s1121 + $0x3a] sm:$0xff]
        %v1656 = vld [vmem:[%s1121 + $0x4a] sm:$0xff]
        %v1657 = vld [vmem:[%s1121 + $0x52] sm:$0xff]
        %v1658 = vld [vmem:[%s1121 + $0x62] sm:$0xff]
        %v1659 = vld [vmem:[%s1121 + $0x6a] sm:$0xff]
        %v1660 = vld [vmem:[%s1121 + $0x7a] sm:$0xff]
        %v1661 = vld [vmem:[%s1121 + $0x82] sm:$0xff]
        %v1662 = vld [vmem:[%s1121 + $0x92] sm:$0xff]
        %v1663 = vld [vmem:[%s1121 + $0x9a] sm:$0xff]
        %v1664 = vld [vmem:[%s1121 + $0xaa] sm:$0xff]
        %v1665 = vld [vmem:[%s1121 + $0xb2] sm:$0xff]
        %v1666 = vld [vmem:[%s1121 + $0xc2] sm:$0xff]
        %v1667 = vld [vmem:[%s1121 + $0xca] sm:$0xff]
        %v1668 = vld [vmem:[%s1121 + $0xda] sm:$0xff]
        %v1669 = vld [vmem:[%s1121 + $0xe2] sm:$0xff]
        %v1670 = vld [vmem:[%s1121 + $0xf2] sm:$0xff]
        %v1671 = vld [vmem:[%s1121 + $0xfa] sm:$0xff]
        %v1672 = vld [vmem:[%s1121 + $0x10a] sm:$0xff]
        %v1673 = vld [vmem:[%s1121 + $0x112] sm:$0xff]
        %v1674 = vld [vmem:[%s1121 + $0x122] sm:$0xff]
        %v1675 = vld [vmem:[%s1121 + $0x12a] sm:$0xff]
        %v1676 = vld [vmem:[%s1121 + $0x13a] sm:$0xff]
        %v1677 = vld [vmem:[%s1121 + $0x142] sm:$0xff]
        %v1678 = vld [vmem:[%s1121 + $0x152] sm:$0xff]
        %v1679 = vld [vmem:[%s1121 + $0x15a] sm:$0xff]
        %v1680 = vld [vmem:[%s1121 + $0x16a] sm:$0xff]
        %v1681 = vld [vmem:[%s1121 + $0x172] sm:$0xff]
        %s1682 = scalar_lea.vmem %s1, 5
        %v1683 = vld [vmem:[%s1682] sm:$0x1]
        %1685 = vset.pattern.permute.xlu0 0
        %1686 = vperm.xlu0 %1685, %v1650
        %v1687 = vpop.permute.xlu0 %1686
        %1690 = vset.pattern.permute.xlu0 0
        %1691 = vperm.xlu0 %1690, %v1651
        %v1692 = vpop.permute.xlu0 %1691
        %1695 = vset.pattern.permute.xlu0 0
        %1696 = vperm.xlu0 %1695, %v1652
        %v1697 = vpop.permute.xlu0 %1696
        %1700 = vset.pattern.permute.xlu0 0
        %1701 = vperm.xlu0 %1700, %v1653
        %v1702 = vpop.permute.xlu0 %1701
        %1705 = vset.pattern.permute.xlu0 0
        %1706 = vperm.xlu0 %1705, %v1654
        %v1707 = vpop.permute.xlu0 %1706
        %1710 = vset.pattern.permute.xlu0 0
        %1711 = vperm.xlu0 %1710, %v1655
        %v1712 = vpop.permute.xlu0 %1711
        %1715 = vset.pattern.permute.xlu0 0
        %1716 = vperm.xlu0 %1715, %v1656
        %v1717 = vpop.permute.xlu0 %1716
        %1720 = vset.pattern.permute.xlu0 0
        %1721 = vperm.xlu0 %1720, %v1657
        %v1722 = vpop.permute.xlu0 %1721
        %1725 = vset.pattern.permute.xlu0 0
        %1726 = vperm.xlu0 %1725, %v1658
        %v1727 = vpop.permute.xlu0 %1726
        %1730 = vset.pattern.permute.xlu0 0
        %1731 = vperm.xlu0 %1730, %v1659
        %v1732 = vpop.permute.xlu0 %1731
        %1735 = vset.pattern.permute.xlu0 0
        %1736 = vperm.xlu0 %1735, %v1660
        %v1737 = vpop.permute.xlu0 %1736
        %1740 = vset.pattern.permute.xlu0 0
        %1741 = vperm.xlu0 %1740, %v1661
        %v1742 = vpop.permute.xlu0 %1741
        %1745 = vset.pattern.permute.xlu0 0
        %1746 = vperm.xlu0 %1745, %v1662
        %v1747 = vpop.permute.xlu0 %1746
        %1750 = vset.pattern.permute.xlu0 0
        %1751 = vperm.xlu0 %1750, %v1663
        %v1752 = vpop.permute.xlu0 %1751
        %1755 = vset.pattern.permute.xlu0 0
        %1756 = vperm.xlu0 %1755, %v1664
        %v1757 = vpop.permute.xlu0 %1756
        %1760 = vset.pattern.permute.xlu0 0
        %1761 = vperm.xlu0 %1760, %v1665
        %v1762 = vpop.permute.xlu0 %1761
        %1765 = vset.pattern.permute.xlu0 0
        %1766 = vperm.xlu0 %1765, %v1666
        %v1767 = vpop.permute.xlu0 %1766
        %1770 = vset.pattern.permute.xlu0 0
        %1771 = vperm.xlu0 %1770, %v1667
        %v1772 = vpop.permute.xlu0 %1771
        %1775 = vset.pattern.permute.xlu0 0
        %1776 = vperm.xlu0 %1775, %v1668
        %v1777 = vpop.permute.xlu0 %1776
        %1780 = vset.pattern.permute.xlu0 0
        %1781 = vperm.xlu0 %1780, %v1669
        %v1782 = vpop.permute.xlu0 %1781
        %1785 = vset.pattern.permute.xlu0 0
        %1786 = vperm.xlu0 %1785, %v1670
        %v1787 = vpop.permute.xlu0 %1786
        %1790 = vset.pattern.permute.xlu0 0
        %1791 = vperm.xlu0 %1790, %v1671
        %v1792 = vpop.permute.xlu0 %1791
        %1795 = vset.pattern.permute.xlu0 0
        %1796 = vperm.xlu0 %1795, %v1672
        %v1797 = vpop.permute.xlu0 %1796
        %1800 = vset.pattern.permute.xlu0 0
        %1801 = vperm.xlu0 %1800, %v1673
        %v1802 = vpop.permute.xlu0 %1801
        %1805 = vset.pattern.permute.xlu0 0
        %1806 = vperm.xlu0 %1805, %v1674
        %v1807 = vpop.permute.xlu0 %1806
        %1810 = vset.pattern.permute.xlu0 0
        %1811 = vperm.xlu0 %1810, %v1675
        %v1812 = vpop.permute.xlu0 %1811
        %1815 = vset.pattern.permute.xlu0 0
        %1816 = vperm.xlu0 %1815, %v1676
        %v1817 = vpop.permute.xlu0 %1816
        %1820 = vset.pattern.permute.xlu0 0
        %1821 = vperm.xlu0 %1820, %v1677
        %v1822 = vpop.permute.xlu0 %1821
        %1825 = vset.pattern.permute.xlu0 0
        %1826 = vperm.xlu0 %1825, %v1678
        %v1827 = vpop.permute.xlu0 %1826
        %1830 = vset.pattern.permute.xlu0 0
        %1831 = vperm.xlu0 %1830, %v1679
        %v1832 = vpop.permute.xlu0 %1831
        %1835 = vset.pattern.permute.xlu0 0
        %1836 = vperm.xlu0 %1835, %v1680
        %v1837 = vpop.permute.xlu0 %1836
        %1840 = vset.pattern.permute.xlu0 0
        %1841 = vperm.xlu0 %1840, %v1681
        %v1842 = vpop.permute.xlu0 %1841
        %v1845 = vlaneseq
        %v1846 = vshrl.u32 %v1845, 7
        %v1847 = vsub.s32 0, %v1846
        %v1848 = vrot.slane %v1683, %v1847
        %v1850 = vmul.f32 %v1687, %v1848
        %v1851 = vmul.f32 %v1692, %v1848
        %v1852 = vmul.f32 %v1697, %v1848
        %v1853 = vmul.f32 %v1702, %v1848
        %v1854 = vmul.f32 %v1707, %v1848
        %v1855 = vmul.f32 %v1712, %v1848
        %v1856 = vmul.f32 %v1717, %v1848
        %v1857 = vmul.f32 %v1722, %v1848
        %v1858 = vmul.f32 %v1727, %v1848
        %v1859 = vmul.f32 %v1732, %v1848
        %v1860 = vmul.f32 %v1737, %v1848
        %v1861 = vmul.f32 %v1742, %v1848
        %v1862 = vmul.f32 %v1747, %v1848
        %v1863 = vmul.f32 %v1752, %v1848
        %v1864 = vmul.f32 %v1757, %v1848
        %v1865 = vmul.f32 %v1762, %v1848
        %v1866 = vmul.f32 %v1767, %v1848
        %v1867 = vmul.f32 %v1772, %v1848
        %v1868 = vmul.f32 %v1777, %v1848
        %v1869 = vmul.f32 %v1782, %v1848
        %v1870 = vmul.f32 %v1787, %v1848
        %v1871 = vmul.f32 %v1792, %v1848
        %v1872 = vmul.f32 %v1797, %v1848
        %v1873 = vmul.f32 %v1802, %v1848
        %v1874 = vmul.f32 %v1807, %v1848
        %v1875 = vmul.f32 %v1812, %v1848
        %v1876 = vmul.f32 %v1817, %v1848
        %v1877 = vmul.f32 %v1822, %v1848
        %v1878 = vmul.f32 %v1827, %v1848
        %v1879 = vmul.f32 %v1832, %v1848
        %v1880 = vmul.f32 %v1837, %v1848
        %v1881 = vmul.f32 %v1842, %v1848
        %v1882 = vadd.f32 %v1618, %v1850
        %v1883 = vadd.f32 %v1619, %v1851
        %v1884 = vadd.f32 %v1620, %v1852
        %v1885 = vadd.f32 %v1621, %v1853
        %v1886 = vadd.f32 %v1622, %v1854
        %v1887 = vadd.f32 %v1623, %v1855
        %v1888 = vadd.f32 %v1624, %v1856
        %v1889 = vadd.f32 %v1625, %v1857
        %v1890 = vadd.f32 %v1626, %v1858
        %v1891 = vadd.f32 %v1627, %v1859
        %v1892 = vadd.f32 %v1628, %v1860
        %v1893 = vadd.f32 %v1629, %v1861
        %v1894 = vadd.f32 %v1630, %v1862
        %v1895 = vadd.f32 %v1631, %v1863
        %v1896 = vadd.f32 %v1632, %v1864
        %v1897 = vadd.f32 %v1633, %v1865
        %v1898 = vadd.f32 %v1634, %v1866
        %v1899 = vadd.f32 %v1635, %v1867
        %v1900 = vadd.f32 %v1636, %v1868
        %v1901 = vadd.f32 %v1637, %v1869
        %v1902 = vadd.f32 %v1638, %v1870
        %v1903 = vadd.f32 %v1639, %v1871
        %v1904 = vadd.f32 %v1640, %v1872
        %v1905 = vadd.f32 %v1641, %v1873
        %v1906 = vadd.f32 %v1642, %v1874
        %v1907 = vadd.f32 %v1643, %v1875
        %v1908 = vadd.f32 %v1644, %v1876
        %v1909 = vadd.f32 %v1645, %v1877
        %v1910 = vadd.f32 %v1646, %v1878
        %v1911 = vadd.f32 %v1647, %v1879
        %v1912 = vadd.f32 %v1648, %v1880
        %v1913 = vadd.f32 %v1649, %v1881
        %s1914 = scalar_lea.vmem %s329, 48
        %v1915 = vld [vmem:[%s1914] sm:$0xff]
        %v1916 = vld [vmem:[%s1914 + $0x8] sm:$0xff]
        %v1917 = vld [vmem:[%s1914 + $0x18] sm:$0xff]
        %v1918 = vld [vmem:[%s1914 + $0x20] sm:$0xff]
        %v1919 = vld [vmem:[%s1914 + $0x30] sm:$0xff]
        %v1920 = vld [vmem:[%s1914 + $0x38] sm:$0xff]
        %v1921 = vld [vmem:[%s1914 + $0x48] sm:$0xff]
        %v1922 = vld [vmem:[%s1914 + $0x50] sm:$0xff]
        %v1923 = vld [vmem:[%s1914 + $0x60] sm:$0xff]
        %v1924 = vld [vmem:[%s1914 + $0x68] sm:$0xff]
        %v1925 = vld [vmem:[%s1914 + $0x78] sm:$0xff]
        %v1926 = vld [vmem:[%s1914 + $0x80] sm:$0xff]
        %v1927 = vld [vmem:[%s1914 + $0x90] sm:$0xff]
        %v1928 = vld [vmem:[%s1914 + $0x98] sm:$0xff]
        %v1929 = vld [vmem:[%s1914 + $0xa8] sm:$0xff]
        %v1930 = vld [vmem:[%s1914 + $0xb0] sm:$0xff]
        %v1931 = vld [vmem:[%s1914 + $0xc0] sm:$0xff]
        %v1932 = vld [vmem:[%s1914 + $0xc8] sm:$0xff]
        %v1933 = vld [vmem:[%s1914 + $0xd8] sm:$0xff]
        %v1934 = vld [vmem:[%s1914 + $0xe0] sm:$0xff]
        %v1935 = vld [vmem:[%s1914 + $0xf0] sm:$0xff]
        %v1936 = vld [vmem:[%s1914 + $0xf8] sm:$0xff]
        %v1937 = vld [vmem:[%s1914 + $0x108] sm:$0xff]
        %v1938 = vld [vmem:[%s1914 + $0x110] sm:$0xff]
        %v1939 = vld [vmem:[%s1914 + $0x120] sm:$0xff]
        %v1940 = vld [vmem:[%s1914 + $0x128] sm:$0xff]
        %v1941 = vld [vmem:[%s1914 + $0x138] sm:$0xff]
        %v1942 = vld [vmem:[%s1914 + $0x140] sm:$0xff]
        %v1943 = vld [vmem:[%s1914 + $0x150] sm:$0xff]
        %v1944 = vld [vmem:[%s1914 + $0x158] sm:$0xff]
        %v1945 = vld [vmem:[%s1914 + $0x168] sm:$0xff]
        %v1946 = vld [vmem:[%s1914 + $0x170] sm:$0xff]
        %s1947 = scalar_lea.vmem %s1, 6
        %v1948 = vld [vmem:[%s1947] sm:$0x1]
        %1950 = vset.pattern.permute.xlu0 0
        %1951 = vperm.xlu0 %1950, %v1915
        %v1952 = vpop.permute.xlu0 %1951
        %1955 = vset.pattern.permute.xlu0 0
        %1956 = vperm.xlu0 %1955, %v1916
        %v1957 = vpop.permute.xlu0 %1956
        %1960 = vset.pattern.permute.xlu0 0
        %1961 = vperm.xlu0 %1960, %v1917
        %v1962 = vpop.permute.xlu0 %1961
        %1965 = vset.pattern.permute.xlu0 0
        %1966 = vperm.xlu0 %1965, %v1918
        %v1967 = vpop.permute.xlu0 %1966
        %1970 = vset.pattern.permute.xlu0 0
        %1971 = vperm.xlu0 %1970, %v1919
        %v1972 = vpop.permute.xlu0 %1971
        %1975 = vset.pattern.permute.xlu0 0
        %1976 = vperm.xlu0 %1975, %v1920
        %v1977 = vpop.permute.xlu0 %1976
        %1980 = vset.pattern.permute.xlu0 0
        %1981 = vperm.xlu0 %1980, %v1921
        %v1982 = vpop.permute.xlu0 %1981
        %1985 = vset.pattern.permute.xlu0 0
        %1986 = vperm.xlu0 %1985, %v1922
        %v1987 = vpop.permute.xlu0 %1986
        %1990 = vset.pattern.permute.xlu0 0
        %1991 = vperm.xlu0 %1990, %v1923
        %v1992 = vpop.permute.xlu0 %1991
        %1995 = vset.pattern.permute.xlu0 0
        %1996 = vperm.xlu0 %1995, %v1924
        %v1997 = vpop.permute.xlu0 %1996
        %2000 = vset.pattern.permute.xlu0 0
        %2001 = vperm.xlu0 %2000, %v1925
        %v2002 = vpop.permute.xlu0 %2001
        %2005 = vset.pattern.permute.xlu0 0
        %2006 = vperm.xlu0 %2005, %v1926
        %v2007 = vpop.permute.xlu0 %2006
        %2010 = vset.pattern.permute.xlu0 0
        %2011 = vperm.xlu0 %2010, %v1927
        %v2012 = vpop.permute.xlu0 %2011
        %2015 = vset.pattern.permute.xlu0 0
        %2016 = vperm.xlu0 %2015, %v1928
        %v2017 = vpop.permute.xlu0 %2016
        %2020 = vset.pattern.permute.xlu0 0
        %2021 = vperm.xlu0 %2020, %v1929
        %v2022 = vpop.permute.xlu0 %2021
        %2025 = vset.pattern.permute.xlu0 0
        %2026 = vperm.xlu0 %2025, %v1930
        %v2027 = vpop.permute.xlu0 %2026
        %2030 = vset.pattern.permute.xlu0 0
        %2031 = vperm.xlu0 %2030, %v1931
        %v2032 = vpop.permute.xlu0 %2031
        %2035 = vset.pattern.permute.xlu0 0
        %2036 = vperm.xlu0 %2035, %v1932
        %v2037 = vpop.permute.xlu0 %2036
        %2040 = vset.pattern.permute.xlu0 0
        %2041 = vperm.xlu0 %2040, %v1933
        %v2042 = vpop.permute.xlu0 %2041
        %2045 = vset.pattern.permute.xlu0 0
        %2046 = vperm.xlu0 %2045, %v1934
        %v2047 = vpop.permute.xlu0 %2046
        %2050 = vset.pattern.permute.xlu0 0
        %2051 = vperm.xlu0 %2050, %v1935
        %v2052 = vpop.permute.xlu0 %2051
        %2055 = vset.pattern.permute.xlu0 0
        %2056 = vperm.xlu0 %2055, %v1936
        %v2057 = vpop.permute.xlu0 %2056
        %2060 = vset.pattern.permute.xlu0 0
        %2061 = vperm.xlu0 %2060, %v1937
        %v2062 = vpop.permute.xlu0 %2061
        %2065 = vset.pattern.permute.xlu0 0
        %2066 = vperm.xlu0 %2065, %v1938
        %v2067 = vpop.permute.xlu0 %2066
        %2070 = vset.pattern.permute.xlu0 0
        %2071 = vperm.xlu0 %2070, %v1939
        %v2072 = vpop.permute.xlu0 %2071
        %2075 = vset.pattern.permute.xlu0 0
        %2076 = vperm.xlu0 %2075, %v1940
        %v2077 = vpop.permute.xlu0 %2076
        %2080 = vset.pattern.permute.xlu0 0
        %2081 = vperm.xlu0 %2080, %v1941
        %v2082 = vpop.permute.xlu0 %2081
        %2085 = vset.pattern.permute.xlu0 0
        %2086 = vperm.xlu0 %2085, %v1942
        %v2087 = vpop.permute.xlu0 %2086
        %2090 = vset.pattern.permute.xlu0 0
        %2091 = vperm.xlu0 %2090, %v1943
        %v2092 = vpop.permute.xlu0 %2091
        %2095 = vset.pattern.permute.xlu0 0
        %2096 = vperm.xlu0 %2095, %v1944
        %v2097 = vpop.permute.xlu0 %2096
        %2100 = vset.pattern.permute.xlu0 0
        %2101 = vperm.xlu0 %2100, %v1945
        %v2102 = vpop.permute.xlu0 %2101
        %2105 = vset.pattern.permute.xlu0 0
        %2106 = vperm.xlu0 %2105, %v1946
        %v2107 = vpop.permute.xlu0 %2106
        %v2110 = vlaneseq
        %v2111 = vshrl.u32 %v2110, 7
        %v2112 = vsub.s32 0, %v2111
        %v2113 = vrot.slane %v1948, %v2112
        %v2115 = vmul.f32 %v1952, %v2113
        %v2116 = vmul.f32 %v1957, %v2113
        %v2117 = vmul.f32 %v1962, %v2113
        %v2118 = vmul.f32 %v1967, %v2113
        %v2119 = vmul.f32 %v1972, %v2113
        %v2120 = vmul.f32 %v1977, %v2113
        %v2121 = vmul.f32 %v1982, %v2113
        %v2122 = vmul.f32 %v1987, %v2113
        %v2123 = vmul.f32 %v1992, %v2113
        %v2124 = vmul.f32 %v1997, %v2113
        %v2125 = vmul.f32 %v2002, %v2113
        %v2126 = vmul.f32 %v2007, %v2113
        %v2127 = vmul.f32 %v2012, %v2113
        %v2128 = vmul.f32 %v2017, %v2113
        %v2129 = vmul.f32 %v2022, %v2113
        %v2130 = vmul.f32 %v2027, %v2113
        %v2131 = vmul.f32 %v2032, %v2113
        %v2132 = vmul.f32 %v2037, %v2113
        %v2133 = vmul.f32 %v2042, %v2113
        %v2134 = vmul.f32 %v2047, %v2113
        %v2135 = vmul.f32 %v2052, %v2113
        %v2136 = vmul.f32 %v2057, %v2113
        %v2137 = vmul.f32 %v2062, %v2113
        %v2138 = vmul.f32 %v2067, %v2113
        %v2139 = vmul.f32 %v2072, %v2113
        %v2140 = vmul.f32 %v2077, %v2113
        %v2141 = vmul.f32 %v2082, %v2113
        %v2142 = vmul.f32 %v2087, %v2113
        %v2143 = vmul.f32 %v2092, %v2113
        %v2144 = vmul.f32 %v2097, %v2113
        %v2145 = vmul.f32 %v2102, %v2113
        %v2146 = vmul.f32 %v2107, %v2113
        %v2147 = vadd.f32 %v1882, %v2115
        %v2148 = vadd.f32 %v1883, %v2116
        %v2149 = vadd.f32 %v1884, %v2117
        %v2150 = vadd.f32 %v1885, %v2118
        %v2151 = vadd.f32 %v1886, %v2119
        %v2152 = vadd.f32 %v1887, %v2120
        %v2153 = vadd.f32 %v1888, %v2121
        %v2154 = vadd.f32 %v1889, %v2122
        %v2155 = vadd.f32 %v1890, %v2123
        %v2156 = vadd.f32 %v1891, %v2124
        %v2157 = vadd.f32 %v1892, %v2125
        %v2158 = vadd.f32 %v1893, %v2126
        %v2159 = vadd.f32 %v1894, %v2127
        %v2160 = vadd.f32 %v1895, %v2128
        %v2161 = vadd.f32 %v1896, %v2129
        %v2162 = vadd.f32 %v1897, %v2130
        %v2163 = vadd.f32 %v1898, %v2131
        %v2164 = vadd.f32 %v1899, %v2132
        %v2165 = vadd.f32 %v1900, %v2133
        %v2166 = vadd.f32 %v1901, %v2134
        %v2167 = vadd.f32 %v1902, %v2135
        %v2168 = vadd.f32 %v1903, %v2136
        %v2169 = vadd.f32 %v1904, %v2137
        %v2170 = vadd.f32 %v1905, %v2138
        %v2171 = vadd.f32 %v1906, %v2139
        %v2172 = vadd.f32 %v1907, %v2140
        %v2173 = vadd.f32 %v1908, %v2141
        %v2174 = vadd.f32 %v1909, %v2142
        %v2175 = vadd.f32 %v1910, %v2143
        %v2176 = vadd.f32 %v1911, %v2144
        %v2177 = vadd.f32 %v1912, %v2145
        %v2178 = vadd.f32 %v1913, %v2146
        %v2179 = vld [vmem:[%s1914 + $0x1] sm:$0xff]
        %v2180 = vld [vmem:[%s1914 + $0x9] sm:$0xff]
        %v2181 = vld [vmem:[%s1914 + $0x19] sm:$0xff]
        %v2182 = vld [vmem:[%s1914 + $0x21] sm:$0xff]
        %v2183 = vld [vmem:[%s1914 + $0x31] sm:$0xff]
        %v2184 = vld [vmem:[%s1914 + $0x39] sm:$0xff]
        %v2185 = vld [vmem:[%s1914 + $0x49] sm:$0xff]
        %v2186 = vld [vmem:[%s1914 + $0x51] sm:$0xff]
        %v2187 = vld [vmem:[%s1914 + $0x61] sm:$0xff]
        %v2188 = vld [vmem:[%s1914 + $0x69] sm:$0xff]
        %v2189 = vld [vmem:[%s1914 + $0x79] sm:$0xff]
        %v2190 = vld [vmem:[%s1914 + $0x81] sm:$0xff]
        %v2191 = vld [vmem:[%s1914 + $0x91] sm:$0xff]
        %v2192 = vld [vmem:[%s1914 + $0x99] sm:$0xff]
        %v2193 = vld [vmem:[%s1914 + $0xa9] sm:$0xff]
        %v2194 = vld [vmem:[%s1914 + $0xb1] sm:$0xff]
        %v2195 = vld [vmem:[%s1914 + $0xc1] sm:$0xff]
        %v2196 = vld [vmem:[%s1914 + $0xc9] sm:$0xff]
        %v2197 = vld [vmem:[%s1914 + $0xd9] sm:$0xff]
        %v2198 = vld [vmem:[%s1914 + $0xe1] sm:$0xff]
        %v2199 = vld [vmem:[%s1914 + $0xf1] sm:$0xff]
        %v2200 = vld [vmem:[%s1914 + $0xf9] sm:$0xff]
        %v2201 = vld [vmem:[%s1914 + $0x109] sm:$0xff]
        %v2202 = vld [vmem:[%s1914 + $0x111] sm:$0xff]
        %v2203 = vld [vmem:[%s1914 + $0x121] sm:$0xff]
        %v2204 = vld [vmem:[%s1914 + $0x129] sm:$0xff]
        %v2205 = vld [vmem:[%s1914 + $0x139] sm:$0xff]
        %v2206 = vld [vmem:[%s1914 + $0x141] sm:$0xff]
        %v2207 = vld [vmem:[%s1914 + $0x151] sm:$0xff]
        %v2208 = vld [vmem:[%s1914 + $0x159] sm:$0xff]
        %v2209 = vld [vmem:[%s1914 + $0x169] sm:$0xff]
        %v2210 = vld [vmem:[%s1914 + $0x171] sm:$0xff]
        %s2211 = scalar_lea.vmem %s1, 7
        %v2212 = vld [vmem:[%s2211] sm:$0x1]
        %2214 = vset.pattern.permute.xlu0 0
        %2215 = vperm.xlu0 %2214, %v2179
        %v2216 = vpop.permute.xlu0 %2215
        %2219 = vset.pattern.permute.xlu0 0
        %2220 = vperm.xlu0 %2219, %v2180
        %v2221 = vpop.permute.xlu0 %2220
        %2224 = vset.pattern.permute.xlu0 0
        %2225 = vperm.xlu0 %2224, %v2181
        %v2226 = vpop.permute.xlu0 %2225
        %2229 = vset.pattern.permute.xlu0 0
        %2230 = vperm.xlu0 %2229, %v2182
        %v2231 = vpop.permute.xlu0 %2230
        %2234 = vset.pattern.permute.xlu0 0
        %2235 = vperm.xlu0 %2234, %v2183
        %v2236 = vpop.permute.xlu0 %2235
        %2239 = vset.pattern.permute.xlu0 0
        %2240 = vperm.xlu0 %2239, %v2184
        %v2241 = vpop.permute.xlu0 %2240
        %2244 = vset.pattern.permute.xlu0 0
        %2245 = vperm.xlu0 %2244, %v2185
        %v2246 = vpop.permute.xlu0 %2245
        %2249 = vset.pattern.permute.xlu0 0
        %2250 = vperm.xlu0 %2249, %v2186
        %v2251 = vpop.permute.xlu0 %2250
        %2254 = vset.pattern.permute.xlu0 0
        %2255 = vperm.xlu0 %2254, %v2187
        %v2256 = vpop.permute.xlu0 %2255
        %2259 = vset.pattern.permute.xlu0 0
        %2260 = vperm.xlu0 %2259, %v2188
        %v2261 = vpop.permute.xlu0 %2260
        %2264 = vset.pattern.permute.xlu0 0
        %2265 = vperm.xlu0 %2264, %v2189
        %v2266 = vpop.permute.xlu0 %2265
        %2269 = vset.pattern.permute.xlu0 0
        %2270 = vperm.xlu0 %2269, %v2190
        %v2271 = vpop.permute.xlu0 %2270
        %2274 = vset.pattern.permute.xlu0 0
        %2275 = vperm.xlu0 %2274, %v2191
        %v2276 = vpop.permute.xlu0 %2275
        %2279 = vset.pattern.permute.xlu0 0
        %2280 = vperm.xlu0 %2279, %v2192
        %v2281 = vpop.permute.xlu0 %2280
        %2284 = vset.pattern.permute.xlu0 0
        %2285 = vperm.xlu0 %2284, %v2193
        %v2286 = vpop.permute.xlu0 %2285
        %2289 = vset.pattern.permute.xlu0 0
        %2290 = vperm.xlu0 %2289, %v2194
        %v2291 = vpop.permute.xlu0 %2290
        %2294 = vset.pattern.permute.xlu0 0
        %2295 = vperm.xlu0 %2294, %v2195
        %v2296 = vpop.permute.xlu0 %2295
        %2299 = vset.pattern.permute.xlu0 0
        %2300 = vperm.xlu0 %2299, %v2196
        %v2301 = vpop.permute.xlu0 %2300
        %2304 = vset.pattern.permute.xlu0 0
        %2305 = vperm.xlu0 %2304, %v2197
        %v2306 = vpop.permute.xlu0 %2305
        %2309 = vset.pattern.permute.xlu0 0
        %2310 = vperm.xlu0 %2309, %v2198
        %v2311 = vpop.permute.xlu0 %2310
        %2314 = vset.pattern.permute.xlu0 0
        %2315 = vperm.xlu0 %2314, %v2199
        %v2316 = vpop.permute.xlu0 %2315
        %2319 = vset.pattern.permute.xlu0 0
        %2320 = vperm.xlu0 %2319, %v2200
        %v2321 = vpop.permute.xlu0 %2320
        %2324 = vset.pattern.permute.xlu0 0
        %2325 = vperm.xlu0 %2324, %v2201
        %v2326 = vpop.permute.xlu0 %2325
        %2329 = vset.pattern.permute.xlu0 0
        %2330 = vperm.xlu0 %2329, %v2202
        %v2331 = vpop.permute.xlu0 %2330
        %2334 = vset.pattern.permute.xlu0 0
        %2335 = vperm.xlu0 %2334, %v2203
        %v2336 = vpop.permute.xlu0 %2335
        %2339 = vset.pattern.permute.xlu0 0
        %2340 = vperm.xlu0 %2339, %v2204
        %v2341 = vpop.permute.xlu0 %2340
        %2344 = vset.pattern.permute.xlu0 0
        %2345 = vperm.xlu0 %2344, %v2205
        %v2346 = vpop.permute.xlu0 %2345
        %2349 = vset.pattern.permute.xlu0 0
        %2350 = vperm.xlu0 %2349, %v2206
        %v2351 = vpop.permute.xlu0 %2350
        %2354 = vset.pattern.permute.xlu0 0
        %2355 = vperm.xlu0 %2354, %v2207
        %v2356 = vpop.permute.xlu0 %2355
        %2359 = vset.pattern.permute.xlu0 0
        %2360 = vperm.xlu0 %2359, %v2208
        %v2361 = vpop.permute.xlu0 %2360
        %2364 = vset.pattern.permute.xlu0 0
        %2365 = vperm.xlu0 %2364, %v2209
        %v2366 = vpop.permute.xlu0 %2365
        %2369 = vset.pattern.permute.xlu0 0
        %2370 = vperm.xlu0 %2369, %v2210
        %v2371 = vpop.permute.xlu0 %2370
        %v2374 = vlaneseq
        %v2375 = vshrl.u32 %v2374, 7
        %v2376 = vsub.s32 0, %v2375
        %v2377 = vrot.slane %v2212, %v2376
        %v2379 = vmul.f32 %v2216, %v2377
        %v2380 = vmul.f32 %v2221, %v2377
        %v2381 = vmul.f32 %v2226, %v2377
        %v2382 = vmul.f32 %v2231, %v2377
        %v2383 = vmul.f32 %v2236, %v2377
        %v2384 = vmul.f32 %v2241, %v2377
        %v2385 = vmul.f32 %v2246, %v2377
        %v2386 = vmul.f32 %v2251, %v2377
        %v2387 = vmul.f32 %v2256, %v2377
        %v2388 = vmul.f32 %v2261, %v2377
        %v2389 = vmul.f32 %v2266, %v2377
        %v2390 = vmul.f32 %v2271, %v2377
        %v2391 = vmul.f32 %v2276, %v2377
        %v2392 = vmul.f32 %v2281, %v2377
        %v2393 = vmul.f32 %v2286, %v2377
        %v2394 = vmul.f32 %v2291, %v2377
        %v2395 = vmul.f32 %v2296, %v2377
        %v2396 = vmul.f32 %v2301, %v2377
        %v2397 = vmul.f32 %v2306, %v2377
        %v2398 = vmul.f32 %v2311, %v2377
        %v2399 = vmul.f32 %v2316, %v2377
        %v2400 = vmul.f32 %v2321, %v2377
        %v2401 = vmul.f32 %v2326, %v2377
        %v2402 = vmul.f32 %v2331, %v2377
        %v2403 = vmul.f32 %v2336, %v2377
        %v2404 = vmul.f32 %v2341, %v2377
        %v2405 = vmul.f32 %v2346, %v2377
        %v2406 = vmul.f32 %v2351, %v2377
        %v2407 = vmul.f32 %v2356, %v2377
        %v2408 = vmul.f32 %v2361, %v2377
        %v2409 = vmul.f32 %v2366, %v2377
        %v2410 = vmul.f32 %v2371, %v2377
        %v2411 = vadd.f32 %v2147, %v2379
        %v2412 = vadd.f32 %v2148, %v2380
        %v2413 = vadd.f32 %v2149, %v2381
        %v2414 = vadd.f32 %v2150, %v2382
        %v2415 = vadd.f32 %v2151, %v2383
        %v2416 = vadd.f32 %v2152, %v2384
        %v2417 = vadd.f32 %v2153, %v2385
        %v2418 = vadd.f32 %v2154, %v2386
        %v2419 = vadd.f32 %v2155, %v2387
        %v2420 = vadd.f32 %v2156, %v2388
        %v2421 = vadd.f32 %v2157, %v2389
        %v2422 = vadd.f32 %v2158, %v2390
        %v2423 = vadd.f32 %v2159, %v2391
        %v2424 = vadd.f32 %v2160, %v2392
        %v2425 = vadd.f32 %v2161, %v2393
        %v2426 = vadd.f32 %v2162, %v2394
        %v2427 = vadd.f32 %v2163, %v2395
        %v2428 = vadd.f32 %v2164, %v2396
        %v2429 = vadd.f32 %v2165, %v2397
        %v2430 = vadd.f32 %v2166, %v2398
        %v2431 = vadd.f32 %v2167, %v2399
        %v2432 = vadd.f32 %v2168, %v2400
        %v2433 = vadd.f32 %v2169, %v2401
        %v2434 = vadd.f32 %v2170, %v2402
        %v2435 = vadd.f32 %v2171, %v2403
        %v2436 = vadd.f32 %v2172, %v2404
        %v2437 = vadd.f32 %v2173, %v2405
        %v2438 = vadd.f32 %v2174, %v2406
        %v2439 = vadd.f32 %v2175, %v2407
        %v2440 = vadd.f32 %v2176, %v2408
        %v2441 = vadd.f32 %v2177, %v2409
        %v2442 = vadd.f32 %v2178, %v2410
        %v2443 = vld [vmem:[%s1914 + $0x2] sm:$0xff]
        %v2444 = vld [vmem:[%s1914 + $0xa] sm:$0xff]
        %v2445 = vld [vmem:[%s1914 + $0x1a] sm:$0xff]
        %v2446 = vld [vmem:[%s1914 + $0x22] sm:$0xff]
        %v2447 = vld [vmem:[%s1914 + $0x32] sm:$0xff]
        %v2448 = vld [vmem:[%s1914 + $0x3a] sm:$0xff]
        %v2449 = vld [vmem:[%s1914 + $0x4a] sm:$0xff]
        %v2450 = vld [vmem:[%s1914 + $0x52] sm:$0xff]
        %v2451 = vld [vmem:[%s1914 + $0x62] sm:$0xff]
        %v2452 = vld [vmem:[%s1914 + $0x6a] sm:$0xff]
        %v2453 = vld [vmem:[%s1914 + $0x7a] sm:$0xff]
        %v2454 = vld [vmem:[%s1914 + $0x82] sm:$0xff]
        %v2455 = vld [vmem:[%s1914 + $0x92] sm:$0xff]
        %v2456 = vld [vmem:[%s1914 + $0x9a] sm:$0xff]
        %v2457 = vld [vmem:[%s1914 + $0xaa] sm:$0xff]
        %v2458 = vld [vmem:[%s1914 + $0xb2] sm:$0xff]
        %v2459 = vld [vmem:[%s1914 + $0xc2] sm:$0xff]
        %v2460 = vld [vmem:[%s1914 + $0xca] sm:$0xff]
        %v2461 = vld [vmem:[%s1914 + $0xda] sm:$0xff]
        %v2462 = vld [vmem:[%s1914 + $0xe2] sm:$0xff]
        %v2463 = vld [vmem:[%s1914 + $0xf2] sm:$0xff]
        %v2464 = vld [vmem:[%s1914 + $0xfa] sm:$0xff]
        %v2465 = vld [vmem:[%s1914 + $0x10a] sm:$0xff]
        %v2466 = vld [vmem:[%s1914 + $0x112] sm:$0xff]
        %v2467 = vld [vmem:[%s1914 + $0x122] sm:$0xff]
        %v2468 = vld [vmem:[%s1914 + $0x12a] sm:$0xff]
        %v2469 = vld [vmem:[%s1914 + $0x13a] sm:$0xff]
        %v2470 = vld [vmem:[%s1914 + $0x142] sm:$0xff]
        %v2471 = vld [vmem:[%s1914 + $0x152] sm:$0xff]
        %v2472 = vld [vmem:[%s1914 + $0x15a] sm:$0xff]
        %v2473 = vld [vmem:[%s1914 + $0x16a] sm:$0xff]
        %v2474 = vld [vmem:[%s1914 + $0x172] sm:$0xff]
        %s2475 = scalar_lea.vmem %s1, 8
        %v2476 = vld [vmem:[%s2475] sm:$0x1]
        %2478 = vset.pattern.permute.xlu0 0
        %2479 = vperm.xlu0 %2478, %v2443
        %v2480 = vpop.permute.xlu0 %2479
        %2483 = vset.pattern.permute.xlu0 0
        %2484 = vperm.xlu0 %2483, %v2444
        %v2485 = vpop.permute.xlu0 %2484
        %2488 = vset.pattern.permute.xlu0 0
        %2489 = vperm.xlu0 %2488, %v2445
        %v2490 = vpop.permute.xlu0 %2489
        %2493 = vset.pattern.permute.xlu0 0
        %2494 = vperm.xlu0 %2493, %v2446
        %v2495 = vpop.permute.xlu0 %2494
        %2498 = vset.pattern.permute.xlu0 0
        %2499 = vperm.xlu0 %2498, %v2447
        %v2500 = vpop.permute.xlu0 %2499
        %2503 = vset.pattern.permute.xlu0 0
        %2504 = vperm.xlu0 %2503, %v2448
        %v2505 = vpop.permute.xlu0 %2504
        %2508 = vset.pattern.permute.xlu0 0
        %2509 = vperm.xlu0 %2508, %v2449
        %v2510 = vpop.permute.xlu0 %2509
        %2513 = vset.pattern.permute.xlu0 0
        %2514 = vperm.xlu0 %2513, %v2450
        %v2515 = vpop.permute.xlu0 %2514
        %2518 = vset.pattern.permute.xlu0 0
        %2519 = vperm.xlu0 %2518, %v2451
        %v2520 = vpop.permute.xlu0 %2519
        %2523 = vset.pattern.permute.xlu0 0
        %2524 = vperm.xlu0 %2523, %v2452
        %v2525 = vpop.permute.xlu0 %2524
        %2528 = vset.pattern.permute.xlu0 0
        %2529 = vperm.xlu0 %2528, %v2453
        %v2530 = vpop.permute.xlu0 %2529
        %2533 = vset.pattern.permute.xlu0 0
        %2534 = vperm.xlu0 %2533, %v2454
        %v2535 = vpop.permute.xlu0 %2534
        %2538 = vset.pattern.permute.xlu0 0
        %2539 = vperm.xlu0 %2538, %v2455
        %v2540 = vpop.permute.xlu0 %2539
        %2543 = vset.pattern.permute.xlu0 0
        %2544 = vperm.xlu0 %2543, %v2456
        %v2545 = vpop.permute.xlu0 %2544
        %2548 = vset.pattern.permute.xlu0 0
        %2549 = vperm.xlu0 %2548, %v2457
        %v2550 = vpop.permute.xlu0 %2549
        %2553 = vset.pattern.permute.xlu0 0
        %2554 = vperm.xlu0 %2553, %v2458
        %v2555 = vpop.permute.xlu0 %2554
        %2558 = vset.pattern.permute.xlu0 0
        %2559 = vperm.xlu0 %2558, %v2459
        %v2560 = vpop.permute.xlu0 %2559
        %2563 = vset.pattern.permute.xlu0 0
        %2564 = vperm.xlu0 %2563, %v2460
        %v2565 = vpop.permute.xlu0 %2564
        %2568 = vset.pattern.permute.xlu0 0
        %2569 = vperm.xlu0 %2568, %v2461
        %v2570 = vpop.permute.xlu0 %2569
        %2573 = vset.pattern.permute.xlu0 0
        %2574 = vperm.xlu0 %2573, %v2462
        %v2575 = vpop.permute.xlu0 %2574
        %2578 = vset.pattern.permute.xlu0 0
        %2579 = vperm.xlu0 %2578, %v2463
        %v2580 = vpop.permute.xlu0 %2579
        %2583 = vset.pattern.permute.xlu0 0
        %2584 = vperm.xlu0 %2583, %v2464
        %v2585 = vpop.permute.xlu0 %2584
        %2588 = vset.pattern.permute.xlu0 0
        %2589 = vperm.xlu0 %2588, %v2465
        %v2590 = vpop.permute.xlu0 %2589
        %2593 = vset.pattern.permute.xlu0 0
        %2594 = vperm.xlu0 %2593, %v2466
        %v2595 = vpop.permute.xlu0 %2594
        %2598 = vset.pattern.permute.xlu0 0
        %2599 = vperm.xlu0 %2598, %v2467
        %v2600 = vpop.permute.xlu0 %2599
        %2603 = vset.pattern.permute.xlu0 0
        %2604 = vperm.xlu0 %2603, %v2468
        %v2605 = vpop.permute.xlu0 %2604
        %2608 = vset.pattern.permute.xlu0 0
        %2609 = vperm.xlu0 %2608, %v2469
        %v2610 = vpop.permute.xlu0 %2609
        %2613 = vset.pattern.permute.xlu0 0
        %2614 = vperm.xlu0 %2613, %v2470
        %v2615 = vpop.permute.xlu0 %2614
        %2618 = vset.pattern.permute.xlu0 0
        %2619 = vperm.xlu0 %2618, %v2471
        %v2620 = vpop.permute.xlu0 %2619
        %2623 = vset.pattern.permute.xlu0 0
        %2624 = vperm.xlu0 %2623, %v2472
        %v2625 = vpop.permute.xlu0 %2624
        %2628 = vset.pattern.permute.xlu0 0
        %2629 = vperm.xlu0 %2628, %v2473
        %v2630 = vpop.permute.xlu0 %2629
        %2633 = vset.pattern.permute.xlu0 0
        %2634 = vperm.xlu0 %2633, %v2474
        %v2635 = vpop.permute.xlu0 %2634
        %v2638 = vlaneseq
        %v2639 = vshrl.u32 %v2638, 7
        %v2640 = vsub.s32 0, %v2639
        %v2641 = vrot.slane %v2476, %v2640
        %v2643 = vmul.f32 %v2480, %v2641
        %v2644 = vmul.f32 %v2485, %v2641
        %v2645 = vmul.f32 %v2490, %v2641
        %v2646 = vmul.f32 %v2495, %v2641
        %v2647 = vmul.f32 %v2500, %v2641
        %v2648 = vmul.f32 %v2505, %v2641
        %v2649 = vmul.f32 %v2510, %v2641
        %v2650 = vmul.f32 %v2515, %v2641
        %v2651 = vmul.f32 %v2520, %v2641
        %v2652 = vmul.f32 %v2525, %v2641
        %v2653 = vmul.f32 %v2530, %v2641
        %v2654 = vmul.f32 %v2535, %v2641
        %v2655 = vmul.f32 %v2540, %v2641
        %v2656 = vmul.f32 %v2545, %v2641
        %v2657 = vmul.f32 %v2550, %v2641
        %v2658 = vmul.f32 %v2555, %v2641
        %v2659 = vmul.f32 %v2560, %v2641
        %v2660 = vmul.f32 %v2565, %v2641
        %v2661 = vmul.f32 %v2570, %v2641
        %v2662 = vmul.f32 %v2575, %v2641
        %v2663 = vmul.f32 %v2580, %v2641
        %v2664 = vmul.f32 %v2585, %v2641
        %v2665 = vmul.f32 %v2590, %v2641
        %v2666 = vmul.f32 %v2595, %v2641
        %v2667 = vmul.f32 %v2600, %v2641
        %v2668 = vmul.f32 %v2605, %v2641
        %v2669 = vmul.f32 %v2610, %v2641
        %v2670 = vmul.f32 %v2615, %v2641
        %v2671 = vmul.f32 %v2620, %v2641
        %v2672 = vmul.f32 %v2625, %v2641
        %v2673 = vmul.f32 %v2630, %v2641
        %v2674 = vmul.f32 %v2635, %v2641
        %v2675 = vadd.f32 %v2411, %v2643
        %v2676 = vadd.f32 %v2412, %v2644
        %v2677 = vadd.f32 %v2413, %v2645
        %v2678 = vadd.f32 %v2414, %v2646
        %v2679 = vadd.f32 %v2415, %v2647
        %v2680 = vadd.f32 %v2416, %v2648
        %v2681 = vadd.f32 %v2417, %v2649
        %v2682 = vadd.f32 %v2418, %v2650
        %v2683 = vadd.f32 %v2419, %v2651
        %v2684 = vadd.f32 %v2420, %v2652
        %v2685 = vadd.f32 %v2421, %v2653
        %v2686 = vadd.f32 %v2422, %v2654
        %v2687 = vadd.f32 %v2423, %v2655
        %v2688 = vadd.f32 %v2424, %v2656
        %v2689 = vadd.f32 %v2425, %v2657
        %v2690 = vadd.f32 %v2426, %v2658
        %v2691 = vadd.f32 %v2427, %v2659
        %v2692 = vadd.f32 %v2428, %v2660
        %v2693 = vadd.f32 %v2429, %v2661
        %v2694 = vadd.f32 %v2430, %v2662
        %v2695 = vadd.f32 %v2431, %v2663
        %v2696 = vadd.f32 %v2432, %v2664
        %v2697 = vadd.f32 %v2433, %v2665
        %v2698 = vadd.f32 %v2434, %v2666
        %v2699 = vadd.f32 %v2435, %v2667
        %v2700 = vadd.f32 %v2436, %v2668
        %v2701 = vadd.f32 %v2437, %v2669
        %v2702 = vadd.f32 %v2438, %v2670
        %v2703 = vadd.f32 %v2439, %v2671
        %v2704 = vadd.f32 %v2440, %v2672
        %v2705 = vadd.f32 %v2441, %v2673
        %v2706 = vadd.f32 %v2442, %v2674
        %v2707 = vld [vmem:[%s2] sm:$0x1]
        %v2709 = vlaneseq
        %v2710 = vshrl.u32 %v2709, 7
        %v2711 = vsub.s32 0, %v2710
        %v2712 = vrot.slane %v2707, %v2711
        %v2714 = vadd.f32 %v2675, %v2712
        %v2715 = vadd.f32 %v2676, %v2712
        %v2716 = vadd.f32 %v2677, %v2712
        %v2717 = vadd.f32 %v2678, %v2712
        %v2718 = vadd.f32 %v2679, %v2712
        %v2719 = vadd.f32 %v2680, %v2712
        %v2720 = vadd.f32 %v2681, %v2712
        %v2721 = vadd.f32 %v2682, %v2712
        %v2722 = vadd.f32 %v2683, %v2712
        %v2723 = vadd.f32 %v2684, %v2712
        %v2724 = vadd.f32 %v2685, %v2712
        %v2725 = vadd.f32 %v2686, %v2712
        %v2726 = vadd.f32 %v2687, %v2712
        %v2727 = vadd.f32 %v2688, %v2712
        %v2728 = vadd.f32 %v2689, %v2712
        %v2729 = vadd.f32 %v2690, %v2712
        %v2730 = vadd.f32 %v2691, %v2712
        %v2731 = vadd.f32 %v2692, %v2712
        %v2732 = vadd.f32 %v2693, %v2712
        %v2733 = vadd.f32 %v2694, %v2712
        %v2734 = vadd.f32 %v2695, %v2712
        %v2735 = vadd.f32 %v2696, %v2712
        %v2736 = vadd.f32 %v2697, %v2712
        %v2737 = vadd.f32 %v2698, %v2712
        %v2738 = vadd.f32 %v2699, %v2712
        %v2739 = vadd.f32 %v2700, %v2712
        %v2740 = vadd.f32 %v2701, %v2712
        %v2741 = vadd.f32 %v2702, %v2712
        %v2742 = vadd.f32 %v2703, %v2712
        %v2743 = vadd.f32 %v2704, %v2712
        %v2744 = vadd.f32 %v2705, %v2712
        %v2745 = vadd.f32 %v2706, %v2712
        %v2746 = vmax.f32 %v2714, 0.0
        %v2747 = vmax.f32 %v2715, 0.0
        %v2748 = vmax.f32 %v2716, 0.0
        %v2749 = vmax.f32 %v2717, 0.0
        %v2750 = vmax.f32 %v2718, 0.0
        %v2751 = vmax.f32 %v2719, 0.0
        %v2752 = vmax.f32 %v2720, 0.0
        %v2753 = vmax.f32 %v2721, 0.0
        %v2754 = vmax.f32 %v2722, 0.0
        %v2755 = vmax.f32 %v2723, 0.0
        %v2756 = vmax.f32 %v2724, 0.0
        %v2757 = vmax.f32 %v2725, 0.0
        %v2758 = vmax.f32 %v2726, 0.0
        %v2759 = vmax.f32 %v2727, 0.0
        %v2760 = vmax.f32 %v2728, 0.0
        %v2761 = vmax.f32 %v2729, 0.0
        %v2762 = vmax.f32 %v2730, 0.0
        %v2763 = vmax.f32 %v2731, 0.0
        %v2764 = vmax.f32 %v2732, 0.0
        %v2765 = vmax.f32 %v2733, 0.0
        %v2766 = vmax.f32 %v2734, 0.0
        %v2767 = vmax.f32 %v2735, 0.0
        %v2768 = vmax.f32 %v2736, 0.0
        %v2769 = vmax.f32 %v2737, 0.0
        %v2770 = vmax.f32 %v2738, 0.0
        %v2771 = vmax.f32 %v2739, 0.0
        %v2772 = vmax.f32 %v2740, 0.0
        %v2773 = vmax.f32 %v2741, 0.0
        %v2774 = vmax.f32 %v2742, 0.0
        %v2775 = vmax.f32 %v2743, 0.0
        %v2776 = vmax.f32 %v2744, 0.0
        %v2777 = vmax.f32 %v2745, 0.0
        %2778 = vst [vmem:[#allocation2] sm:$0xff] %v2746
        %2779 = vst [vmem:[#allocation2 + $0x8] sm:$0xff] %v2747
        %2780 = vst [vmem:[#allocation2 + $0x10] sm:$0xff] %v2748
        %2781 = vst [vmem:[#allocation2 + $0x18] sm:$0xff] %v2749
        %2782 = vst [vmem:[#allocation2 + $0x20] sm:$0xff] %v2750
        %2783 = vst [vmem:[#allocation2 + $0x28] sm:$0xff] %v2751
        %2784 = vst [vmem:[#allocation2 + $0x30] sm:$0xff] %v2752
        %2785 = vst [vmem:[#allocation2 + $0x38] sm:$0xff] %v2753
        %2786 = vst [vmem:[#allocation2 + $0x40] sm:$0xff] %v2754
        %2787 = vst [vmem:[#allocation2 + $0x48] sm:$0xff] %v2755
        %2788 = vst [vmem:[#allocation2 + $0x50] sm:$0xff] %v2756
        %2789 = vst [vmem:[#allocation2 + $0x58] sm:$0xff] %v2757
        %2790 = vst [vmem:[#allocation2 + $0x60] sm:$0xff] %v2758
        %2791 = vst [vmem:[#allocation2 + $0x68] sm:$0xff] %v2759
        %2792 = vst [vmem:[#allocation2 + $0x70] sm:$0xff] %v2760
        %2793 = vst [vmem:[#allocation2 + $0x78] sm:$0xff] %v2761
        %2794 = vst [vmem:[#allocation2 + $0x80] sm:$0xff] %v2762
        %2795 = vst [vmem:[#allocation2 + $0x88] sm:$0xff] %v2763
        %2796 = vst [vmem:[#allocation2 + $0x90] sm:$0xff] %v2764
        %2797 = vst [vmem:[#allocation2 + $0x98] sm:$0xff] %v2765
        %2798 = vst [vmem:[#allocation2 + $0xa0] sm:$0xff] %v2766
        %2799 = vst [vmem:[#allocation2 + $0xa8] sm:$0xff] %v2767
        %2800 = vst [vmem:[#allocation2 + $0xb0] sm:$0xff] %v2768
        %2801 = vst [vmem:[#allocation2 + $0xb8] sm:$0xff] %v2769
        %2802 = vst [vmem:[#allocation2 + $0xc0] sm:$0xff] %v2770
        %2803 = vst [vmem:[#allocation2 + $0xc8] sm:$0xff] %v2771
        %2804 = vst [vmem:[#allocation2 + $0xd0] sm:$0xff] %v2772
        %2805 = vst [vmem:[#allocation2 + $0xd8] sm:$0xff] %v2773
        %2806 = vst [vmem:[#allocation2 + $0xe0] sm:$0xff] %v2774
        %2807 = vst [vmem:[#allocation2 + $0xe8] sm:$0xff] %v2775
        %2808 = vst [vmem:[#allocation2 + $0xf0] sm:$0xff] %v2776
        %2809 = vst [vmem:[#allocation2 + $0xf8] sm:$0xff] %v2777
        %v2810 = vld [vmem:[#allocation2] sm:$0xff]
        %v2811 = vld [vmem:[#allocation2 + $0x8] sm:$0xff]
        %v2812 = vld [vmem:[#allocation2 + $0x20] sm:$0xff]
        %v2813 = vld [vmem:[#allocation2 + $0x28] sm:$0xff]
        %v2814 = vld [vmem:[#allocation2 + $0x40] sm:$0xff]
        %v2815 = vld [vmem:[#allocation2 + $0x48] sm:$0xff]
        %v2816 = vld [vmem:[#allocation2 + $0x60] sm:$0xff]
        %v2817 = vld [vmem:[#allocation2 + $0x68] sm:$0xff]
        %v2818 = vld [vmem:[#allocation2 + $0x80] sm:$0xff]
        %v2819 = vld [vmem:[#allocation2 + $0x88] sm:$0xff]
        %v2820 = vld [vmem:[#allocation2 + $0xa0] sm:$0xff]
        %v2821 = vld [vmem:[#allocation2 + $0xa8] sm:$0xff]
        %v2822 = vld [vmem:[#allocation2 + $0xc0] sm:$0xff]
        %v2823 = vld [vmem:[#allocation2 + $0xc8] sm:$0xff]
        %v2824 = vld [vmem:[#allocation2 + $0xe0] sm:$0xff]
        %v2825 = vld [vmem:[#allocation2 + $0xe8] sm:$0xff]
        %s2826 = scalar_lea.vmem [#allocation2], 16
        %v2827 = vld [vmem:[%s2826] sm:$0xff]
        %v2828 = vld [vmem:[%s2826 + $0x8] sm:$0xff]
        %v2829 = vld [vmem:[%s2826 + $0x20] sm:$0xff]
        %v2830 = vld [vmem:[%s2826 + $0x28] sm:$0xff]
        %v2831 = vld [vmem:[%s2826 + $0x40] sm:$0xff]
        %v2832 = vld [vmem:[%s2826 + $0x48] sm:$0xff]
        %v2833 = vld [vmem:[%s2826 + $0x60] sm:$0xff]
        %v2834 = vld [vmem:[%s2826 + $0x68] sm:$0xff]
        %v2835 = vld [vmem:[%s2826 + $0x80] sm:$0xff]
        %v2836 = vld [vmem:[%s2826 + $0x88] sm:$0xff]
        %v2837 = vld [vmem:[%s2826 + $0xa0] sm:$0xff]
        %v2838 = vld [vmem:[%s2826 + $0xa8] sm:$0xff]
        %v2839 = vld [vmem:[%s2826 + $0xc0] sm:$0xff]
        %v2840 = vld [vmem:[%s2826 + $0xc8] sm:$0xff]
        %v2841 = vld [vmem:[%s2826 + $0xe0] sm:$0xff]
        %v2842 = vld [vmem:[%s2826 + $0xe8] sm:$0xff]
        %v2843 = vmax.f32 %v2810, %v2827
        %v2844 = vmax.f32 %v2811, %v2828
        %v2845 = vmax.f32 %v2812, %v2829
        %v2846 = vmax.f32 %v2813, %v2830
        %v2847 = vmax.f32 %v2814, %v2831
        %v2848 = vmax.f32 %v2815, %v2832
        %v2849 = vmax.f32 %v2816, %v2833
        %v2850 = vmax.f32 %v2817, %v2834
        %v2851 = vmax.f32 %v2818, %v2835
        %v2852 = vmax.f32 %v2819, %v2836
        %v2853 = vmax.f32 %v2820, %v2837
        %v2854 = vmax.f32 %v2821, %v2838
        %v2855 = vmax.f32 %v2822, %v2839
        %v2856 = vmax.f32 %v2823, %v2840
        %v2857 = vmax.f32 %v2824, %v2841
        %v2858 = vmax.f32 %v2825, %v2842
        %2859 = vst [vmem:[#allocation3] sm:$0xff] %v2843
        %2860 = vst [vmem:[#allocation3 + $0x8] sm:$0xff] %v2844
        %2861 = vst [vmem:[#allocation3 + $0x10] sm:$0xff] %v2845
        %2862 = vst [vmem:[#allocation3 + $0x18] sm:$0xff] %v2846
        %2863 = vst [vmem:[#allocation3 + $0x20] sm:$0xff] %v2847
        %2864 = vst [vmem:[#allocation3 + $0x28] sm:$0xff] %v2848
        %2865 = vst [vmem:[#allocation3 + $0x30] sm:$0xff] %v2849
        %2866 = vst [vmem:[#allocation3 + $0x38] sm:$0xff] %v2850
        %2867 = vst [vmem:[#allocation3 + $0x40] sm:$0xff] %v2851
        %2868 = vst [vmem:[#allocation3 + $0x48] sm:$0xff] %v2852
        %2869 = vst [vmem:[#allocation3 + $0x50] sm:$0xff] %v2853
        %2870 = vst [vmem:[#allocation3 + $0x58] sm:$0xff] %v2854
        %2871 = vst [vmem:[#allocation3 + $0x60] sm:$0xff] %v2855
        %2872 = vst [vmem:[#allocation3 + $0x68] sm:$0xff] %v2856
        %2873 = vst [vmem:[#allocation3 + $0x70] sm:$0xff] %v2857
        %2874 = vst [vmem:[#allocation3 + $0x78] sm:$0xff] %v2858
        %v2875 = vld [vmem:[#allocation3] ss:$2 sm:$0xff]
        %s2876 = scalar_lea.vmem [#allocation3], 16
        %v2877 = vld [vmem:[%s2876] ss:$2 sm:$0xff]
        %s2878 = scalar_lea.vmem [#allocation3], 32
        %v2879 = vld [vmem:[%s2878] ss:$2 sm:$0xff]
        %s2880 = scalar_lea.vmem [#allocation3], 48
        %v2881 = vld [vmem:[%s2880] ss:$2 sm:$0xff]
        %s2882 = scalar_lea.vmem [#allocation3], 64
        %v2883 = vld [vmem:[%s2882] ss:$2 sm:$0xff]
        %s2884 = scalar_lea.vmem [#allocation3], 80
        %v2885 = vld [vmem:[%s2884] ss:$2 sm:$0xff]
        %s2886 = scalar_lea.vmem [#allocation3], 96
        %v2887 = vld [vmem:[%s2886] ss:$2 sm:$0xff]
        %s2888 = scalar_lea.vmem [#allocation3], 112
        %v2889 = vld [vmem:[%s2888] ss:$2 sm:$0xff]
        %s2890 = scalar_lea.vmem [#allocation3], 1
        %v2891 = vld [vmem:[%s2890] ss:$2 sm:$0xff]
        %s2892 = scalar_lea.vmem [#allocation3], 17
        %v2893 = vld [vmem:[%s2892] ss:$2 sm:$0xff]
        %s2894 = scalar_lea.vmem [#allocation3], 33
        %v2895 = vld [vmem:[%s2894] ss:$2 sm:$0xff]
        %s2896 = scalar_lea.vmem [#allocation3], 49
        %v2897 = vld [vmem:[%s2896] ss:$2 sm:$0xff]
        %s2898 = scalar_lea.vmem [#allocation3], 65
        %v2899 = vld [vmem:[%s2898] ss:$2 sm:$0xff]
        %s2900 = scalar_lea.vmem [#allocation3], 81
        %v2901 = vld [vmem:[%s2900] ss:$2 sm:$0xff]
        %s2902 = scalar_lea.vmem [#allocation3], 97
        %v2903 = vld [vmem:[%s2902] ss:$2 sm:$0xff]
        %s2904 = scalar_lea.vmem [#allocation3], 113
        %v2905 = vld [vmem:[%s2904] ss:$2 sm:$0xff]
        %v2906 = vmax.f32 %v2875, %v2891
        %v2907 = vmax.f32 %v2877, %v2893
        %v2908 = vmax.f32 %v2879, %v2895
        %v2909 = vmax.f32 %v2881, %v2897
        %v2910 = vmax.f32 %v2883, %v2899
        %v2911 = vmax.f32 %v2885, %v2901
        %v2912 = vmax.f32 %v2887, %v2903
        %v2913 = vmax.f32 %v2889, %v2905
        %2914 = vst [vmem:[#allocation4] sm:$0xff] 0.0
        %2915 = vst [vmem:[#allocation4 + $0x8] sm:$0xff] 0.0
        %2916 = vst [vmem:[#allocation4 + $0x10] sm:$0x1] 0.0
        %2917 = vst [vmem:[#allocation4 + $0x18] sm:$0xff] 0.0
        %2918 = vst [vmem:[#allocation4 + $0x20] sm:$0xff] 0.0
        %2919 = vst [vmem:[#allocation4 + $0x28] sm:$0x1] 0.0
        %2920 = vst [vmem:[#allocation4 + $0x30] sm:$0xff] 0.0
        %2921 = vst [vmem:[#allocation4 + $0x38] sm:$0xff] 0.0
        %2922 = vst [vmem:[#allocation4 + $0x40] sm:$0x1] 0.0
        %2923 = vst [vmem:[#allocation4 + $0x48] sm:$0xff] 0.0
        %2924 = vst [vmem:[#allocation4 + $0x50] sm:$0xff] 0.0
        %2925 = vst [vmem:[#allocation4 + $0x58] sm:$0x1] 0.0
        %2926 = vst [vmem:[#allocation4 + $0x60] sm:$0xff] 0.0
        %2927 = vst [vmem:[#allocation4 + $0x68] sm:$0xff] 0.0
        %2928 = vst [vmem:[#allocation4 + $0x70] sm:$0x1] 0.0
        %2929 = vst [vmem:[#allocation4 + $0x78] sm:$0xff] 0.0
        %2930 = vst [vmem:[#allocation4 + $0x80] sm:$0xff] 0.0
        %2931 = vst [vmem:[#allocation4 + $0x88] sm:$0x1] 0.0
        %2932 = vst [vmem:[#allocation4 + $0x90] sm:$0xff] 0.0
        %2933 = vst [vmem:[#allocation4 + $0x98] sm:$0xff] 0.0
        %2934 = vst [vmem:[#allocation4 + $0xa0] sm:$0x1] 0.0
        %2935 = vst [vmem:[#allocation4 + $0xa8] sm:$0xff] 0.0
        %2936 = vst [vmem:[#allocation4 + $0xb0] sm:$0xff] 0.0
        %2937 = vst [vmem:[#allocation4 + $0xb8] sm:$0x1] 0.0
        %2938 = vst [vmem:[#allocation4 + $0xc0] sm:$0xff] 0.0
        %2939 = vst [vmem:[#allocation4 + $0xc8] sm:$0xff] 0.0
        %2940 = vst [vmem:[#allocation4 + $0xd0] sm:$0x1] 0.0
        %2941 = vst [vmem:[#allocation4 + $0xd8] sm:$0xff] 0.0
        %2942 = vst [vmem:[#allocation4 + $0xe0] sm:$0xff] 0.0
        %2943 = vst [vmem:[#allocation4 + $0xe8] sm:$0x1] 0.0
        %s2944 = scalar_lea.vmem [#allocation4], 24
        %2945 = vst [vmem:[%s2944 + $0x8] sm:$0xff] %v2906
        %2946 = vst [vmem:[%s2944 + $0x20] sm:$0xff] %v2907
        %2947 = vst [vmem:[%s2944 + $0x38] sm:$0xff] %v2908
        %2948 = vst [vmem:[%s2944 + $0x50] sm:$0xff] %v2909
        %2949 = vst [vmem:[%s2944 + $0x68] sm:$0xff] %v2910
        %2950 = vst [vmem:[%s2944 + $0x80] sm:$0xff] %v2911
        %2951 = vst [vmem:[%s2944 + $0x98] sm:$0xff] %v2912
        %2952 = vst [vmem:[%s2944 + $0xb0] sm:$0xff] %v2913
        %v2953 = vld [vmem:[#allocation4 + $0x7] sm:$0xff]
        %v2954 = vld [vmem:[#allocation4 + $0x1f] sm:$0xff]
        %v2955 = vld [vmem:[#allocation4 + $0x37] sm:$0xff]
        %v2956 = vld [vmem:[#allocation4 + $0x4f] sm:$0xff]
        %v2957 = vld [vmem:[#allocation4 + $0x67] sm:$0xff]
        %v2958 = vld [vmem:[#allocation4 + $0x7f] sm:$0xff]
        %v2959 = vld [vmem:[#allocation4 + $0x97] sm:$0xff]
        %v2960 = vld [vmem:[#allocation4 + $0xaf] sm:$0xff]
        %v2961 = vld [vmem:[%s3] sm:$0xff]
        %v2962 = vld [vmem:[%s3 + $0x8] sm:$0xff]
        %v2963 = vld [vmem:[%s3 + $0x10] sm:$0xff]
        %v2964 = vld [vmem:[%s3 + $0x18] sm:$0xff]
        %v2965 = vld [vmem:[%s3 + $0x20] sm:$0xff]
        %v2966 = vld [vmem:[%s3 + $0x28] sm:$0xff]
        %v2967 = vld [vmem:[%s3 + $0x30] sm:$0xff]
        %v2968 = vld [vmem:[%s3 + $0x38] sm:$0xff]
        %v2969 = vld [vmem:[%s3 + $0x40] sm:$0xff]
        %v2970 = vld [vmem:[%s3 + $0x48] sm:$0xff]
        %v2971 = vld [vmem:[%s3 + $0x50] sm:$0xff]
        %v2972 = vld [vmem:[%s3 + $0x58] sm:$0xff]
        %v2973 = vld [vmem:[%s3 + $0x60] sm:$0xff]
        %v2974 = vld [vmem:[%s3 + $0x68] sm:$0xff]
        %v2975 = vld [vmem:[%s3 + $0x70] sm:$0xff]
        %v2976 = vld [vmem:[%s3 + $0x78] sm:$0xff]
        %v2977 = vld [vmem:[#allocation4 + $0x8] sm:$0xff]
        %v2978 = vld [vmem:[#allocation4 + $0x20] sm:$0xff]
        %v2979 = vld [vmem:[#allocation4 + $0x38] sm:$0xff]
        %v2980 = vld [vmem:[#allocation4 + $0x50] sm:$0xff]
        %v2981 = vld [vmem:[#allocation4 + $0x68] sm:$0xff]
        %v2982 = vld [vmem:[#allocation4 + $0x80] sm:$0xff]
        %v2983 = vld [vmem:[#allocation4 + $0x98] sm:$0xff]
        %v2984 = vld [vmem:[#allocation4 + $0xb0] sm:$0xff]
        %s2985 = scalar_lea.vmem %s3, 128
        %v2986 = vld [vmem:[%s2985] sm:$0xff]
        %v2987 = vld [vmem:[%s2985 + $0x8] sm:$0xff]
        %v2988 = vld [vmem:[%s2985 + $0x10] sm:$0xff]
        %v2989 = vld [vmem:[%s2985 + $0x18] sm:$0xff]
        %v2990 = vld [vmem:[%s2985 + $0x20] sm:$0xff]
        %v2991 = vld [vmem:[%s2985 + $0x28] sm:$0xff]
        %v2992 = vld [vmem:[%s2985 + $0x30] sm:$0xff]
        %v2993 = vld [vmem:[%s2985 + $0x38] sm:$0xff]
        %v2994 = vld [vmem:[%s2985 + $0x40] sm:$0xff]
        %v2995 = vld [vmem:[%s2985 + $0x48] sm:$0xff]
        %v2996 = vld [vmem:[%s2985 + $0x50] sm:$0xff]
        %v2997 = vld [vmem:[%s2985 + $0x58] sm:$0xff]
        %v2998 = vld [vmem:[%s2985 + $0x60] sm:$0xff]
        %v2999 = vld [vmem:[%s2985 + $0x68] sm:$0xff]
        %v3000 = vld [vmem:[%s2985 + $0x70] sm:$0xff]
        %v3001 = vld [vmem:[%s2985 + $0x78] sm:$0xff]
        %3002 = vmatprep.subr.mxu0 0.0
        %3003 = vmatpush1.msra.mxu0 %v2986
        %3004 = vmatprep.subr.mxu0 0.0
        %3005 = vmatpush1.msra.mxu0 %v2987
        %3006 = vmatprep.subr.mxu0 0.0
        %3007 = vmatpush1.msra.mxu0 %v2988
        %3008 = vmatprep.subr.mxu0 0.0
        %3009 = vmatpush1.msra.mxu0 %v2989
        %3010 = vmatprep.subr.mxu0 0.0
        %3011 = vmatpush1.msra.mxu0 %v2990
        %3012 = vmatprep.subr.mxu0 0.0
        %3013 = vmatpush1.msra.mxu0 %v2991
        %3014 = vmatprep.subr.mxu0 0.0
        %3015 = vmatpush1.msra.mxu0 %v2992
        %3016 = vmatprep.subr.mxu0 0.0
        %3017 = vmatpush1.msra.mxu0 %v2993
        %3018 = vmatprep.subr.mxu0 0.0
        %3019 = vmatpush1.msra.mxu0 %v2994
        %3020 = vmatprep.subr.mxu0 0.0
        %3021 = vmatpush1.msra.mxu0 %v2995
        %3022 = vmatprep.subr.mxu0 0.0
        %3023 = vmatpush1.msra.mxu0 %v2996
        %3024 = vmatprep.subr.mxu0 0.0
        %3025 = vmatpush1.msra.mxu0 %v2997
        %3026 = vmatprep.subr.mxu0 0.0
        %3027 = vmatpush1.msra.mxu0 %v2998
        %3028 = vmatprep.subr.mxu0 0.0
        %3029 = vmatpush1.msra.mxu0 %v2999
        %3030 = vmatprep.subr.mxu0 0.0
        %3031 = vmatpush1.msra.mxu0 %v3000
        %3032 = vmatprep.subr.mxu0 0.0
        %3033 = vmatpush1.msra.mxu0 %v3001
        %3034 = vmatprep.subr.mxu0 0.0
        %3035 = vmatpush1.msra.mxu0 0.0
        %3036 = vmatprep.subr.mxu0 0.0
        %3037 = vmatpush1.msra.mxu0 0.0
        %3038 = vmatprep.subr.mxu0 0.0
        %3039 = vmatpush1.msra.mxu0 0.0
        %3040 = vmatprep.subr.mxu0 0.0
        %3041 = vmatpush1.msra.mxu0 0.0
        %3042 = vmatprep.subr.mxu0 0.0
        %3043 = vmatpush1.msra.mxu0 0.0
        %3044 = vmatprep.subr.mxu0 0.0
        %3045 = vmatpush1.msra.mxu0 0.0
        %3046 = vmatprep.subr.mxu0 0.0
        %3047 = vmatpush1.msra.mxu0 0.0
        %3048 = vmatprep.subr.mxu0 0.0
        %3049 = vmatpush1.msra.mxu0 0.0
        %3050 = vmatprep.subr.mxu0 0.0
        %3051 = vmatpush1.msra.mxu0 0.0
        %3052 = vmatprep.subr.mxu0 0.0
        %3053 = vmatpush1.msra.mxu0 0.0
        %3054 = vmatprep.subr.mxu0 0.0
        %3055 = vmatpush1.msra.mxu0 0.0
        %3056 = vmatprep.subr.mxu0 0.0
        %3057 = vmatpush1.msra.mxu0 0.0
        %3058 = vmatprep.subr.mxu0 0.0
        %3059 = vmatpush1.msra.mxu0 0.0
        %3060 = vmatprep.subr.mxu0 0.0
        %3061 = vmatpush1.msra.mxu0 0.0
        %3062 = vmatprep.subr.mxu0 0.0
        %3063 = vmatpush1.msra.mxu0 0.0
        %3064 = vmatprep.subr.mxu0 0.0
        %3065 = vmatpush1.msra.mxu0 0.0
        %3066 = vmatprep.mubr.f32.mxu0 0.0
        %3067 = vmatmul.mubr.f32.gmra.mrb[0].mxu0 %v2977
        %v3068 = vpop.f32.mrb[0].mxu0
        %v3069 = vadd.f32 0.0, %v3068
        %v3070 = vpop.f32.mrb[0].mxu0
        %3071 = vmatprep.mubr.f32.mxu0 0.0
        %3072 = vmatmul.mubr.f32.gmra.mrb[0].mxu0 %v2978
        %v3073 = vpop.f32.mrb[0].mxu0
        %v3074 = vadd.f32 0.0, %v3073
        %v3075 = vpop.f32.mrb[0].mxu0
        %3076 = vmatprep.mubr.f32.mxu0 0.0
        %3077 = vmatmul.mubr.f32.gmra.mrb[0].mxu0 %v2979
        %v3078 = vpop.f32.mrb[0].mxu0
        %v3079 = vadd.f32 0.0, %v3078
        %v3080 = vpop.f32.mrb[0].mxu0
        %3081 = vmatprep.mubr.f32.mxu0 0.0
        %3082 = vmatmul.mubr.f32.gmra.mrb[0].mxu0 %v2980
        %v3083 = vpop.f32.mrb[0].mxu0
        %v3084 = vadd.f32 0.0, %v3083
        %v3085 = vpop.f32.mrb[0].mxu0
        %3086 = vmatprep.mubr.f32.mxu0 0.0
        %3087 = vmatmul.mubr.f32.gmra.mrb[0].mxu0 %v2981
        %v3088 = vpop.f32.mrb[0].mxu0
        %v3089 = vadd.f32 0.0, %v3088
        %v3090 = vpop.f32.mrb[0].mxu0
        %3091 = vmatprep.mubr.f32.mxu0 0.0
        %3092 = vmatmul.mubr.f32.gmra.mrb[0].mxu0 %v2982
        %v3093 = vpop.f32.mrb[0].mxu0
        %v3094 = vadd.f32 0.0, %v3093
        %v3095 = vpop.f32.mrb[0].mxu0
        %3096 = vmatprep.mubr.f32.mxu0 0.0
        %3097 = vmatmul.mubr.f32.gmra.mrb[0].mxu0 %v2983
        %v3098 = vpop.f32.mrb[0].mxu0
        %v3099 = vadd.f32 0.0, %v3098
        %v3100 = vpop.f32.mrb[0].mxu0
        %3101 = vmatprep.mubr.f32.mxu0 0.0
        %3102 = vmatmul.mubr.f32.gmra.mrb[0].mxu0 %v2984
        %v3103 = vpop.f32.mrb[0].mxu0
        %v3104 = vadd.f32 0.0, %v3103
        %v3105 = vpop.f32.mrb[0].mxu0
        %3106 = vdwg.mxu0
        %3107 = vmatprep.subr.mxu0 0.0
        %3108 = vmatpush1.msra.mxu0 %v2961
        %3109 = vmatprep.subr.mxu0 0.0
        %3110 = vmatpush1.msra.mxu0 %v2962
        %3111 = vmatprep.subr.mxu0 0.0
        %3112 = vmatpush1.msra.mxu0 %v2963
        %3113 = vmatprep.subr.mxu0 0.0
        %3114 = vmatpush1.msra.mxu0 %v2964
        %3115 = vmatprep.subr.mxu0 0.0
        %3116 = vmatpush1.msra.mxu0 %v2965
        %3117 = vmatprep.subr.mxu0 0.0
        %3118 = vmatpush1.msra.mxu0 %v2966
        %3119 = vmatprep.subr.mxu0 0.0
        %3120 = vmatpush1.msra.mxu0 %v2967
        %3121 = vmatprep.subr.mxu0 0.0
        %3122 = vmatpush1.msra.mxu0 %v2968
        %3123 = vmatprep.subr.mxu0 0.0
        %3124 = vmatpush1.msra.mxu0 %v2969
        %3125 = vmatprep.subr.mxu0 0.0
        %3126 = vmatpush1.msra.mxu0 %v2970
        %3127 = vmatprep.subr.mxu0 0.0
        %3128 = vmatpush1.msra.mxu0 %v2971
        %3129 = vmatprep.subr.mxu0 0.0
        %3130 = vmatpush1.msra.mxu0 %v2972
        %3131 = vmatprep.subr.mxu0 0.0
        %3132 = vmatpush1.msra.mxu0 %v2973
        %3133 = vmatprep.subr.mxu0 0.0
        %3134 = vmatpush1.msra.mxu0 %v2974
        %3135 = vmatprep.subr.mxu0 0.0
        %3136 = vmatpush1.msra.mxu0 %v2975
        %3137 = vmatprep.subr.mxu0 0.0
        %3138 = vmatpush1.msra.mxu0 %v2976
        %3139 = vmatprep.subr.mxu0 0.0
        %3140 = vmatpush1.msra.mxu0 0.0
        %3141 = vmatprep.subr.mxu0 0.0
        %3142 = vmatpush1.msra.mxu0 0.0
        %3143 = vmatprep.subr.mxu0 0.0
        %3144 = vmatpush1.msra.mxu0 0.0
        %3145 = vmatprep.subr.mxu0 0.0
        %3146 = vmatpush1.msra.mxu0 0.0
        %3147 = vmatprep.subr.mxu0 0.0
        %3148 = vmatpush1.msra.mxu0 0.0
        %3149 = vmatprep.subr.mxu0 0.0
        %3150 = vmatpush1.msra.mxu0 0.0
        %3151 = vmatprep.subr.mxu0 0.0
        %3152 = vmatpush1.msra.mxu0 0.0
        %3153 = vmatprep.subr.mxu0 0.0
        %3154 = vmatpush1.msra.mxu0 0.0
        %3155 = vmatprep.subr.mxu0 0.0
        %3156 = vmatpush1.msra.mxu0 0.0
        %3157 = vmatprep.subr.mxu0 0.0
        %3158 = vmatpush1.msra.mxu0 0.0
        %3159 = vmatprep.subr.mxu0 0.0
        %3160 = vmatpush1.msra.mxu0 0.0
        %3161 = vmatprep.subr.mxu0 0.0
        %3162 = vmatpush1.msra.mxu0 0.0
        %3163 = vmatprep.subr.mxu0 0.0
        %3164 = vmatpush1.msra.mxu0 0.0
        %3165 = vmatprep.subr.mxu0 0.0
        %3166 = vmatpush1.msra.mxu0 0.0
        %3167 = vmatprep.subr.mxu0 0.0
        %3168 = vmatpush1.msra.mxu0 0.0
        %3169 = vmatprep.subr.mxu0 0.0
        %3170 = vmatpush1.msra.mxu0 0.0
        %3171 = vmatprep.mubr.f32.mxu0 0.0
        %3172 = vmatmul.mubr.f32.gmra.mrb[0].mxu0 %v2953
        %v3173 = vpop.f32.mrb[0].mxu0
        %v3174 = vadd.f32 %v3069, %v3173
        %v3175 = vpop.f32.mrb[0].mxu0
        %3176 = vmatprep.mubr.f32.mxu0 0.0
        %3177 = vmatmul.mubr.f32.gmra.mrb[0].mxu0 %v2954
        %v3178 = vpop.f32.mrb[0].mxu0
        %v3179 = vadd.f32 %v3074, %v3178
        %v3180 = vpop.f32.mrb[0].mxu0
        %3181 = vmatprep.mubr.f32.mxu0 0.0
        %3182 = vmatmul.mubr.f32.gmra.mrb[0].mxu0 %v2955
        %v3183 = vpop.f32.mrb[0].mxu0
        %v3184 = vadd.f32 %v3079, %v3183
        %v3185 = vpop.f32.mrb[0].mxu0
        %3186 = vmatprep.mubr.f32.mxu0 0.0
        %3187 = vmatmul.mubr.f32.gmra.mrb[0].mxu0 %v2956
        %v3188 = vpop.f32.mrb[0].mxu0
        %v3189 = vadd.f32 %v3084, %v3188
        %v3190 = vpop.f32.mrb[0].mxu0
        %3191 = vmatprep.mubr.f32.mxu0 0.0
        %3192 = vmatmul.mubr.f32.gmra.mrb[0].mxu0 %v2957
        %v3193 = vpop.f32.mrb[0].mxu0
        %v3194 = vadd.f32 %v3089, %v3193
        %v3195 = vpop.f32.mrb[0].mxu0
        %3196 = vmatprep.mubr.f32.mxu0 0.0
        %3197 = vmatmul.mubr.f32.gmra.mrb[0].mxu0 %v2958
        %v3198 = vpop.f32.mrb[0].mxu0
        %v3199 = vadd.f32 %v3094, %v3198
        %v3200 = vpop.f32.mrb[0].mxu0
        %3201 = vmatprep.mubr.f32.mxu0 0.0
        %3202 = vmatmul.mubr.f32.gmra.mrb[0].mxu0 %v2959
        %v3203 = vpop.f32.mrb[0].mxu0
        %v3204 = vadd.f32 %v3099, %v3203
        %v3205 = vpop.f32.mrb[0].mxu0
        %3206 = vmatprep.mubr.f32.mxu0 0.0
        %3207 = vmatmul.mubr.f32.gmra.mrb[0].mxu0 %v2960
        %v3208 = vpop.f32.mrb[0].mxu0
        %v3209 = vadd.f32 %v3104, %v3208
        %v3210 = vpop.f32.mrb[0].mxu0
        %3211 = vdwg.mxu0
        %v3212 = vld [vmem:[#allocation4 + $0x9] sm:$0xff]
        %v3213 = vld [vmem:[#allocation4 + $0x21] sm:$0xff]
        %v3214 = vld [vmem:[#allocation4 + $0x39] sm:$0xff]
        %v3215 = vld [vmem:[#allocation4 + $0x51] sm:$0xff]
        %v3216 = vld [vmem:[#allocation4 + $0x69] sm:$0xff]
        %v3217 = vld [vmem:[#allocation4 + $0x81] sm:$0xff]
        %v3218 = vld [vmem:[#allocation4 + $0x99] sm:$0xff]
        %v3219 = vld [vmem:[#allocation4 + $0xb1] sm:$0xff]
        %s3220 = scalar_lea.vmem %s3, 256
        %v3221 = vld [vmem:[%s3220] sm:$0xff]
        %v3222 = vld [vmem:[%s3220 + $0x8] sm:$0xff]
        %v3223 = vld [vmem:[%s3220 + $0x10] sm:$0xff]
        %v3224 = vld [vmem:[%s3220 + $0x18] sm:$0xff]
        %v3225 = vld [vmem:[%s3220 + $0x20] sm:$0xff]
        %v3226 = vld [vmem:[%s3220 + $0x28] sm:$0xff]
        %v3227 = vld [vmem:[%s3220 + $0x30] sm:$0xff]
        %v3228 = vld [vmem:[%s3220 + $0x38] sm:$0xff]
        %v3229 = vld [vmem:[%s3220 + $0x40] sm:$0xff]
        %v3230 = vld [vmem:[%s3220 + $0x48] sm:$0xff]
        %v3231 = vld [vmem:[%s3220 + $0x50] sm:$0xff]
        %v3232 = vld [vmem:[%s3220 + $0x58] sm:$0xff]
        %v3233 = vld [vmem:[%s3220 + $0x60] sm:$0xff]
        %v3234 = vld [vmem:[%s3220 + $0x68] sm:$0xff]
        %v3235 = vld [vmem:[%s3220 + $0x70] sm:$0xff]
        %v3236 = vld [vmem:[%s3220 + $0x78] sm:$0xff]
        %3237 = vmatprep.subr.mxu0 0.0
        %3238 = vmatpush1.msra.mxu0 %v3221
        %3239 = vmatprep.subr.mxu0 0.0
        %3240 = vmatpush1.msra.mxu0 %v3222
        %3241 = vmatprep.subr.mxu0 0.0
        %3242 = vmatpush1.msra.mxu0 %v3223
        %3243 = vmatprep.subr.mxu0 0.0
        %3244 = vmatpush1.msra.mxu0 %v3224
        %3245 = vmatprep.subr.mxu0 0.0
        %3246 = vmatpush1.msra.mxu0 %v3225
        %3247 = vmatprep.subr.mxu0 0.0
        %3248 = vmatpush1.msra.mxu0 %v3226
        %3249 = vmatprep.subr.mxu0 0.0
        %3250 = vmatpush1.msra.mxu0 %v3227
        %3251 = vmatprep.subr.mxu0 0.0
        %3252 = vmatpush1.msra.mxu0 %v3228
        %3253 = vmatprep.subr.mxu0 0.0
        %3254 = vmatpush1.msra.mxu0 %v3229
        %3255 = vmatprep.subr.mxu0 0.0
        %3256 = vmatpush1.msra.mxu0 %v3230
        %3257 = vmatprep.subr.mxu0 0.0
        %3258 = vmatpush1.msra.mxu0 %v3231
        %3259 = vmatprep.subr.mxu0 0.0
        %3260 = vmatpush1.msra.mxu0 %v3232
        %3261 = vmatprep.subr.mxu0 0.0
        %3262 = vmatpush1.msra.mxu0 %v3233
        %3263 = vmatprep.subr.mxu0 0.0
        %3264 = vmatpush1.msra.mxu0 %v3234
        %3265 = vmatprep.subr.mxu0 0.0
        %3266 = vmatpush1.msra.mxu0 %v3235
        %3267 = vmatprep.subr.mxu0 0.0
        %3268 = vmatpush1.msra.mxu0 %v3236
        %3269 = vmatprep.subr.mxu0 0.0
        %3270 = vmatpush1.msra.mxu0 0.0
        %3271 = vmatprep.subr.mxu0 0.0
        %3272 = vmatpush1.msra.mxu0 0.0
        %3273 = vmatprep.subr.mxu0 0.0
        %3274 = vmatpush1.msra.mxu0 0.0
        %3275 = vmatprep.subr.mxu0 0.0
        %3276 = vmatpush1.msra.mxu0 0.0
        %3277 = vmatprep.subr.mxu0 0.0
        %3278 = vmatpush1.msra.mxu0 0.0
        %3279 = vmatprep.subr.mxu0 0.0
        %3280 = vmatpush1.msra.mxu0 0.0
        %3281 = vmatprep.subr.mxu0 0.0
        %3282 = vmatpush1.msra.mxu0 0.0
        %3283 = vmatprep.subr.mxu0 0.0
        %3284 = vmatpush1.msra.mxu0 0.0
        %3285 = vmatprep.subr.mxu0 0.0
        %3286 = vmatpush1.msra.mxu0 0.0
        %3287 = vmatprep.subr.mxu0 0.0
        %3288 = vmatpush1.msra.mxu0 0.0
        %3289 = vmatprep.subr.mxu0 0.0
        %3290 = vmatpush1.msra.mxu0 0.0
        %3291 = vmatprep.subr.mxu0 0.0
        %3292 = vmatpush1.msra.mxu0 0.0
        %3293 = vmatprep.subr.mxu0 0.0
        %3294 = vmatpush1.msra.mxu0 0.0
        %3295 = vmatprep.subr.mxu0 0.0
        %3296 = vmatpush1.msra.mxu0 0.0
        %3297 = vmatprep.subr.mxu0 0.0
        %3298 = vmatpush1.msra.mxu0 0.0
        %3299 = vmatprep.subr.mxu0 0.0
        %3300 = vmatpush1.msra.mxu0 0.0
        %3301 = vmatprep.mubr.f32.mxu0 0.0
        %3302 = vmatmul.mubr.f32.gmra.mrb[0].mxu0 %v3212
        %v3303 = vpop.f32.mrb[0].mxu0
        %v3304 = vadd.f32 0.0, %v3303
        %v3305 = vpop.f32.mrb[0].mxu0
        %3306 = vmatprep.mubr.f32.mxu0 0.0
        %3307 = vmatmul.mubr.f32.gmra.mrb[0].mxu0 %v3213
        %v3308 = vpop.f32.mrb[0].mxu0
        %v3309 = vadd.f32 0.0, %v3308
        %v3310 = vpop.f32.mrb[0].mxu0
        %3311 = vmatprep.mubr.f32.mxu0 0.0
        %3312 = vmatmul.mubr.f32.gmra.mrb[0].mxu0 %v3214
        %v3313 = vpop.f32.mrb[0].mxu0
        %v3314 = vadd.f32 0.0, %v3313
        %v3315 = vpop.f32.mrb[0].mxu0
        %3316 = vmatprep.mubr.f32.mxu0 0.0
        %3317 = vmatmul.mubr.f32.gmra.mrb[0].mxu0 %v3215
        %v3318 = vpop.f32.mrb[0].mxu0
        %v3319 = vadd.f32 0.0, %v3318
        %v3320 = vpop.f32.mrb[0].mxu0
        %3321 = vmatprep.mubr.f32.mxu0 0.0
        %3322 = vmatmul.mubr.f32.gmra.mrb[0].mxu0 %v3216
        %v3323 = vpop.f32.mrb[0].mxu0
        %v3324 = vadd.f32 0.0, %v3323
        %v3325 = vpop.f32.mrb[0].mxu0
        %3326 = vmatprep.mubr.f32.mxu0 0.0
        %3327 = vmatmul.mubr.f32.gmra.mrb[0].mxu0 %v3217
        %v3328 = vpop.f32.mrb[0].mxu0
        %v3329 = vadd.f32 0.0, %v3328
        %v3330 = vpop.f32.mrb[0].mxu0
        %3331 = vmatprep.mubr.f32.mxu0 0.0
        %3332 = vmatmul.mubr.f32.gmra.mrb[0].mxu0 %v3218
        %v3333 = vpop.f32.mrb[0].mxu0
        %v3334 = vadd.f32 0.0, %v3333
        %v3335 = vpop.f32.mrb[0].mxu0
        %3336 = vmatprep.mubr.f32.mxu0 0.0
        %3337 = vmatmul.mubr.f32.gmra.mrb[0].mxu0 %v3219
        %v3338 = vpop.f32.mrb[0].mxu0
        %v3339 = vadd.f32 0.0, %v3338
        %v3340 = vpop.f32.mrb[0].mxu0
        %3341 = vdwg.mxu0
        %v3342 = vadd.f32 %v3174, %v3304
        %v3343 = vadd.f32 %v3179, %v3309
        %v3344 = vadd.f32 %v3184, %v3314
        %v3345 = vadd.f32 %v3189, %v3319
        %v3346 = vadd.f32 %v3194, %v3324
        %v3347 = vadd.f32 %v3199, %v3329
        %v3348 = vadd.f32 %v3204, %v3334
        %v3349 = vadd.f32 %v3209, %v3339
        %v3350 = vld [vmem:[%s2944 + $0x7] sm:$0xff]
        %v3351 = vld [vmem:[%s2944 + $0x1f] sm:$0xff]
        %v3352 = vld [vmem:[%s2944 + $0x37] sm:$0xff]
        %v3353 = vld [vmem:[%s2944 + $0x4f] sm:$0xff]
        %v3354 = vld [vmem:[%s2944 + $0x67] sm:$0xff]
        %v3355 = vld [vmem:[%s2944 + $0x7f] sm:$0xff]
        %v3356 = vld [vmem:[%s2944 + $0x97] sm:$0xff]
        %v3357 = vld [vmem:[%s2944 + $0xaf] sm:$0xff]
        %s3358 = scalar_lea.vmem %s3, 384
        %v3359 = vld [vmem:[%s3358] sm:$0xff]
        %v3360 = vld [vmem:[%s3358 + $0x8] sm:$0xff]
        %v3361 = vld [vmem:[%s3358 + $0x10] sm:$0xff]
        %v3362 = vld [vmem:[%s3358 + $0x18] sm:$0xff]
        %v3363 = vld [vmem:[%s3358 + $0x20] sm:$0xff]
        %v3364 = vld [vmem:[%s3358 + $0x28] sm:$0xff]
        %v3365 = vld [vmem:[%s3358 + $0x30] sm:$0xff]
        %v3366 = vld [vmem:[%s3358 + $0x38] sm:$0xff]
        %v3367 = vld [vmem:[%s3358 + $0x40] sm:$0xff]
        %v3368 = vld [vmem:[%s3358 + $0x48] sm:$0xff]
        %v3369 = vld [vmem:[%s3358 + $0x50] sm:$0xff]
        %v3370 = vld [vmem:[%s3358 + $0x58] sm:$0xff]
        %v3371 = vld [vmem:[%s3358 + $0x60] sm:$0xff]
        %v3372 = vld [vmem:[%s3358 + $0x68] sm:$0xff]
        %v3373 = vld [vmem:[%s3358 + $0x70] sm:$0xff]
        %v3374 = vld [vmem:[%s3358 + $0x78] sm:$0xff]
        %3375 = vmatprep.subr.mxu0 0.0
        %3376 = vmatpush1.msra.mxu0 %v3359
        %3377 = vmatprep.subr.mxu0 0.0
        %3378 = vmatpush1.msra.mxu0 %v3360
        %3379 = vmatprep.subr.mxu0 0.0
        %3380 = vmatpush1.msra.mxu0 %v3361
        %3381 = vmatprep.subr.mxu0 0.0
        %3382 = vmatpush1.msra.mxu0 %v3362
        %3383 = vmatprep.subr.mxu0 0.0
        %3384 = vmatpush1.msra.mxu0 %v3363
        %3385 = vmatprep.subr.mxu0 0.0
        %3386 = vmatpush1.msra.mxu0 %v3364
        %3387 = vmatprep.subr.mxu0 0.0
        %3388 = vmatpush1.msra.mxu0 %v3365
        %3389 = vmatprep.subr.mxu0 0.0
        %3390 = vmatpush1.msra.mxu0 %v3366
        %3391 = vmatprep.subr.mxu0 0.0
        %3392 = vmatpush1.msra.mxu0 %v3367
        %3393 = vmatprep.subr.mxu0 0.0
        %3394 = vmatpush1.msra.mxu0 %v3368
        %3395 = vmatprep.subr.mxu0 0.0
        %3396 = vmatpush1.msra.mxu0 %v3369
        %3397 = vmatprep.subr.mxu0 0.0
        %3398 = vmatpush1.msra.mxu0 %v3370
        %3399 = vmatprep.subr.mxu0 0.0
        %3400 = vmatpush1.msra.mxu0 %v3371
        %3401 = vmatprep.subr.mxu0 0.0
        %3402 = vmatpush1.msra.mxu0 %v3372
        %3403 = vmatprep.subr.mxu0 0.0
        %3404 = vmatpush1.msra.mxu0 %v3373
        %3405 = vmatprep.subr.mxu0 0.0
        %3406 = vmatpush1.msra.mxu0 %v3374
        %3407 = vmatprep.subr.mxu0 0.0
        %3408 = vmatpush1.msra.mxu0 0.0
        %3409 = vmatprep.subr.mxu0 0.0
        %3410 = vmatpush1.msra.mxu0 0.0
        %3411 = vmatprep.subr.mxu0 0.0
        %3412 = vmatpush1.msra.mxu0 0.0
        %3413 = vmatprep.subr.mxu0 0.0
        %3414 = vmatpush1.msra.mxu0 0.0
        %3415 = vmatprep.subr.mxu0 0.0
        %3416 = vmatpush1.msra.mxu0 0.0
        %3417 = vmatprep.subr.mxu0 0.0
        %3418 = vmatpush1.msra.mxu0 0.0
        %3419 = vmatprep.subr.mxu0 0.0
        %3420 = vmatpush1.msra.mxu0 0.0
        %3421 = vmatprep.subr.mxu0 0.0
        %3422 = vmatpush1.msra.mxu0 0.0
        %3423 = vmatprep.subr.mxu0 0.0
        %3424 = vmatpush1.msra.mxu0 0.0
        %3425 = vmatprep.subr.mxu0 0.0
        %3426 = vmatpush1.msra.mxu0 0.0
        %3427 = vmatprep.subr.mxu0 0.0
        %3428 = vmatpush1.msra.mxu0 0.0
        %3429 = vmatprep.subr.mxu0 0.0
        %3430 = vmatpush1.msra.mxu0 0.0
        %3431 = vmatprep.subr.mxu0 0.0
        %3432 = vmatpush1.msra.mxu0 0.0
        %3433 = vmatprep.subr.mxu0 0.0
        %3434 = vmatpush1.msra.mxu0 0.0
        %3435 = vmatprep.subr.mxu0 0.0
        %3436 = vmatpush1.msra.mxu0 0.0
        %3437 = vmatprep.subr.mxu0 0.0
        %3438 = vmatpush1.msra.mxu0 0.0
        %3439 = vmatprep.mubr.f32.mxu0 0.0
        %3440 = vmatmul.mubr.f32.gmra.mrb[0].mxu0 %v3350
        %v3441 = vpop.f32.mrb[0].mxu0
        %v3442 = vadd.f32 0.0, %v3441
        %v3443 = vpop.f32.mrb[0].mxu0
        %3444 = vmatprep.mubr.f32.mxu0 0.0
        %3445 = vmatmul.mubr.f32.gmra.mrb[0].mxu0 %v3351
        %v3446 = vpop.f32.mrb[0].mxu0
        %v3447 = vadd.f32 0.0, %v3446
        %v3448 = vpop.f32.mrb[0].mxu0
        %3449 = vmatprep.mubr.f32.mxu0 0.0
        %3450 = vmatmul.mubr.f32.gmra.mrb[0].mxu0 %v3352
        %v3451 = vpop.f32.mrb[0].mxu0
        %v3452 = vadd.f32 0.0, %v3451
        %v3453 = vpop.f32.mrb[0].mxu0
        %3454 = vmatprep.mubr.f32.mxu0 0.0
        %3455 = vmatmul.mubr.f32.gmra.mrb[0].mxu0 %v3353
        %v3456 = vpop.f32.mrb[0].mxu0
        %v3457 = vadd.f32 0.0, %v3456
        %v3458 = vpop.f32.mrb[0].mxu0
        %3459 = vmatprep.mubr.f32.mxu0 0.0
        %3460 = vmatmul.mubr.f32.gmra.mrb[0].mxu0 %v3354
        %v3461 = vpop.f32.mrb[0].mxu0
        %v3462 = vadd.f32 0.0, %v3461
        %v3463 = vpop.f32.mrb[0].mxu0
        %3464 = vmatprep.mubr.f32.mxu0 0.0
        %3465 = vmatmul.mubr.f32.gmra.mrb[0].mxu0 %v3355
        %v3466 = vpop.f32.mrb[0].mxu0
        %v3467 = vadd.f32 0.0, %v3466
        %v3468 = vpop.f32.mrb[0].mxu0
        %3469 = vmatprep.mubr.f32.mxu0 0.0
        %3470 = vmatmul.mubr.f32.gmra.mrb[0].mxu0 %v3356
        %v3471 = vpop.f32.mrb[0].mxu0
        %v3472 = vadd.f32 0.0, %v3471
        %v3473 = vpop.f32.mrb[0].mxu0
        %3474 = vmatprep.mubr.f32.mxu0 0.0
        %3475 = vmatmul.mubr.f32.gmra.mrb[0].mxu0 %v3357
        %v3476 = vpop.f32.mrb[0].mxu0
        %v3477 = vadd.f32 0.0, %v3476
        %v3478 = vpop.f32.mrb[0].mxu0
        %3479 = vdwg.mxu0
        %v3480 = vadd.f32 %v3342, %v3442
        %v3481 = vadd.f32 %v3343, %v3447
        %v3482 = vadd.f32 %v3344, %v3452
        %v3483 = vadd.f32 %v3345, %v3457
        %v3484 = vadd.f32 %v3346, %v3462
        %v3485 = vadd.f32 %v3347, %v3467
        %v3486 = vadd.f32 %v3348, %v3472
        %v3487 = vadd.f32 %v3349, %v3477
        %v3488 = vld [vmem:[%s2944 + $0x8] sm:$0xff]
        %v3489 = vld [vmem:[%s2944 + $0x20] sm:$0xff]
        %v3490 = vld [vmem:[%s2944 + $0x38] sm:$0xff]
        %v3491 = vld [vmem:[%s2944 + $0x50] sm:$0xff]
        %v3492 = vld [vmem:[%s2944 + $0x68] sm:$0xff]
        %v3493 = vld [vmem:[%s2944 + $0x80] sm:$0xff]
        %v3494 = vld [vmem:[%s2944 + $0x98] sm:$0xff]
        %v3495 = vld [vmem:[%s2944 + $0xb0] sm:$0xff]
        %s3496 = scalar_lea.vmem %s3, 512
        %v3497 = vld [vmem:[%s3496] sm:$0xff]
        %v3498 = vld [vmem:[%s3496 + $0x8] sm:$0xff]
        %v3499 = vld [vmem:[%s3496 + $0x10] sm:$0xff]
        %v3500 = vld [vmem:[%s3496 + $0x18] sm:$0xff]
        %v3501 = vld [vmem:[%s3496 + $0x20] sm:$0xff]
        %v3502 = vld [vmem:[%s3496 + $0x28] sm:$0xff]
        %v3503 = vld [vmem:[%s3496 + $0x30] sm:$0xff]
        %v3504 = vld [vmem:[%s3496 + $0x38] sm:$0xff]
        %v3505 = vld [vmem:[%s3496 + $0x40] sm:$0xff]
        %v3506 = vld [vmem:[%s3496 + $0x48] sm:$0xff]
        %v3507 = vld [vmem:[%s3496 + $0x50] sm:$0xff]
        %v3508 = vld [vmem:[%s3496 + $0x58] sm:$0xff]
        %v3509 = vld [vmem:[%s3496 + $0x60] sm:$0xff]
        %v3510 = vld [vmem:[%s3496 + $0x68] sm:$0xff]
        %v3511 = vld [vmem:[%s3496 + $0x70] sm:$0xff]
        %v3512 = vld [vmem:[%s3496 + $0x78] sm:$0xff]
        %3513 = vmatprep.subr.mxu0 0.0
        %3514 = vmatpush1.msra.mxu0 %v3497
        %3515 = vmatprep.subr.mxu0 0.0
        %3516 = vmatpush1.msra.mxu0 %v3498
        %3517 = vmatprep.subr.mxu0 0.0
        %3518 = vmatpush1.msra.mxu0 %v3499
        %3519 = vmatprep.subr.mxu0 0.0
        %3520 = vmatpush1.msra.mxu0 %v3500
        %3521 = vmatprep.subr.mxu0 0.0
        %3522 = vmatpush1.msra.mxu0 %v3501
        %3523 = vmatprep.subr.mxu0 0.0
        %3524 = vmatpush1.msra.mxu0 %v3502
        %3525 = vmatprep.subr.mxu0 0.0
        %3526 = vmatpush1.msra.mxu0 %v3503
        %3527 = vmatprep.subr.mxu0 0.0
        %3528 = vmatpush1.msra.mxu0 %v3504
        %3529 = vmatprep.subr.mxu0 0.0
        %3530 = vmatpush1.msra.mxu0 %v3505
        %3531 = vmatprep.subr.mxu0 0.0
        %3532 = vmatpush1.msra.mxu0 %v3506
        %3533 = vmatprep.subr.mxu0 0.0
        %3534 = vmatpush1.msra.mxu0 %v3507
        %3535 = vmatprep.subr.mxu0 0.0
        %3536 = vmatpush1.msra.mxu0 %v3508
        %3537 = vmatprep.subr.mxu0 0.0
        %3538 = vmatpush1.msra.mxu0 %v3509
        %3539 = vmatprep.subr.mxu0 0.0
        %3540 = vmatpush1.msra.mxu0 %v3510
        %3541 = vmatprep.subr.mxu0 0.0
        %3542 = vmatpush1.msra.mxu0 %v3511
        %3543 = vmatprep.subr.mxu0 0.0
        %3544 = vmatpush1.msra.mxu0 %v3512
        %3545 = vmatprep.subr.mxu0 0.0
        %3546 = vmatpush1.msra.mxu0 0.0
        %3547 = vmatprep.subr.mxu0 0.0
        %3548 = vmatpush1.msra.mxu0 0.0
        %3549 = vmatprep.subr.mxu0 0.0
        %3550 = vmatpush1.msra.mxu0 0.0
        %3551 = vmatprep.subr.mxu0 0.0
        %3552 = vmatpush1.msra.mxu0 0.0
        %3553 = vmatprep.subr.mxu0 0.0
        %3554 = vmatpush1.msra.mxu0 0.0
        %3555 = vmatprep.subr.mxu0 0.0
        %3556 = vmatpush1.msra.mxu0 0.0
        %3557 = vmatprep.subr.mxu0 0.0
        %3558 = vmatpush1.msra.mxu0 0.0
        %3559 = vmatprep.subr.mxu0 0.0
        %3560 = vmatpush1.msra.mxu0 0.0
        %3561 = vmatprep.subr.mxu0 0.0
        %3562 = vmatpush1.msra.mxu0 0.0
        %3563 = vmatprep.subr.mxu0 0.0
        %3564 = vmatpush1.msra.mxu0 0.0
        %3565 = vmatprep.subr.mxu0 0.0
        %3566 = vmatpush1.msra.mxu0 0.0
        %3567 = vmatprep.subr.mxu0 0.0
        %3568 = vmatpush1.msra.mxu0 0.0
        %3569 = vmatprep.subr.mxu0 0.0
        %3570 = vmatpush1.msra.mxu0 0.0
        %3571 = vmatprep.subr.mxu0 0.0
        %3572 = vmatpush1.msra.mxu0 0.0
        %3573 = vmatprep.subr.mxu0 0.0
        %3574 = vmatpush1.msra.mxu0 0.0
        %3575 = vmatprep.subr.mxu0 0.0
        %3576 = vmatpush1.msra.mxu0 0.0
        %3577 = vmatprep.mubr.f32.mxu0 0.0
        %3578 = vmatmul.mubr.f32.gmra.mrb[0].mxu0 %v3488
        %v3579 = vpop.f32.mrb[0].mxu0
        %v3580 = vadd.f32 0.0, %v3579
        %v3581 = vpop.f32.mrb[0].mxu0
        %3582 = vmatprep.mubr.f32.mxu0 0.0
        %3583 = vmatmul.mubr.f32.gmra.mrb[0].mxu0 %v3489
        %v3584 = vpop.f32.mrb[0].mxu0
        %v3585 = vadd.f32 0.0, %v3584
        %v3586 = vpop.f32.mrb[0].mxu0
        %3587 = vmatprep.mubr.f32.mxu0 0.0
        %3588 = vmatmul.mubr.f32.gmra.mrb[0].mxu0 %v3490
        %v3589 = vpop.f32.mrb[0].mxu0
        %v3590 = vadd.f32 0.0, %v3589
        %v3591 = vpop.f32.mrb[0].mxu0
        %3592 = vmatprep.mubr.f32.mxu0 0.0
        %3593 = vmatmul.mubr.f32.gmra.mrb[0].mxu0 %v3491
        %v3594 = vpop.f32.mrb[0].mxu0
        %v3595 = vadd.f32 0.0, %v3594
        %v3596 = vpop.f32.mrb[0].mxu0
        %3597 = vmatprep.mubr.f32.mxu0 0.0
        %3598 = vmatmul.mubr.f32.gmra.mrb[0].mxu0 %v3492
        %v3599 = vpop.f32.mrb[0].mxu0
        %v3600 = vadd.f32 0.0, %v3599
        %v3601 = vpop.f32.mrb[0].mxu0
        %3602 = vmatprep.mubr.f32.mxu0 0.0
        %3603 = vmatmul.mubr.f32.gmra.mrb[0].mxu0 %v3493
        %v3604 = vpop.f32.mrb[0].mxu0
        %v3605 = vadd.f32 0.0, %v3604
        %v3606 = vpop.f32.mrb[0].mxu0
        %3607 = vmatprep.mubr.f32.mxu0 0.0
        %3608 = vmatmul.mubr.f32.gmra.mrb[0].mxu0 %v3494
        %v3609 = vpop.f32.mrb[0].mxu0
        %v3610 = vadd.f32 0.0, %v3609
        %v3611 = vpop.f32.mrb[0].mxu0
        %3612 = vmatprep.mubr.f32.mxu0 0.0
        %3613 = vmatmul.mubr.f32.gmra.mrb[0].mxu0 %v3495
        %v3614 = vpop.f32.mrb[0].mxu0
        %v3615 = vadd.f32 0.0, %v3614
        %v3616 = vpop.f32.mrb[0].mxu0
        %3617 = vdwg.mxu0
        %v3618 = vadd.f32 %v3480, %v3580
        %v3619 = vadd.f32 %v3481, %v3585
        %v3620 = vadd.f32 %v3482, %v3590
        %v3621 = vadd.f32 %v3483, %v3595
        %v3622 = vadd.f32 %v3484, %v3600
        %v3623 = vadd.f32 %v3485, %v3605
        %v3624 = vadd.f32 %v3486, %v3610
        %v3625 = vadd.f32 %v3487, %v3615
        %v3626 = vld [vmem:[%s2944 + $0x9] sm:$0xff]
        %v3627 = vld [vmem:[%s2944 + $0x21] sm:$0xff]
        %v3628 = vld [vmem:[%s2944 + $0x39] sm:$0xff]
        %v3629 = vld [vmem:[%s2944 + $0x51] sm:$0xff]
        %v3630 = vld [vmem:[%s2944 + $0x69] sm:$0xff]
        %v3631 = vld [vmem:[%s2944 + $0x81] sm:$0xff]
        %v3632 = vld [vmem:[%s2944 + $0x99] sm:$0xff]
        %v3633 = vld [vmem:[%s2944 + $0xb1] sm:$0xff]
        %s3634 = scalar_lea.vmem %s3, 640
        %v3635 = vld [vmem:[%s3634] sm:$0xff]
        %v3636 = vld [vmem:[%s3634 + $0x8] sm:$0xff]
        %v3637 = vld [vmem:[%s3634 + $0x10] sm:$0xff]
        %v3638 = vld [vmem:[%s3634 + $0x18] sm:$0xff]
        %v3639 = vld [vmem:[%s3634 + $0x20] sm:$0xff]
        %v3640 = vld [vmem:[%s3634 + $0x28] sm:$0xff]
        %v3641 = vld [vmem:[%s3634 + $0x30] sm:$0xff]
        %v3642 = vld [vmem:[%s3634 + $0x38] sm:$0xff]
        %v3643 = vld [vmem:[%s3634 + $0x40] sm:$0xff]
        %v3644 = vld [vmem:[%s3634 + $0x48] sm:$0xff]
        %v3645 = vld [vmem:[%s3634 + $0x50] sm:$0xff]
        %v3646 = vld [vmem:[%s3634 + $0x58] sm:$0xff]
        %v3647 = vld [vmem:[%s3634 + $0x60] sm:$0xff]
        %v3648 = vld [vmem:[%s3634 + $0x68] sm:$0xff]
        %v3649 = vld [vmem:[%s3634 + $0x70] sm:$0xff]
        %v3650 = vld [vmem:[%s3634 + $0x78] sm:$0xff]
        %3651 = vmatprep.subr.mxu0 0.0
        %3652 = vmatpush1.msra.mxu0 %v3635
        %3653 = vmatprep.subr.mxu0 0.0
        %3654 = vmatpush1.msra.mxu0 %v3636
        %3655 = vmatprep.subr.mxu0 0.0
        %3656 = vmatpush1.msra.mxu0 %v3637
        %3657 = vmatprep.subr.mxu0 0.0
        %3658 = vmatpush1.msra.mxu0 %v3638
        %3659 = vmatprep.subr.mxu0 0.0
        %3660 = vmatpush1.msra.mxu0 %v3639
        %3661 = vmatprep.subr.mxu0 0.0
        %3662 = vmatpush1.msra.mxu0 %v3640
        %3663 = vmatprep.subr.mxu0 0.0
        %3664 = vmatpush1.msra.mxu0 %v3641
        %3665 = vmatprep.subr.mxu0 0.0
        %3666 = vmatpush1.msra.mxu0 %v3642
        %3667 = vmatprep.subr.mxu0 0.0
        %3668 = vmatpush1.msra.mxu0 %v3643
        %3669 = vmatprep.subr.mxu0 0.0
        %3670 = vmatpush1.msra.mxu0 %v3644
        %3671 = vmatprep.subr.mxu0 0.0
        %3672 = vmatpush1.msra.mxu0 %v3645
        %3673 = vmatprep.subr.mxu0 0.0
        %3674 = vmatpush1.msra.mxu0 %v3646
        %3675 = vmatprep.subr.mxu0 0.0
        %3676 = vmatpush1.msra.mxu0 %v3647
        %3677 = vmatprep.subr.mxu0 0.0
        %3678 = vmatpush1.msra.mxu0 %v3648
        %3679 = vmatprep.subr.mxu0 0.0
        %3680 = vmatpush1.msra.mxu0 %v3649
        %3681 = vmatprep.subr.mxu0 0.0
        %3682 = vmatpush1.msra.mxu0 %v3650
        %3683 = vmatprep.subr.mxu0 0.0
        %3684 = vmatpush1.msra.mxu0 0.0
        %3685 = vmatprep.subr.mxu0 0.0
        %3686 = vmatpush1.msra.mxu0 0.0
        %3687 = vmatprep.subr.mxu0 0.0
        %3688 = vmatpush1.msra.mxu0 0.0
        %3689 = vmatprep.subr.mxu0 0.0
        %3690 = vmatpush1.msra.mxu0 0.0
        %3691 = vmatprep.subr.mxu0 0.0
        %3692 = vmatpush1.msra.mxu0 0.0
        %3693 = vmatprep.subr.mxu0 0.0
        %3694 = vmatpush1.msra.mxu0 0.0
        %3695 = vmatprep.subr.mxu0 0.0
        %3696 = vmatpush1.msra.mxu0 0.0
        %3697 = vmatprep.subr.mxu0 0.0
        %3698 = vmatpush1.msra.mxu0 0.0
        %3699 = vmatprep.subr.mxu0 0.0
        %3700 = vmatpush1.msra.mxu0 0.0
        %3701 = vmatprep.subr.mxu0 0.0
        %3702 = vmatpush1.msra.mxu0 0.0
        %3703 = vmatprep.subr.mxu0 0.0
        %3704 = vmatpush1.msra.mxu0 0.0
        %3705 = vmatprep.subr.mxu0 0.0
        %3706 = vmatpush1.msra.mxu0 0.0
        %3707 = vmatprep.subr.mxu0 0.0
        %3708 = vmatpush1.msra.mxu0 0.0
        %3709 = vmatprep.subr.mxu0 0.0
        %3710 = vmatpush1.msra.mxu0 0.0
        %3711 = vmatprep.subr.mxu0 0.0
        %3712 = vmatpush1.msra.mxu0 0.0
        %3713 = vmatprep.subr.mxu0 0.0
        %3714 = vmatpush1.msra.mxu0 0.0
        %3715 = vmatprep.mubr.f32.mxu0 0.0
        %3716 = vmatmul.mubr.f32.gmra.mrb[0].mxu0 %v3626
        %v3717 = vpop.f32.mrb[0].mxu0
        %v3718 = vadd.f32 0.0, %v3717
        %v3719 = vpop.f32.mrb[0].mxu0
        %3720 = vmatprep.mubr.f32.mxu0 0.0
        %3721 = vmatmul.mubr.f32.gmra.mrb[0].mxu0 %v3627
        %v3722 = vpop.f32.mrb[0].mxu0
        %v3723 = vadd.f32 0.0, %v3722
        %v3724 = vpop.f32.mrb[0].mxu0
        %3725 = vmatprep.mubr.f32.mxu0 0.0
        %3726 = vmatmul.mubr.f32.gmra.mrb[0].mxu0 %v3628
        %v3727 = vpop.f32.mrb[0].mxu0
        %v3728 = vadd.f32 0.0, %v3727
        %v3729 = vpop.f32.mrb[0].mxu0
        %3730 = vmatprep.mubr.f32.mxu0 0.0
        %3731 = vmatmul.mubr.f32.gmra.mrb[0].mxu0 %v3629
        %v3732 = vpop.f32.mrb[0].mxu0
        %v3733 = vadd.f32 0.0, %v3732
        %v3734 = vpop.f32.mrb[0].mxu0
        %3735 = vmatprep.mubr.f32.mxu0 0.0
        %3736 = vmatmul.mubr.f32.gmra.mrb[0].mxu0 %v3630
        %v3737 = vpop.f32.mrb[0].mxu0
        %v3738 = vadd.f32 0.0, %v3737
        %v3739 = vpop.f32.mrb[0].mxu0
        %3740 = vmatprep.mubr.f32.mxu0 0.0
        %3741 = vmatmul.mubr.f32.gmra.mrb[0].mxu0 %v3631
        %v3742 = vpop.f32.mrb[0].mxu0
        %v3743 = vadd.f32 0.0, %v3742
        %v3744 = vpop.f32.mrb[0].mxu0
        %3745 = vmatprep.mubr.f32.mxu0 0.0
        %3746 = vmatmul.mubr.f32.gmra.mrb[0].mxu0 %v3632
        %v3747 = vpop.f32.mrb[0].mxu0
        %v3748 = vadd.f32 0.0, %v3747
        %v3749 = vpop.f32.mrb[0].mxu0
        %3750 = vmatprep.mubr.f32.mxu0 0.0
        %3751 = vmatmul.mubr.f32.gmra.mrb[0].mxu0 %v3633
        %v3752 = vpop.f32.mrb[0].mxu0
        %v3753 = vadd.f32 0.0, %v3752
        %v3754 = vpop.f32.mrb[0].mxu0
        %3755 = vdwg.mxu0
        %v3756 = vadd.f32 %v3618, %v3718
        %v3757 = vadd.f32 %v3619, %v3723
        %v3758 = vadd.f32 %v3620, %v3728
        %v3759 = vadd.f32 %v3621, %v3733
        %v3760 = vadd.f32 %v3622, %v3738
        %v3761 = vadd.f32 %v3623, %v3743
        %v3762 = vadd.f32 %v3624, %v3748
        %v3763 = vadd.f32 %v3625, %v3753
        %s3764 = scalar_lea.vmem [#allocation4], 48
        %v3765 = vld [vmem:[%s3764 + $0x7] sm:$0xff]
        %v3766 = vld [vmem:[%s3764 + $0x1f] sm:$0xff]
        %v3767 = vld [vmem:[%s3764 + $0x37] sm:$0xff]
        %v3768 = vld [vmem:[%s3764 + $0x4f] sm:$0xff]
        %v3769 = vld [vmem:[%s3764 + $0x67] sm:$0xff]
        %v3770 = vld [vmem:[%s3764 + $0x7f] sm:$0xff]
        %v3771 = vld [vmem:[%s3764 + $0x97] sm:$0xff]
        %v3772 = vld [vmem:[%s3764 + $0xaf] sm:$0xff]
        %s3773 = scalar_lea.vmem %s3, 768
        %v3774 = vld [vmem:[%s3773] sm:$0xff]
        %v3775 = vld [vmem:[%s3773 + $0x8] sm:$0xff]
        %v3776 = vld [vmem:[%s3773 + $0x10] sm:$0xff]
        %v3777 = vld [vmem:[%s3773 + $0x18] sm:$0xff]
        %v3778 = vld [vmem:[%s3773 + $0x20] sm:$0xff]
        %v3779 = vld [vmem:[%s3773 + $0x28] sm:$0xff]
        %v3780 = vld [vmem:[%s3773 + $0x30] sm:$0xff]
        %v3781 = vld [vmem:[%s3773 + $0x38] sm:$0xff]
        %v3782 = vld [vmem:[%s3773 + $0x40] sm:$0xff]
        %v3783 = vld [vmem:[%s3773 + $0x48] sm:$0xff]
        %v3784 = vld [vmem:[%s3773 + $0x50] sm:$0xff]
        %v3785 = vld [vmem:[%s3773 + $0x58] sm:$0xff]
        %v3786 = vld [vmem:[%s3773 + $0x60] sm:$0xff]
        %v3787 = vld [vmem:[%s3773 + $0x68] sm:$0xff]
        %v3788 = vld [vmem:[%s3773 + $0x70] sm:$0xff]
        %v3789 = vld [vmem:[%s3773 + $0x78] sm:$0xff]
        %3790 = vmatprep.subr.mxu0 0.0
        %3791 = vmatpush1.msra.mxu0 %v3774
        %3792 = vmatprep.subr.mxu0 0.0
        %3793 = vmatpush1.msra.mxu0 %v3775
        %3794 = vmatprep.subr.mxu0 0.0
        %3795 = vmatpush1.msra.mxu0 %v3776
        %3796 = vmatprep.subr.mxu0 0.0
        %3797 = vmatpush1.msra.mxu0 %v3777
        %3798 = vmatprep.subr.mxu0 0.0
        %3799 = vmatpush1.msra.mxu0 %v3778
        %3800 = vmatprep.subr.mxu0 0.0
        %3801 = vmatpush1.msra.mxu0 %v3779
        %3802 = vmatprep.subr.mxu0 0.0
        %3803 = vmatpush1.msra.mxu0 %v3780
        %3804 = vmatprep.subr.mxu0 0.0
        %3805 = vmatpush1.msra.mxu0 %v3781
        %3806 = vmatprep.subr.mxu0 0.0
        %3807 = vmatpush1.msra.mxu0 %v3782
        %3808 = vmatprep.subr.mxu0 0.0
        %3809 = vmatpush1.msra.mxu0 %v3783
        %3810 = vmatprep.subr.mxu0 0.0
        %3811 = vmatpush1.msra.mxu0 %v3784
        %3812 = vmatprep.subr.mxu0 0.0
        %3813 = vmatpush1.msra.mxu0 %v3785
        %3814 = vmatprep.subr.mxu0 0.0
        %3815 = vmatpush1.msra.mxu0 %v3786
        %3816 = vmatprep.subr.mxu0 0.0
        %3817 = vmatpush1.msra.mxu0 %v3787
        %3818 = vmatprep.subr.mxu0 0.0
        %3819 = vmatpush1.msra.mxu0 %v3788
        %3820 = vmatprep.subr.mxu0 0.0
        %3821 = vmatpush1.msra.mxu0 %v3789
        %3822 = vmatprep.subr.mxu0 0.0
        %3823 = vmatpush1.msra.mxu0 0.0
        %3824 = vmatprep.subr.mxu0 0.0
        %3825 = vmatpush1.msra.mxu0 0.0
        %3826 = vmatprep.subr.mxu0 0.0
        %3827 = vmatpush1.msra.mxu0 0.0
        %3828 = vmatprep.subr.mxu0 0.0
        %3829 = vmatpush1.msra.mxu0 0.0
        %3830 = vmatprep.subr.mxu0 0.0
        %3831 = vmatpush1.msra.mxu0 0.0
        %3832 = vmatprep.subr.mxu0 0.0
        %3833 = vmatpush1.msra.mxu0 0.0
        %3834 = vmatprep.subr.mxu0 0.0
        %3835 = vmatpush1.msra.mxu0 0.0
        %3836 = vmatprep.subr.mxu0 0.0
        %3837 = vmatpush1.msra.mxu0 0.0
        %3838 = vmatprep.subr.mxu0 0.0
        %3839 = vmatpush1.msra.mxu0 0.0
        %3840 = vmatprep.subr.mxu0 0.0
        %3841 = vmatpush1.msra.mxu0 0.0
        %3842 = vmatprep.subr.mxu0 0.0
        %3843 = vmatpush1.msra.mxu0 0.0
        %3844 = vmatprep.subr.mxu0 0.0
        %3845 = vmatpush1.msra.mxu0 0.0
        %3846 = vmatprep.subr.mxu0 0.0
        %3847 = vmatpush1.msra.mxu0 0.0
        %3848 = vmatprep.subr.mxu0 0.0
        %3849 = vmatpush1.msra.mxu0 0.0
        %3850 = vmatprep.subr.mxu0 0.0
        %3851 = vmatpush1.msra.mxu0 0.0
        %3852 = vmatprep.subr.mxu0 0.0
        %3853 = vmatpush1.msra.mxu0 0.0
        %3854 = vmatprep.mubr.f32.mxu0 0.0
        %3855 = vmatmul.mubr.f32.gmra.mrb[0].mxu0 %v3765
        %v3856 = vpop.f32.mrb[0].mxu0
        %v3857 = vadd.f32 0.0, %v3856
        %v3858 = vpop.f32.mrb[0].mxu0
        %3859 = vmatprep.mubr.f32.mxu0 0.0
        %3860 = vmatmul.mubr.f32.gmra.mrb[0].mxu0 %v3766
        %v3861 = vpop.f32.mrb[0].mxu0
        %v3862 = vadd.f32 0.0, %v3861
        %v3863 = vpop.f32.mrb[0].mxu0
        %3864 = vmatprep.mubr.f32.mxu0 0.0
        %3865 = vmatmul.mubr.f32.gmra.mrb[0].mxu0 %v3767
        %v3866 = vpop.f32.mrb[0].mxu0
        %v3867 = vadd.f32 0.0, %v3866
        %v3868 = vpop.f32.mrb[0].mxu0
        %3869 = vmatprep.mubr.f32.mxu0 0.0
        %3870 = vmatmul.mubr.f32.gmra.mrb[0].mxu0 %v3768
        %v3871 = vpop.f32.mrb[0].mxu0
        %v3872 = vadd.f32 0.0, %v3871
        %v3873 = vpop.f32.mrb[0].mxu0
        %3874 = vmatprep.mubr.f32.mxu0 0.0
        %3875 = vmatmul.mubr.f32.gmra.mrb[0].mxu0 %v3769
        %v3876 = vpop.f32.mrb[0].mxu0
        %v3877 = vadd.f32 0.0, %v3876
        %v3878 = vpop.f32.mrb[0].mxu0
        %3879 = vmatprep.mubr.f32.mxu0 0.0
        %3880 = vmatmul.mubr.f32.gmra.mrb[0].mxu0 %v3770
        %v3881 = vpop.f32.mrb[0].mxu0
        %v3882 = vadd.f32 0.0, %v3881
        %v3883 = vpop.f32.mrb[0].mxu0
        %3884 = vmatprep.mubr.f32.mxu0 0.0
        %3885 = vmatmul.mubr.f32.gmra.mrb[0].mxu0 %v3771
        %v3886 = vpop.f32.mrb[0].mxu0
        %v3887 = vadd.f32 0.0, %v3886
        %v3888 = vpop.f32.mrb[0].mxu0
        %3889 = vmatprep.mubr.f32.mxu0 0.0
        %3890 = vmatmul.mubr.f32.gmra.mrb[0].mxu0 %v3772
        %v3891 = vpop.f32.mrb[0].mxu0
        %v3892 = vadd.f32 0.0, %v3891
        %v3893 = vpop.f32.mrb[0].mxu0
        %3894 = vdwg.mxu0
        %v3895 = vadd.f32 %v3756, %v3857
        %v3896 = vadd.f32 %v3757, %v3862
        %v3897 = vadd.f32 %v3758, %v3867
        %v3898 = vadd.f32 %v3759, %v3872
        %v3899 = vadd.f32 %v3760, %v3877
        %v3900 = vadd.f32 %v3761, %v3882
        %v3901 = vadd.f32 %v3762, %v3887
        %v3902 = vadd.f32 %v3763, %v3892
        %v3903 = vld [vmem:[%s3764 + $0x8] sm:$0xff]
        %v3904 = vld [vmem:[%s3764 + $0x20] sm:$0xff]
        %v3905 = vld [vmem:[%s3764 + $0x38] sm:$0xff]
        %v3906 = vld [vmem:[%s3764 + $0x50] sm:$0xff]
        %v3907 = vld [vmem:[%s3764 + $0x68] sm:$0xff]
        %v3908 = vld [vmem:[%s3764 + $0x80] sm:$0xff]
        %v3909 = vld [vmem:[%s3764 + $0x98] sm:$0xff]
        %v3910 = vld [vmem:[%s3764 + $0xb0] sm:$0xff]
        %s3911 = scalar_lea.vmem %s3, 896
        %v3912 = vld [vmem:[%s3911] sm:$0xff]
        %v3913 = vld [vmem:[%s3911 + $0x8] sm:$0xff]
        %v3914 = vld [vmem:[%s3911 + $0x10] sm:$0xff]
        %v3915 = vld [vmem:[%s3911 + $0x18] sm:$0xff]
        %v3916 = vld [vmem:[%s3911 + $0x20] sm:$0xff]
        %v3917 = vld [vmem:[%s3911 + $0x28] sm:$0xff]
        %v3918 = vld [vmem:[%s3911 + $0x30] sm:$0xff]
        %v3919 = vld [vmem:[%s3911 + $0x38] sm:$0xff]
        %v3920 = vld [vmem:[%s3911 + $0x40] sm:$0xff]
        %v3921 = vld [vmem:[%s3911 + $0x48] sm:$0xff]
        %v3922 = vld [vmem:[%s3911 + $0x50] sm:$0xff]
        %v3923 = vld [vmem:[%s3911 + $0x58] sm:$0xff]
        %v3924 = vld [vmem:[%s3911 + $0x60] sm:$0xff]
        %v3925 = vld [vmem:[%s3911 + $0x68] sm:$0xff]
        %v3926 = vld [vmem:[%s3911 + $0x70] sm:$0xff]
        %v3927 = vld [vmem:[%s3911 + $0x78] sm:$0xff]
        %3928 = vmatprep.subr.mxu0 0.0
        %3929 = vmatpush1.msra.mxu0 %v3912
        %3930 = vmatprep.subr.mxu0 0.0
        %3931 = vmatpush1.msra.mxu0 %v3913
        %3932 = vmatprep.subr.mxu0 0.0
        %3933 = vmatpush1.msra.mxu0 %v3914
        %3934 = vmatprep.subr.mxu0 0.0
        %3935 = vmatpush1.msra.mxu0 %v3915
        %3936 = vmatprep.subr.mxu0 0.0
        %3937 = vmatpush1.msra.mxu0 %v3916
        %3938 = vmatprep.subr.mxu0 0.0
        %3939 = vmatpush1.msra.mxu0 %v3917
        %3940 = vmatprep.subr.mxu0 0.0
        %3941 = vmatpush1.msra.mxu0 %v3918
        %3942 = vmatprep.subr.mxu0 0.0
        %3943 = vmatpush1.msra.mxu0 %v3919
        %3944 = vmatprep.subr.mxu0 0.0
        %3945 = vmatpush1.msra.mxu0 %v3920
        %3946 = vmatprep.subr.mxu0 0.0
        %3947 = vmatpush1.msra.mxu0 %v3921
        %3948 = vmatprep.subr.mxu0 0.0
        %3949 = vmatpush1.msra.mxu0 %v3922
        %3950 = vmatprep.subr.mxu0 0.0
        %3951 = vmatpush1.msra.mxu0 %v3923
        %3952 = vmatprep.subr.mxu0 0.0
        %3953 = vmatpush1.msra.mxu0 %v3924
        %3954 = vmatprep.subr.mxu0 0.0
        %3955 = vmatpush1.msra.mxu0 %v3925
        %3956 = vmatprep.subr.mxu0 0.0
        %3957 = vmatpush1.msra.mxu0 %v3926
        %3958 = vmatprep.subr.mxu0 0.0
        %3959 = vmatpush1.msra.mxu0 %v3927
        %3960 = vmatprep.subr.mxu0 0.0
        %3961 = vmatpush1.msra.mxu0 0.0
        %3962 = vmatprep.subr.mxu0 0.0
        %3963 = vmatpush1.msra.mxu0 0.0
        %3964 = vmatprep.subr.mxu0 0.0
        %3965 = vmatpush1.msra.mxu0 0.0
        %3966 = vmatprep.subr.mxu0 0.0
        %3967 = vmatpush1.msra.mxu0 0.0
        %3968 = vmatprep.subr.mxu0 0.0
        %3969 = vmatpush1.msra.mxu0 0.0
        %3970 = vmatprep.subr.mxu0 0.0
        %3971 = vmatpush1.msra.mxu0 0.0
        %3972 = vmatprep.subr.mxu0 0.0
        %3973 = vmatpush1.msra.mxu0 0.0
        %3974 = vmatprep.subr.mxu0 0.0
        %3975 = vmatpush1.msra.mxu0 0.0
        %3976 = vmatprep.subr.mxu0 0.0
        %3977 = vmatpush1.msra.mxu0 0.0
        %3978 = vmatprep.subr.mxu0 0.0
        %3979 = vmatpush1.msra.mxu0 0.0
        %3980 = vmatprep.subr.mxu0 0.0
        %3981 = vmatpush1.msra.mxu0 0.0
        %3982 = vmatprep.subr.mxu0 0.0
        %3983 = vmatpush1.msra.mxu0 0.0
        %3984 = vmatprep.subr.mxu0 0.0
        %3985 = vmatpush1.msra.mxu0 0.0
        %3986 = vmatprep.subr.mxu0 0.0
        %3987 = vmatpush1.msra.mxu0 0.0
        %3988 = vmatprep.subr.mxu0 0.0
        %3989 = vmatpush1.msra.mxu0 0.0
        %3990 = vmatprep.subr.mxu0 0.0
        %3991 = vmatpush1.msra.mxu0 0.0
        %3992 = vmatprep.mubr.f32.mxu0 0.0
        %3993 = vmatmul.mubr.f32.gmra.mrb[0].mxu0 %v3903
        %v3994 = vpop.f32.mrb[0].mxu0
        %v3995 = vadd.f32 0.0, %v3994
        %v3996 = vpop.f32.mrb[0].mxu0
        %3997 = vmatprep.mubr.f32.mxu0 0.0
        %3998 = vmatmul.mubr.f32.gmra.mrb[0].mxu0 %v3904
        %v3999 = vpop.f32.mrb[0].mxu0
        %v4000 = vadd.f32 0.0, %v3999
        %v4001 = vpop.f32.mrb[0].mxu0
        %4002 = vmatprep.mubr.f32.mxu0 0.0
        %4003 = vmatmul.mubr.f32.gmra.mrb[0].mxu0 %v3905
        %v4004 = vpop.f32.mrb[0].mxu0
        %v4005 = vadd.f32 0.0, %v4004
        %v4006 = vpop.f32.mrb[0].mxu0
        %4007 = vmatprep.mubr.f32.mxu0 0.0
        %4008 = vmatmul.mubr.f32.gmra.mrb[0].mxu0 %v3906
        %v4009 = vpop.f32.mrb[0].mxu0
        %v4010 = vadd.f32 0.0, %v4009
        %v4011 = vpop.f32.mrb[0].mxu0
        %4012 = vmatprep.mubr.f32.mxu0 0.0
        %4013 = vmatmul.mubr.f32.gmra.mrb[0].mxu0 %v3907
        %v4014 = vpop.f32.mrb[0].mxu0
        %v4015 = vadd.f32 0.0, %v4014
        %v4016 = vpop.f32.mrb[0].mxu0
        %4017 = vmatprep.mubr.f32.mxu0 0.0
        %4018 = vmatmul.mubr.f32.gmra.mrb[0].mxu0 %v3908
        %v4019 = vpop.f32.mrb[0].mxu0
        %v4020 = vadd.f32 0.0, %v4019
        %v4021 = vpop.f32.mrb[0].mxu0
        %4022 = vmatprep.mubr.f32.mxu0 0.0
        %4023 = vmatmul.mubr.f32.gmra.mrb[0].mxu0 %v3909
        %v4024 = vpop.f32.mrb[0].mxu0
        %v4025 = vadd.f32 0.0, %v4024
        %v4026 = vpop.f32.mrb[0].mxu0
        %4027 = vmatprep.mubr.f32.mxu0 0.0
        %4028 = vmatmul.mubr.f32.gmra.mrb[0].mxu0 %v3910
        %v4029 = vpop.f32.mrb[0].mxu0
        %v4030 = vadd.f32 0.0, %v4029
        %v4031 = vpop.f32.mrb[0].mxu0
        %4032 = vdwg.mxu0
        %v4033 = vadd.f32 %v3895, %v3995
        %v4034 = vadd.f32 %v3896, %v4000
        %v4035 = vadd.f32 %v3897, %v4005
        %v4036 = vadd.f32 %v3898, %v4010
        %v4037 = vadd.f32 %v3899, %v4015
        %v4038 = vadd.f32 %v3900, %v4020
        %v4039 = vadd.f32 %v3901, %v4025
        %v4040 = vadd.f32 %v3902, %v4030
        %v4041 = vld [vmem:[%s3764 + $0x9] sm:$0xff]
        %v4042 = vld [vmem:[%s3764 + $0x21] sm:$0xff]
        %v4043 = vld [vmem:[%s3764 + $0x39] sm:$0xff]
        %v4044 = vld [vmem:[%s3764 + $0x51] sm:$0xff]
        %v4045 = vld [vmem:[%s3764 + $0x69] sm:$0xff]
        %v4046 = vld [vmem:[%s3764 + $0x81] sm:$0xff]
        %v4047 = vld [vmem:[%s3764 + $0x99] sm:$0xff]
        %v4048 = vld [vmem:[%s3764 + $0xb1] sm:$0xff]
        %s4049 = scalar_lea.vmem %s3, 1024
        %v4050 = vld [vmem:[%s4049] sm:$0xff]
        %v4051 = vld [vmem:[%s4049 + $0x8] sm:$0xff]
        %v4052 = vld [vmem:[%s4049 + $0x10] sm:$0xff]
        %v4053 = vld [vmem:[%s4049 + $0x18] sm:$0xff]
        %v4054 = vld [vmem:[%s4049 + $0x20] sm:$0xff]
        %v4055 = vld [vmem:[%s4049 + $0x28] sm:$0xff]
        %v4056 = vld [vmem:[%s4049 + $0x30] sm:$0xff]
        %v4057 = vld [vmem:[%s4049 + $0x38] sm:$0xff]
        %v4058 = vld [vmem:[%s4049 + $0x40] sm:$0xff]
        %v4059 = vld [vmem:[%s4049 + $0x48] sm:$0xff]
        %v4060 = vld [vmem:[%s4049 + $0x50] sm:$0xff]
        %v4061 = vld [vmem:[%s4049 + $0x58] sm:$0xff]
        %v4062 = vld [vmem:[%s4049 + $0x60] sm:$0xff]
        %v4063 = vld [vmem:[%s4049 + $0x68] sm:$0xff]
        %v4064 = vld [vmem:[%s4049 + $0x70] sm:$0xff]
        %v4065 = vld [vmem:[%s4049 + $0x78] sm:$0xff]
        %4066 = vmatprep.subr.mxu0 0.0
        %4067 = vmatpush1.msra.mxu0 %v4050
        %4068 = vmatprep.subr.mxu0 0.0
        %4069 = vmatpush1.msra.mxu0 %v4051
        %4070 = vmatprep.subr.mxu0 0.0
        %4071 = vmatpush1.msra.mxu0 %v4052
        %4072 = vmatprep.subr.mxu0 0.0
        %4073 = vmatpush1.msra.mxu0 %v4053
        %4074 = vmatprep.subr.mxu0 0.0
        %4075 = vmatpush1.msra.mxu0 %v4054
        %4076 = vmatprep.subr.mxu0 0.0
        %4077 = vmatpush1.msra.mxu0 %v4055
        %4078 = vmatprep.subr.mxu0 0.0
        %4079 = vmatpush1.msra.mxu0 %v4056
        %4080 = vmatprep.subr.mxu0 0.0
        %4081 = vmatpush1.msra.mxu0 %v4057
        %4082 = vmatprep.subr.mxu0 0.0
        %4083 = vmatpush1.msra.mxu0 %v4058
        %4084 = vmatprep.subr.mxu0 0.0
        %4085 = vmatpush1.msra.mxu0 %v4059
        %4086 = vmatprep.subr.mxu0 0.0
        %4087 = vmatpush1.msra.mxu0 %v4060
        %4088 = vmatprep.subr.mxu0 0.0
        %4089 = vmatpush1.msra.mxu0 %v4061
        %4090 = vmatprep.subr.mxu0 0.0
        %4091 = vmatpush1.msra.mxu0 %v4062
        %4092 = vmatprep.subr.mxu0 0.0
        %4093 = vmatpush1.msra.mxu0 %v4063
        %4094 = vmatprep.subr.mxu0 0.0
        %4095 = vmatpush1.msra.mxu0 %v4064
        %4096 = vmatprep.subr.mxu0 0.0
        %4097 = vmatpush1.msra.mxu0 %v4065
        %4098 = vmatprep.subr.mxu0 0.0
        %4099 = vmatpush1.msra.mxu0 0.0
        %4100 = vmatprep.subr.mxu0 0.0
        %4101 = vmatpush1.msra.mxu0 0.0
        %4102 = vmatprep.subr.mxu0 0.0
        %4103 = vmatpush1.msra.mxu0 0.0
        %4104 = vmatprep.subr.mxu0 0.0
        %4105 = vmatpush1.msra.mxu0 0.0
        %4106 = vmatprep.subr.mxu0 0.0
        %4107 = vmatpush1.msra.mxu0 0.0
        %4108 = vmatprep.subr.mxu0 0.0
        %4109 = vmatpush1.msra.mxu0 0.0
        %4110 = vmatprep.subr.mxu0 0.0
        %4111 = vmatpush1.msra.mxu0 0.0
        %4112 = vmatprep.subr.mxu0 0.0
        %4113 = vmatpush1.msra.mxu0 0.0
        %4114 = vmatprep.subr.mxu0 0.0
        %4115 = vmatpush1.msra.mxu0 0.0
        %4116 = vmatprep.subr.mxu0 0.0
        %4117 = vmatpush1.msra.mxu0 0.0
        %4118 = vmatprep.subr.mxu0 0.0
        %4119 = vmatpush1.msra.mxu0 0.0
        %4120 = vmatprep.subr.mxu0 0.0
        %4121 = vmatpush1.msra.mxu0 0.0
        %4122 = vmatprep.subr.mxu0 0.0
        %4123 = vmatpush1.msra.mxu0 0.0
        %4124 = vmatprep.subr.mxu0 0.0
        %4125 = vmatpush1.msra.mxu0 0.0
        %4126 = vmatprep.subr.mxu0 0.0
        %4127 = vmatpush1.msra.mxu0 0.0
        %4128 = vmatprep.subr.mxu0 0.0
        %4129 = vmatpush1.msra.mxu0 0.0
        %4130 = vmatprep.mubr.f32.mxu0 0.0
        %4131 = vmatmul.mubr.f32.gmra.mrb[0].mxu0 %v4041
        %v4132 = vpop.f32.mrb[0].mxu0
        %v4133 = vadd.f32 0.0, %v4132
        %v4134 = vpop.f32.mrb[0].mxu0
        %4135 = vmatprep.mubr.f32.mxu0 0.0
        %4136 = vmatmul.mubr.f32.gmra.mrb[0].mxu0 %v4042
        %v4137 = vpop.f32.mrb[0].mxu0
        %v4138 = vadd.f32 0.0, %v4137
        %v4139 = vpop.f32.mrb[0].mxu0
        %4140 = vmatprep.mubr.f32.mxu0 0.0
        %4141 = vmatmul.mubr.f32.gmra.mrb[0].mxu0 %v4043
        %v4142 = vpop.f32.mrb[0].mxu0
        %v4143 = vadd.f32 0.0, %v4142
        %v4144 = vpop.f32.mrb[0].mxu0
        %4145 = vmatprep.mubr.f32.mxu0 0.0
        %4146 = vmatmul.mubr.f32.gmra.mrb[0].mxu0 %v4044
        %v4147 = vpop.f32.mrb[0].mxu0
        %v4148 = vadd.f32 0.0, %v4147
        %v4149 = vpop.f32.mrb[0].mxu0
        %4150 = vmatprep.mubr.f32.mxu0 0.0
        %4151 = vmatmul.mubr.f32.gmra.mrb[0].mxu0 %v4045
        %v4152 = vpop.f32.mrb[0].mxu0
        %v4153 = vadd.f32 0.0, %v4152
        %v4154 = vpop.f32.mrb[0].mxu0
        %4155 = vmatprep.mubr.f32.mxu0 0.0
        %4156 = vmatmul.mubr.f32.gmra.mrb[0].mxu0 %v4046
        %v4157 = vpop.f32.mrb[0].mxu0
        %v4158 = vadd.f32 0.0, %v4157
        %v4159 = vpop.f32.mrb[0].mxu0
        %4160 = vmatprep.mubr.f32.mxu0 0.0
        %4161 = vmatmul.mubr.f32.gmra.mrb[0].mxu0 %v4047
        %v4162 = vpop.f32.mrb[0].mxu0
        %v4163 = vadd.f32 0.0, %v4162
        %v4164 = vpop.f32.mrb[0].mxu0
        %4165 = vmatprep.mubr.f32.mxu0 0.0
        %4166 = vmatmul.mubr.f32.gmra.mrb[0].mxu0 %v4048
        %v4167 = vpop.f32.mrb[0].mxu0
        %v4168 = vadd.f32 0.0, %v4167
        %v4169 = vpop.f32.mrb[0].mxu0
        %4170 = vdwg.mxu0
        %v4171 = vadd.f32 %v4033, %v4133
        %v4172 = vadd.f32 %v4034, %v4138
        %v4173 = vadd.f32 %v4035, %v4143
        %v4174 = vadd.f32 %v4036, %v4148
        %v4175 = vadd.f32 %v4037, %v4153
        %v4176 = vadd.f32 %v4038, %v4158
        %v4177 = vadd.f32 %v4039, %v4163
        %v4178 = vadd.f32 %v4040, %v4168
        %v4179 = vld [vmem:[%s4] sm:$0x1]
        %v4181 = vlaneseq
        %v4182 = vshrl.u32 %v4181, 7
        %v4183 = vsub.s32 0, %v4182
        %v4184 = vrot.slane %v4179, %v4183
        %v4186 = vadd.f32 %v4171, %v4184
        %v4187 = vadd.f32 %v4172, %v4184
        %v4188 = vadd.f32 %v4173, %v4184
        %v4189 = vadd.f32 %v4174, %v4184
        %v4190 = vadd.f32 %v4175, %v4184
        %v4191 = vadd.f32 %v4176, %v4184
        %v4192 = vadd.f32 %v4177, %v4184
        %v4193 = vadd.f32 %v4178, %v4184
        %v4194 = vmax.f32 %v4186, 0.0
        %v4195 = vmax.f32 %v4187, 0.0
        %v4196 = vmax.f32 %v4188, 0.0
        %v4197 = vmax.f32 %v4189, 0.0
        %v4198 = vmax.f32 %v4190, 0.0
        %v4199 = vmax.f32 %v4191, 0.0
        %v4200 = vmax.f32 %v4192, 0.0
        %v4201 = vmax.f32 %v4193, 0.0
        %vm4202 = vcmask 261120
        %4203 = vst.msk [vmem:[#allocation5] sm:$0xff] %vm4202, %v4194
        %4204 = vst.msk [vmem:[#allocation5 + $0x8] sm:$0xff] %vm4202, %v4195
        %4205 = vst.msk [vmem:[#allocation5 + $0x10] sm:$0xff] %vm4202, %v4196
        %4206 = vst.msk [vmem:[#allocation5 + $0x18] sm:$0xff] %vm4202, %v4197
        %4207 = vst.msk [vmem:[#allocation5 + $0x20] sm:$0xff] %vm4202, %v4198
        %4208 = vst.msk [vmem:[#allocation5 + $0x28] sm:$0xff] %vm4202, %v4199
        %4209 = vst.msk [vmem:[#allocation5 + $0x30] sm:$0xff] %vm4202, %v4200
        %4210 = vst.msk [vmem:[#allocation5 + $0x38] sm:$0xff] %vm4202, %v4201
        %v4211 = vld [vmem:[#allocation5] sm:$0xff]
        %v4212 = vld [vmem:[#allocation5 + $0x8] sm:$0xff]
        %v4213 = vmax.f32 %v4211, %v4212
        %4214 = vst.msk [vmem:[#allocation6] sm:$0xff] %vm4202, %v4213
        %v4215 = vld [vmem:[#allocation5 + $0x10] sm:$0xff]
        %v4216 = vld [vmem:[#allocation5 + $0x18] sm:$0xff]
        %v4217 = vmax.f32 %v4215, %v4216
        %4218 = vst.msk [vmem:[#allocation6 + $0x8] sm:$0xff] %vm4202, %v4217
        %v4219 = vld [vmem:[#allocation5 + $0x20] sm:$0xff]
        %v4220 = vld [vmem:[#allocation5 + $0x28] sm:$0xff]
        %v4221 = vmax.f32 %v4219, %v4220
        %4222 = vst.msk [vmem:[#allocation6 + $0x10] sm:$0xff] %vm4202, %v4221
        %v4223 = vld [vmem:[#allocation5 + $0x30] sm:$0xff]
        %v4224 = vld [vmem:[#allocation5 + $0x38] sm:$0xff]
        %v4225 = vmax.f32 %v4223, %v4224
        %4226 = vst.msk [vmem:[#allocation6 + $0x18] sm:$0xff] %vm4202, %v4225
        %v4227 = vld [vmem:[#allocation6] ss:$2 sm:$0xff]
        %s4228 = scalar_lea.vmem [#allocation6], 16
        %v4229 = vld [vmem:[%s4228] ss:$2 sm:$0xff]
        %s4230 = scalar_lea.vmem [#allocation6], 1
        %v4231 = vld [vmem:[%s4230] ss:$2 sm:$0xff]
        %s4232 = scalar_lea.vmem [#allocation6], 17
        %v4233 = vld [vmem:[%s4232] ss:$2 sm:$0xff]
        %v4234 = vmax.f32 %v4227, %v4231
        %v4235 = vmax.f32 %v4229, %v4233
        %4236 = vst.msk [vmem:[#allocation7] sm:$0xff] %vm4202, %v4234
        %4237 = vst.msk [vmem:[#allocation7 + $0x8] sm:$0xff] %vm4202, %v4235
        %v4238 = vld [vmem:[#allocation7] sm:$0x1]
        %v4239 = vld [vmem:[%s5] sm:$0xff]
        %v4240 = vld [vmem:[%s5 + $0x8] sm:$0xff]
        %v4241 = vld [vmem:[%s5 + $0x10] sm:$0xff]
        %v4242 = vld [vmem:[%s5 + $0x18] sm:$0xff]
        %v4243 = vld [vmem:[#allocation7 + $0x1] sm:$0x1]
        %s4244 = scalar_lea.vmem %s5, 32
        %v4245 = vld [vmem:[%s4244] sm:$0xff]
        %v4246 = vld [vmem:[%s4244 + $0x8] sm:$0xff]
        %v4247 = vld [vmem:[%s4244 + $0x10] sm:$0xff]
        %v4248 = vld [vmem:[%s4244 + $0x18] sm:$0xff]
        %v4250 = vsel %vm4202, %v4243, 0
        %4252 = vmatprep.subr.mxu0 0.0
        %4253 = vmatpush1.msra.mxu0 %v4245
        %4254 = vmatprep.subr.mxu0 0.0
        %4255 = vmatpush1.msra.mxu0 %v4246
        %4256 = vmatprep.subr.mxu0 0.0
        %4257 = vmatpush1.msra.mxu0 %v4247
        %4258 = vmatprep.subr.mxu0 0.0
        %4259 = vmatpush1.msra.mxu0 %v4248
        %4260 = vmatprep.subr.mxu0 0.0
        %4261 = vmatpush1.msra.mxu0 0.0
        %4262 = vmatprep.subr.mxu0 0.0
        %4263 = vmatpush1.msra.mxu0 0.0
        %4264 = vmatprep.subr.mxu0 0.0
        %4265 = vmatpush1.msra.mxu0 0.0
        %4266 = vmatprep.subr.mxu0 0.0
        %4267 = vmatpush1.msra.mxu0 0.0
        %4268 = vmatprep.subr.mxu0 0.0
        %4269 = vmatpush1.msra.mxu0 0.0
        %4270 = vmatprep.subr.mxu0 0.0
        %4271 = vmatpush1.msra.mxu0 0.0
        %4272 = vmatprep.subr.mxu0 0.0
        %4273 = vmatpush1.msra.mxu0 0.0
        %4274 = vmatprep.subr.mxu0 0.0
        %4275 = vmatpush1.msra.mxu0 0.0
        %4276 = vmatprep.subr.mxu0 0.0
        %4277 = vmatpush1.msra.mxu0 0.0
        %4278 = vmatprep.subr.mxu0 0.0
        %4279 = vmatpush1.msra.mxu0 0.0
        %4280 = vmatprep.subr.mxu0 0.0
        %4281 = vmatpush1.msra.mxu0 0.0
        %4282 = vmatprep.subr.mxu0 0.0
        %4283 = vmatpush1.msra.mxu0 0.0
        %4284 = vmatprep.subr.mxu0 0.0
        %4285 = vmatpush1.msra.mxu0 0.0
        %4286 = vmatprep.subr.mxu0 0.0
        %4287 = vmatpush1.msra.mxu0 0.0
        %4288 = vmatprep.subr.mxu0 0.0
        %4289 = vmatpush1.msra.mxu0 0.0
        %4290 = vmatprep.subr.mxu0 0.0
        %4291 = vmatpush1.msra.mxu0 0.0
        %4292 = vmatprep.subr.mxu0 0.0
        %4293 = vmatpush1.msra.mxu0 0.0
        %4294 = vmatprep.subr.mxu0 0.0
        %4295 = vmatpush1.msra.mxu0 0.0
        %4296 = vmatprep.subr.mxu0 0.0
        %4297 = vmatpush1.msra.mxu0 0.0
        %4298 = vmatprep.subr.mxu0 0.0
        %4299 = vmatpush1.msra.mxu0 0.0
        %4300 = vmatprep.subr.mxu0 0.0
        %4301 = vmatpush1.msra.mxu0 0.0
        %4302 = vmatprep.subr.mxu0 0.0
        %4303 = vmatpush1.msra.mxu0 0.0
        %4304 = vmatprep.subr.mxu0 0.0
        %4305 = vmatpush1.msra.mxu0 0.0
        %4306 = vmatprep.subr.mxu0 0.0
        %4307 = vmatpush1.msra.mxu0 0.0
        %4308 = vmatprep.subr.mxu0 0.0
        %4309 = vmatpush1.msra.mxu0 0.0
        %4310 = vmatprep.subr.mxu0 0.0
        %4311 = vmatpush1.msra.mxu0 0.0
        %4312 = vmatprep.subr.mxu0 0.0
        %4313 = vmatpush1.msra.mxu0 0.0
        %4314 = vmatprep.subr.mxu0 0.0
        %4315 = vmatpush1.msra.mxu0 0.0
        %4316 = vmatprep.mubr.f32.mxu0 0.0
        %4317 = vmatmul.mubr.f32.gmra.mrb[0].mxu0 %v4250
        %v4318 = vpop.f32.mrb[0].mxu0
        %v4319 = vadd.f32 0.0, %v4318
        %v4320 = vpop.f32.mrb[0].mxu0
        %4321 = vdwg.mxu0
        %v4323 = vsel %vm4202, %v4238, 0
        %4325 = vmatprep.subr.mxu0 0.0
        %4326 = vmatpush1.msra.mxu0 %v4239
        %4327 = vmatprep.subr.mxu0 0.0
        %4328 = vmatpush1.msra.mxu0 %v4240
        %4329 = vmatprep.subr.mxu0 0.0
        %4330 = vmatpush1.msra.mxu0 %v4241
        %4331 = vmatprep.subr.mxu0 0.0
        %4332 = vmatpush1.msra.mxu0 %v4242
        %4333 = vmatprep.subr.mxu0 0.0
        %4334 = vmatpush1.msra.mxu0 0.0
        %4335 = vmatprep.subr.mxu0 0.0
        %4336 = vmatpush1.msra.mxu0 0.0
        %4337 = vmatprep.subr.mxu0 0.0
        %4338 = vmatpush1.msra.mxu0 0.0
        %4339 = vmatprep.subr.mxu0 0.0
        %4340 = vmatpush1.msra.mxu0 0.0
        %4341 = vmatprep.subr.mxu0 0.0
        %4342 = vmatpush1.msra.mxu0 0.0
        %4343 = vmatprep.subr.mxu0 0.0
        %4344 = vmatpush1.msra.mxu0 0.0
        %4345 = vmatprep.subr.mxu0 0.0
        %4346 = vmatpush1.msra.mxu0 0.0
        %4347 = vmatprep.subr.mxu0 0.0
        %4348 = vmatpush1.msra.mxu0 0.0
        %4349 = vmatprep.subr.mxu0 0.0
        %4350 = vmatpush1.msra.mxu0 0.0
        %4351 = vmatprep.subr.mxu0 0.0
        %4352 = vmatpush1.msra.mxu0 0.0
        %4353 = vmatprep.subr.mxu0 0.0
        %4354 = vmatpush1.msra.mxu0 0.0
        %4355 = vmatprep.subr.mxu0 0.0
        %4356 = vmatpush1.msra.mxu0 0.0
        %4357 = vmatprep.subr.mxu0 0.0
        %4358 = vmatpush1.msra.mxu0 0.0
        %4359 = vmatprep.subr.mxu0 0.0
        %4360 = vmatpush1.msra.mxu0 0.0
        %4361 = vmatprep.subr.mxu0 0.0
        %4362 = vmatpush1.msra.mxu0 0.0
        %4363 = vmatprep.subr.mxu0 0.0
        %4364 = vmatpush1.msra.mxu0 0.0
        %4365 = vmatprep.subr.mxu0 0.0
        %4366 = vmatpush1.msra.mxu0 0.0
        %4367 = vmatprep.subr.mxu0 0.0
        %4368 = vmatpush1.msra.mxu0 0.0
        %4369 = vmatprep.subr.mxu0 0.0
        %4370 = vmatpush1.msra.mxu0 0.0
        %4371 = vmatprep.subr.mxu0 0.0
        %4372 = vmatpush1.msra.mxu0 0.0
        %4373 = vmatprep.subr.mxu0 0.0
        %4374 = vmatpush1.msra.mxu0 0.0
        %4375 = vmatprep.subr.mxu0 0.0
        %4376 = vmatpush1.msra.mxu0 0.0
        %4377 = vmatprep.subr.mxu0 0.0
        %4378 = vmatpush1.msra.mxu0 0.0
        %4379 = vmatprep.subr.mxu0 0.0
        %4380 = vmatpush1.msra.mxu0 0.0
        %4381 = vmatprep.subr.mxu0 0.0
        %4382 = vmatpush1.msra.mxu0 0.0
        %4383 = vmatprep.subr.mxu0 0.0
        %4384 = vmatpush1.msra.mxu0 0.0
        %4385 = vmatprep.subr.mxu0 0.0
        %4386 = vmatpush1.msra.mxu0 0.0
        %4387 = vmatprep.subr.mxu0 0.0
        %4388 = vmatpush1.msra.mxu0 0.0
        %4389 = vmatprep.mubr.f32.mxu0 0.0
        %4390 = vmatmul.mubr.f32.gmra.mrb[0].mxu0 %v4323
        %v4391 = vpop.f32.mrb[0].mxu0
        %v4392 = vadd.f32 %v4319, %v4391
        %v4393 = vpop.f32.mrb[0].mxu0
        %4394 = vdwg.mxu0
        %v4395 = vld [vmem:[#allocation7 + $0x2] sm:$0x1]
        %s4396 = scalar_lea.vmem %s5, 64
        %v4397 = vld [vmem:[%s4396] sm:$0xff]
        %v4398 = vld [vmem:[%s4396 + $0x8] sm:$0xff]
        %v4399 = vld [vmem:[%s4396 + $0x10] sm:$0xff]
        %v4400 = vld [vmem:[%s4396 + $0x18] sm:$0xff]
        %v4402 = vsel %vm4202, %v4395, 0
        %4404 = vmatprep.subr.mxu0 0.0
        %4405 = vmatpush1.msra.mxu0 %v4397
        %4406 = vmatprep.subr.mxu0 0.0
        %4407 = vmatpush1.msra.mxu0 %v4398
        %4408 = vmatprep.subr.mxu0 0.0
        %4409 = vmatpush1.msra.mxu0 %v4399
        %4410 = vmatprep.subr.mxu0 0.0
        %4411 = vmatpush1.msra.mxu0 %v4400
        %4412 = vmatprep.subr.mxu0 0.0
        %4413 = vmatpush1.msra.mxu0 0.0
        %4414 = vmatprep.subr.mxu0 0.0
        %4415 = vmatpush1.msra.mxu0 0.0
        %4416 = vmatprep.subr.mxu0 0.0
        %4417 = vmatpush1.msra.mxu0 0.0
        %4418 = vmatprep.subr.mxu0 0.0
        %4419 = vmatpush1.msra.mxu0 0.0
        %4420 = vmatprep.subr.mxu0 0.0
        %4421 = vmatpush1.msra.mxu0 0.0
        %4422 = vmatprep.subr.mxu0 0.0
        %4423 = vmatpush1.msra.mxu0 0.0
        %4424 = vmatprep.subr.mxu0 0.0
        %4425 = vmatpush1.msra.mxu0 0.0
        %4426 = vmatprep.subr.mxu0 0.0
        %4427 = vmatpush1.msra.mxu0 0.0
        %4428 = vmatprep.subr.mxu0 0.0
        %4429 = vmatpush1.msra.mxu0 0.0
        %4430 = vmatprep.subr.mxu0 0.0
        %4431 = vmatpush1.msra.mxu0 0.0
        %4432 = vmatprep.subr.mxu0 0.0
        %4433 = vmatpush1.msra.mxu0 0.0
        %4434 = vmatprep.subr.mxu0 0.0
        %4435 = vmatpush1.msra.mxu0 0.0
        %4436 = vmatprep.subr.mxu0 0.0
        %4437 = vmatpush1.msra.mxu0 0.0
        %4438 = vmatprep.subr.mxu0 0.0
        %4439 = vmatpush1.msra.mxu0 0.0
        %4440 = vmatprep.subr.mxu0 0.0
        %4441 = vmatpush1.msra.mxu0 0.0
        %4442 = vmatprep.subr.mxu0 0.0
        %4443 = vmatpush1.msra.mxu0 0.0
        %4444 = vmatprep.subr.mxu0 0.0
        %4445 = vmatpush1.msra.mxu0 0.0
        %4446 = vmatprep.subr.mxu0 0.0
        %4447 = vmatpush1.msra.mxu0 0.0
        %4448 = vmatprep.subr.mxu0 0.0
        %4449 = vmatpush1.msra.mxu0 0.0
        %4450 = vmatprep.subr.mxu0 0.0
        %4451 = vmatpush1.msra.mxu0 0.0
        %4452 = vmatprep.subr.mxu0 0.0
        %4453 = vmatpush1.msra.mxu0 0.0
        %4454 = vmatprep.subr.mxu0 0.0
        %4455 = vmatpush1.msra.mxu0 0.0
        %4456 = vmatprep.subr.mxu0 0.0
        %4457 = vmatpush1.msra.mxu0 0.0
        %4458 = vmatprep.subr.mxu0 0.0
        %4459 = vmatpush1.msra.mxu0 0.0
        %4460 = vmatprep.subr.mxu0 0.0
        %4461 = vmatpush1.msra.mxu0 0.0
        %4462 = vmatprep.subr.mxu0 0.0
        %4463 = vmatpush1.msra.mxu0 0.0
        %4464 = vmatprep.subr.mxu0 0.0
        %4465 = vmatpush1.msra.mxu0 0.0
        %4466 = vmatprep.subr.mxu0 0.0
        %4467 = vmatpush1.msra.mxu0 0.0
        %4468 = vmatprep.mubr.f32.mxu0 0.0
        %4469 = vmatmul.mubr.f32.gmra.mrb[0].mxu0 %v4402
        %v4470 = vpop.f32.mrb[0].mxu0
        %v4471 = vadd.f32 0.0, %v4470
        %v4472 = vpop.f32.mrb[0].mxu0
        %4473 = vdwg.mxu0
        %v4474 = vadd.f32 %v4392, %v4471
        %v4475 = vld [vmem:[#allocation7 + $0x3] sm:$0x1]
        %s4476 = scalar_lea.vmem %s5, 96
        %v4477 = vld [vmem:[%s4476] sm:$0xff]
        %v4478 = vld [vmem:[%s4476 + $0x8] sm:$0xff]
        %v4479 = vld [vmem:[%s4476 + $0x10] sm:$0xff]
        %v4480 = vld [vmem:[%s4476 + $0x18] sm:$0xff]
        %v4482 = vsel %vm4202, %v4475, 0
        %4484 = vmatprep.subr.mxu0 0.0
        %4485 = vmatpush1.msra.mxu0 %v4477
        %4486 = vmatprep.subr.mxu0 0.0
        %4487 = vmatpush1.msra.mxu0 %v4478
        %4488 = vmatprep.subr.mxu0 0.0
        %4489 = vmatpush1.msra.mxu0 %v4479
        %4490 = vmatprep.subr.mxu0 0.0
        %4491 = vmatpush1.msra.mxu0 %v4480
        %4492 = vmatprep.subr.mxu0 0.0
        %4493 = vmatpush1.msra.mxu0 0.0
        %4494 = vmatprep.subr.mxu0 0.0
        %4495 = vmatpush1.msra.mxu0 0.0
        %4496 = vmatprep.subr.mxu0 0.0
        %4497 = vmatpush1.msra.mxu0 0.0
        %4498 = vmatprep.subr.mxu0 0.0
        %4499 = vmatpush1.msra.mxu0 0.0
        %4500 = vmatprep.subr.mxu0 0.0
        %4501 = vmatpush1.msra.mxu0 0.0
        %4502 = vmatprep.subr.mxu0 0.0
        %4503 = vmatpush1.msra.mxu0 0.0
        %4504 = vmatprep.subr.mxu0 0.0
        %4505 = vmatpush1.msra.mxu0 0.0
        %4506 = vmatprep.subr.mxu0 0.0
        %4507 = vmatpush1.msra.mxu0 0.0
        %4508 = vmatprep.subr.mxu0 0.0
        %4509 = vmatpush1.msra.mxu0 0.0
        %4510 = vmatprep.subr.mxu0 0.0
        %4511 = vmatpush1.msra.mxu0 0.0
        %4512 = vmatprep.subr.mxu0 0.0
        %4513 = vmatpush1.msra.mxu0 0.0
        %4514 = vmatprep.subr.mxu0 0.0
        %4515 = vmatpush1.msra.mxu0 0.0
        %4516 = vmatprep.subr.mxu0 0.0
        %4517 = vmatpush1.msra.mxu0 0.0
        %4518 = vmatprep.subr.mxu0 0.0
        %4519 = vmatpush1.msra.mxu0 0.0
        %4520 = vmatprep.subr.mxu0 0.0
        %4521 = vmatpush1.msra.mxu0 0.0
        %4522 = vmatprep.subr.mxu0 0.0
        %4523 = vmatpush1.msra.mxu0 0.0
        %4524 = vmatprep.subr.mxu0 0.0
        %4525 = vmatpush1.msra.mxu0 0.0
        %4526 = vmatprep.subr.mxu0 0.0
        %4527 = vmatpush1.msra.mxu0 0.0
        %4528 = vmatprep.subr.mxu0 0.0
        %4529 = vmatpush1.msra.mxu0 0.0
        %4530 = vmatprep.subr.mxu0 0.0
        %4531 = vmatpush1.msra.mxu0 0.0
        %4532 = vmatprep.subr.mxu0 0.0
        %4533 = vmatpush1.msra.mxu0 0.0
        %4534 = vmatprep.subr.mxu0 0.0
        %4535 = vmatpush1.msra.mxu0 0.0
        %4536 = vmatprep.subr.mxu0 0.0
        %4537 = vmatpush1.msra.mxu0 0.0
        %4538 = vmatprep.subr.mxu0 0.0
        %4539 = vmatpush1.msra.mxu0 0.0
        %4540 = vmatprep.subr.mxu0 0.0
        %4541 = vmatpush1.msra.mxu0 0.0
        %4542 = vmatprep.subr.mxu0 0.0
        %4543 = vmatpush1.msra.mxu0 0.0
        %4544 = vmatprep.subr.mxu0 0.0
        %4545 = vmatpush1.msra.mxu0 0.0
        %4546 = vmatprep.subr.mxu0 0.0
        %4547 = vmatpush1.msra.mxu0 0.0
        %4548 = vmatprep.mubr.f32.mxu0 0.0
        %4549 = vmatmul.mubr.f32.gmra.mrb[0].mxu0 %v4482
        %v4550 = vpop.f32.mrb[0].mxu0
        %v4551 = vadd.f32 0.0, %v4550
        %v4552 = vpop.f32.mrb[0].mxu0
        %4553 = vdwg.mxu0
        %v4554 = vadd.f32 %v4474, %v4551
        %v4555 = vld [vmem:[#allocation7 + $0x4] sm:$0x1]
        %s4556 = scalar_lea.vmem %s5, 128
        %v4557 = vld [vmem:[%s4556] sm:$0xff]
        %v4558 = vld [vmem:[%s4556 + $0x8] sm:$0xff]
        %v4559 = vld [vmem:[%s4556 + $0x10] sm:$0xff]
        %v4560 = vld [vmem:[%s4556 + $0x18] sm:$0xff]
        %v4562 = vsel %vm4202, %v4555, 0
        %4564 = vmatprep.subr.mxu0 0.0
        %4565 = vmatpush1.msra.mxu0 %v4557
        %4566 = vmatprep.subr.mxu0 0.0
        %4567 = vmatpush1.msra.mxu0 %v4558
        %4568 = vmatprep.subr.mxu0 0.0
        %4569 = vmatpush1.msra.mxu0 %v4559
        %4570 = vmatprep.subr.mxu0 0.0
        %4571 = vmatpush1.msra.mxu0 %v4560
        %4572 = vmatprep.subr.mxu0 0.0
        %4573 = vmatpush1.msra.mxu0 0.0
        %4574 = vmatprep.subr.mxu0 0.0
        %4575 = vmatpush1.msra.mxu0 0.0
        %4576 = vmatprep.subr.mxu0 0.0
        %4577 = vmatpush1.msra.mxu0 0.0
        %4578 = vmatprep.subr.mxu0 0.0
        %4579 = vmatpush1.msra.mxu0 0.0
        %4580 = vmatprep.subr.mxu0 0.0
        %4581 = vmatpush1.msra.mxu0 0.0
        %4582 = vmatprep.subr.mxu0 0.0
        %4583 = vmatpush1.msra.mxu0 0.0
        %4584 = vmatprep.subr.mxu0 0.0
        %4585 = vmatpush1.msra.mxu0 0.0
        %4586 = vmatprep.subr.mxu0 0.0
        %4587 = vmatpush1.msra.mxu0 0.0
        %4588 = vmatprep.subr.mxu0 0.0
        %4589 = vmatpush1.msra.mxu0 0.0
        %4590 = vmatprep.subr.mxu0 0.0
        %4591 = vmatpush1.msra.mxu0 0.0
        %4592 = vmatprep.subr.mxu0 0.0
        %4593 = vmatpush1.msra.mxu0 0.0
        %4594 = vmatprep.subr.mxu0 0.0
        %4595 = vmatpush1.msra.mxu0 0.0
        %4596 = vmatprep.subr.mxu0 0.0
        %4597 = vmatpush1.msra.mxu0 0.0
        %4598 = vmatprep.subr.mxu0 0.0
        %4599 = vmatpush1.msra.mxu0 0.0
        %4600 = vmatprep.subr.mxu0 0.0
        %4601 = vmatpush1.msra.mxu0 0.0
        %4602 = vmatprep.subr.mxu0 0.0
        %4603 = vmatpush1.msra.mxu0 0.0
        %4604 = vmatprep.subr.mxu0 0.0
        %4605 = vmatpush1.msra.mxu0 0.0
        %4606 = vmatprep.subr.mxu0 0.0
        %4607 = vmatpush1.msra.mxu0 0.0
        %4608 = vmatprep.subr.mxu0 0.0
        %4609 = vmatpush1.msra.mxu0 0.0
        %4610 = vmatprep.subr.mxu0 0.0
        %4611 = vmatpush1.msra.mxu0 0.0
        %4612 = vmatprep.subr.mxu0 0.0
        %4613 = vmatpush1.msra.mxu0 0.0
        %4614 = vmatprep.subr.mxu0 0.0
        %4615 = vmatpush1.msra.mxu0 0.0
        %4616 = vmatprep.subr.mxu0 0.0
        %4617 = vmatpush1.msra.mxu0 0.0
        %4618 = vmatprep.subr.mxu0 0.0
        %4619 = vmatpush1.msra.mxu0 0.0
        %4620 = vmatprep.subr.mxu0 0.0
        %4621 = vmatpush1.msra.mxu0 0.0
        %4622 = vmatprep.subr.mxu0 0.0
        %4623 = vmatpush1.msra.mxu0 0.0
        %4624 = vmatprep.subr.mxu0 0.0
        %4625 = vmatpush1.msra.mxu0 0.0
        %4626 = vmatprep.subr.mxu0 0.0
        %4627 = vmatpush1.msra.mxu0 0.0
        %4628 = vmatprep.mubr.f32.mxu0 0.0
        %4629 = vmatmul.mubr.f32.gmra.mrb[0].mxu0 %v4562
        %v4630 = vpop.f32.mrb[0].mxu0
        %v4631 = vadd.f32 0.0, %v4630
        %v4632 = vpop.f32.mrb[0].mxu0
        %4633 = vdwg.mxu0
        %v4634 = vadd.f32 %v4554, %v4631
        %v4635 = vld [vmem:[#allocation7 + $0x5] sm:$0x1]
        %s4636 = scalar_lea.vmem %s5, 160
        %v4637 = vld [vmem:[%s4636] sm:$0xff]
        %v4638 = vld [vmem:[%s4636 + $0x8] sm:$0xff]
        %v4639 = vld [vmem:[%s4636 + $0x10] sm:$0xff]
        %v4640 = vld [vmem:[%s4636 + $0x18] sm:$0xff]
        %v4642 = vsel %vm4202, %v4635, 0
        %4644 = vmatprep.subr.mxu0 0.0
        %4645 = vmatpush1.msra.mxu0 %v4637
        %4646 = vmatprep.subr.mxu0 0.0
        %4647 = vmatpush1.msra.mxu0 %v4638
        %4648 = vmatprep.subr.mxu0 0.0
        %4649 = vmatpush1.msra.mxu0 %v4639
        %4650 = vmatprep.subr.mxu0 0.0
        %4651 = vmatpush1.msra.mxu0 %v4640
        %4652 = vmatprep.subr.mxu0 0.0
        %4653 = vmatpush1.msra.mxu0 0.0
        %4654 = vmatprep.subr.mxu0 0.0
        %4655 = vmatpush1.msra.mxu0 0.0
        %4656 = vmatprep.subr.mxu0 0.0
        %4657 = vmatpush1.msra.mxu0 0.0
        %4658 = vmatprep.subr.mxu0 0.0
        %4659 = vmatpush1.msra.mxu0 0.0
        %4660 = vmatprep.subr.mxu0 0.0
        %4661 = vmatpush1.msra.mxu0 0.0
        %4662 = vmatprep.subr.mxu0 0.0
        %4663 = vmatpush1.msra.mxu0 0.0
        %4664 = vmatprep.subr.mxu0 0.0
        %4665 = vmatpush1.msra.mxu0 0.0
        %4666 = vmatprep.subr.mxu0 0.0
        %4667 = vmatpush1.msra.mxu0 0.0
        %4668 = vmatprep.subr.mxu0 0.0
        %4669 = vmatpush1.msra.mxu0 0.0
        %4670 = vmatprep.subr.mxu0 0.0
        %4671 = vmatpush1.msra.mxu0 0.0
        %4672 = vmatprep.subr.mxu0 0.0
        %4673 = vmatpush1.msra.mxu0 0.0
        %4674 = vmatprep.subr.mxu0 0.0
        %4675 = vmatpush1.msra.mxu0 0.0
        %4676 = vmatprep.subr.mxu0 0.0
        %4677 = vmatpush1.msra.mxu0 0.0
        %4678 = vmatprep.subr.mxu0 0.0
        %4679 = vmatpush1.msra.mxu0 0.0
        %4680 = vmatprep.subr.mxu0 0.0
        %4681 = vmatpush1.msra.mxu0 0.0
        %4682 = vmatprep.subr.mxu0 0.0
        %4683 = vmatpush1.msra.mxu0 0.0
        %4684 = vmatprep.subr.mxu0 0.0
        %4685 = vmatpush1.msra.mxu0 0.0
        %4686 = vmatprep.subr.mxu0 0.0
        %4687 = vmatpush1.msra.mxu0 0.0
        %4688 = vmatprep.subr.mxu0 0.0
        %4689 = vmatpush1.msra.mxu0 0.0
        %4690 = vmatprep.subr.mxu0 0.0
        %4691 = vmatpush1.msra.mxu0 0.0
        %4692 = vmatprep.subr.mxu0 0.0
        %4693 = vmatpush1.msra.mxu0 0.0
        %4694 = vmatprep.subr.mxu0 0.0
        %4695 = vmatpush1.msra.mxu0 0.0
        %4696 = vmatprep.subr.mxu0 0.0
        %4697 = vmatpush1.msra.mxu0 0.0
        %4698 = vmatprep.subr.mxu0 0.0
        %4699 = vmatpush1.msra.mxu0 0.0
        %4700 = vmatprep.subr.mxu0 0.0
        %4701 = vmatpush1.msra.mxu0 0.0
        %4702 = vmatprep.subr.mxu0 0.0
        %4703 = vmatpush1.msra.mxu0 0.0
        %4704 = vmatprep.subr.mxu0 0.0
        %4705 = vmatpush1.msra.mxu0 0.0
        %4706 = vmatprep.subr.mxu0 0.0
        %4707 = vmatpush1.msra.mxu0 0.0
        %4708 = vmatprep.mubr.f32.mxu0 0.0
        %4709 = vmatmul.mubr.f32.gmra.mrb[0].mxu0 %v4642
        %v4710 = vpop.f32.mrb[0].mxu0
        %v4711 = vadd.f32 0.0, %v4710
        %v4712 = vpop.f32.mrb[0].mxu0
        %4713 = vdwg.mxu0
        %v4714 = vadd.f32 %v4634, %v4711
        %v4715 = vld [vmem:[#allocation7 + $0x6] sm:$0x1]
        %s4716 = scalar_lea.vmem %s5, 192
        %v4717 = vld [vmem:[%s4716] sm:$0xff]
        %v4718 = vld [vmem:[%s4716 + $0x8] sm:$0xff]
        %v4719 = vld [vmem:[%s4716 + $0x10] sm:$0xff]
        %v4720 = vld [vmem:[%s4716 + $0x18] sm:$0xff]
        %v4722 = vsel %vm4202, %v4715, 0
        %4724 = vmatprep.subr.mxu0 0.0
        %4725 = vmatpush1.msra.mxu0 %v4717
        %4726 = vmatprep.subr.mxu0 0.0
        %4727 = vmatpush1.msra.mxu0 %v4718
        %4728 = vmatprep.subr.mxu0 0.0
        %4729 = vmatpush1.msra.mxu0 %v4719
        %4730 = vmatprep.subr.mxu0 0.0
        %4731 = vmatpush1.msra.mxu0 %v4720
        %4732 = vmatprep.subr.mxu0 0.0
        %4733 = vmatpush1.msra.mxu0 0.0
        %4734 = vmatprep.subr.mxu0 0.0
        %4735 = vmatpush1.msra.mxu0 0.0
        %4736 = vmatprep.subr.mxu0 0.0
        %4737 = vmatpush1.msra.mxu0 0.0
        %4738 = vmatprep.subr.mxu0 0.0
        %4739 = vmatpush1.msra.mxu0 0.0
        %4740 = vmatprep.subr.mxu0 0.0
        %4741 = vmatpush1.msra.mxu0 0.0
        %4742 = vmatprep.subr.mxu0 0.0
        %4743 = vmatpush1.msra.mxu0 0.0
        %4744 = vmatprep.subr.mxu0 0.0
        %4745 = vmatpush1.msra.mxu0 0.0
        %4746 = vmatprep.subr.mxu0 0.0
        %4747 = vmatpush1.msra.mxu0 0.0
        %4748 = vmatprep.subr.mxu0 0.0
        %4749 = vmatpush1.msra.mxu0 0.0
        %4750 = vmatprep.subr.mxu0 0.0
        %4751 = vmatpush1.msra.mxu0 0.0
        %4752 = vmatprep.subr.mxu0 0.0
        %4753 = vmatpush1.msra.mxu0 0.0
        %4754 = vmatprep.subr.mxu0 0.0
        %4755 = vmatpush1.msra.mxu0 0.0
        %4756 = vmatprep.subr.mxu0 0.0
        %4757 = vmatpush1.msra.mxu0 0.0
        %4758 = vmatprep.subr.mxu0 0.0
        %4759 = vmatpush1.msra.mxu0 0.0
        %4760 = vmatprep.subr.mxu0 0.0
        %4761 = vmatpush1.msra.mxu0 0.0
        %4762 = vmatprep.subr.mxu0 0.0
        %4763 = vmatpush1.msra.mxu0 0.0
        %4764 = vmatprep.subr.mxu0 0.0
        %4765 = vmatpush1.msra.mxu0 0.0
        %4766 = vmatprep.subr.mxu0 0.0
        %4767 = vmatpush1.msra.mxu0 0.0
        %4768 = vmatprep.subr.mxu0 0.0
        %4769 = vmatpush1.msra.mxu0 0.0
        %4770 = vmatprep.subr.mxu0 0.0
        %4771 = vmatpush1.msra.mxu0 0.0
        %4772 = vmatprep.subr.mxu0 0.0
        %4773 = vmatpush1.msra.mxu0 0.0
        %4774 = vmatprep.subr.mxu0 0.0
        %4775 = vmatpush1.msra.mxu0 0.0
        %4776 = vmatprep.subr.mxu0 0.0
        %4777 = vmatpush1.msra.mxu0 0.0
        %4778 = vmatprep.subr.mxu0 0.0
        %4779 = vmatpush1.msra.mxu0 0.0
        %4780 = vmatprep.subr.mxu0 0.0
        %4781 = vmatpush1.msra.mxu0 0.0
        %4782 = vmatprep.subr.mxu0 0.0
        %4783 = vmatpush1.msra.mxu0 0.0
        %4784 = vmatprep.subr.mxu0 0.0
        %4785 = vmatpush1.msra.mxu0 0.0
        %4786 = vmatprep.subr.mxu0 0.0
        %4787 = vmatpush1.msra.mxu0 0.0
        %4788 = vmatprep.mubr.f32.mxu0 0.0
        %4789 = vmatmul.mubr.f32.gmra.mrb[0].mxu0 %v4722
        %v4790 = vpop.f32.mrb[0].mxu0
        %v4791 = vadd.f32 0.0, %v4790
        %v4792 = vpop.f32.mrb[0].mxu0
        %4793 = vdwg.mxu0
        %v4794 = vadd.f32 %v4714, %v4791
        %v4795 = vld [vmem:[#allocation7 + $0x7] sm:$0x1]
        %s4796 = scalar_lea.vmem %s5, 224
        %v4797 = vld [vmem:[%s4796] sm:$0xff]
        %v4798 = vld [vmem:[%s4796 + $0x8] sm:$0xff]
        %v4799 = vld [vmem:[%s4796 + $0x10] sm:$0xff]
        %v4800 = vld [vmem:[%s4796 + $0x18] sm:$0xff]
        %v4802 = vsel %vm4202, %v4795, 0
        %4804 = vmatprep.subr.mxu0 0.0
        %4805 = vmatpush1.msra.mxu0 %v4797
        %4806 = vmatprep.subr.mxu0 0.0
        %4807 = vmatpush1.msra.mxu0 %v4798
        %4808 = vmatprep.subr.mxu0 0.0
        %4809 = vmatpush1.msra.mxu0 %v4799
        %4810 = vmatprep.subr.mxu0 0.0
        %4811 = vmatpush1.msra.mxu0 %v4800
        %4812 = vmatprep.subr.mxu0 0.0
        %4813 = vmatpush1.msra.mxu0 0.0
        %4814 = vmatprep.subr.mxu0 0.0
        %4815 = vmatpush1.msra.mxu0 0.0
        %4816 = vmatprep.subr.mxu0 0.0
        %4817 = vmatpush1.msra.mxu0 0.0
        %4818 = vmatprep.subr.mxu0 0.0
        %4819 = vmatpush1.msra.mxu0 0.0
        %4820 = vmatprep.subr.mxu0 0.0
        %4821 = vmatpush1.msra.mxu0 0.0
        %4822 = vmatprep.subr.mxu0 0.0
        %4823 = vmatpush1.msra.mxu0 0.0
        %4824 = vmatprep.subr.mxu0 0.0
        %4825 = vmatpush1.msra.mxu0 0.0
        %4826 = vmatprep.subr.mxu0 0.0
        %4827 = vmatpush1.msra.mxu0 0.0
        %4828 = vmatprep.subr.mxu0 0.0
        %4829 = vmatpush1.msra.mxu0 0.0
        %4830 = vmatprep.subr.mxu0 0.0
        %4831 = vmatpush1.msra.mxu0 0.0
        %4832 = vmatprep.subr.mxu0 0.0
        %4833 = vmatpush1.msra.mxu0 0.0
        %4834 = vmatprep.subr.mxu0 0.0
        %4835 = vmatpush1.msra.mxu0 0.0
        %4836 = vmatprep.subr.mxu0 0.0
        %4837 = vmatpush1.msra.mxu0 0.0
        %4838 = vmatprep.subr.mxu0 0.0
        %4839 = vmatpush1.msra.mxu0 0.0
        %4840 = vmatprep.subr.mxu0 0.0
        %4841 = vmatpush1.msra.mxu0 0.0
        %4842 = vmatprep.subr.mxu0 0.0
        %4843 = vmatpush1.msra.mxu0 0.0
        %4844 = vmatprep.subr.mxu0 0.0
        %4845 = vmatpush1.msra.mxu0 0.0
        %4846 = vmatprep.subr.mxu0 0.0
        %4847 = vmatpush1.msra.mxu0 0.0
        %4848 = vmatprep.subr.mxu0 0.0
        %4849 = vmatpush1.msra.mxu0 0.0
        %4850 = vmatprep.subr.mxu0 0.0
        %4851 = vmatpush1.msra.mxu0 0.0
        %4852 = vmatprep.subr.mxu0 0.0
        %4853 = vmatpush1.msra.mxu0 0.0
        %4854 = vmatprep.subr.mxu0 0.0
        %4855 = vmatpush1.msra.mxu0 0.0
        %4856 = vmatprep.subr.mxu0 0.0
        %4857 = vmatpush1.msra.mxu0 0.0
        %4858 = vmatprep.subr.mxu0 0.0
        %4859 = vmatpush1.msra.mxu0 0.0
        %4860 = vmatprep.subr.mxu0 0.0
        %4861 = vmatpush1.msra.mxu0 0.0
        %4862 = vmatprep.subr.mxu0 0.0
        %4863 = vmatpush1.msra.mxu0 0.0
        %4864 = vmatprep.subr.mxu0 0.0
        %4865 = vmatpush1.msra.mxu0 0.0
        %4866 = vmatprep.subr.mxu0 0.0
        %4867 = vmatpush1.msra.mxu0 0.0
        %4868 = vmatprep.mubr.f32.mxu0 0.0
        %4869 = vmatmul.mubr.f32.gmra.mrb[0].mxu0 %v4802
        %v4870 = vpop.f32.mrb[0].mxu0
        %v4871 = vadd.f32 0.0, %v4870
        %v4872 = vpop.f32.mrb[0].mxu0
        %4873 = vdwg.mxu0
        %v4874 = vadd.f32 %v4794, %v4871
        %v4875 = vld [vmem:[#allocation7 + $0x8] sm:$0x1]
        %s4876 = scalar_lea.vmem %s5, 256
        %v4877 = vld [vmem:[%s4876] sm:$0xff]
        %v4878 = vld [vmem:[%s4876 + $0x8] sm:$0xff]
        %v4879 = vld [vmem:[%s4876 + $0x10] sm:$0xff]
        %v4880 = vld [vmem:[%s4876 + $0x18] sm:$0xff]
        %v4882 = vsel %vm4202, %v4875, 0
        %4884 = vmatprep.subr.mxu0 0.0
        %4885 = vmatpush1.msra.mxu0 %v4877
        %4886 = vmatprep.subr.mxu0 0.0
        %4887 = vmatpush1.msra.mxu0 %v4878
        %4888 = vmatprep.subr.mxu0 0.0
        %4889 = vmatpush1.msra.mxu0 %v4879
        %4890 = vmatprep.subr.mxu0 0.0
        %4891 = vmatpush1.msra.mxu0 %v4880
        %4892 = vmatprep.subr.mxu0 0.0
        %4893 = vmatpush1.msra.mxu0 0.0
        %4894 = vmatprep.subr.mxu0 0.0
        %4895 = vmatpush1.msra.mxu0 0.0
        %4896 = vmatprep.subr.mxu0 0.0
        %4897 = vmatpush1.msra.mxu0 0.0
        %4898 = vmatprep.subr.mxu0 0.0
        %4899 = vmatpush1.msra.mxu0 0.0
        %4900 = vmatprep.subr.mxu0 0.0
        %4901 = vmatpush1.msra.mxu0 0.0
        %4902 = vmatprep.subr.mxu0 0.0
        %4903 = vmatpush1.msra.mxu0 0.0
        %4904 = vmatprep.subr.mxu0 0.0
        %4905 = vmatpush1.msra.mxu0 0.0
        %4906 = vmatprep.subr.mxu0 0.0
        %4907 = vmatpush1.msra.mxu0 0.0
        %4908 = vmatprep.subr.mxu0 0.0
        %4909 = vmatpush1.msra.mxu0 0.0
        %4910 = vmatprep.subr.mxu0 0.0
        %4911 = vmatpush1.msra.mxu0 0.0
        %4912 = vmatprep.subr.mxu0 0.0
        %4913 = vmatpush1.msra.mxu0 0.0
        %4914 = vmatprep.subr.mxu0 0.0
        %4915 = vmatpush1.msra.mxu0 0.0
        %4916 = vmatprep.subr.mxu0 0.0
        %4917 = vmatpush1.msra.mxu0 0.0
        %4918 = vmatprep.subr.mxu0 0.0
        %4919 = vmatpush1.msra.mxu0 0.0
        %4920 = vmatprep.subr.mxu0 0.0
        %4921 = vmatpush1.msra.mxu0 0.0
        %4922 = vmatprep.subr.mxu0 0.0
        %4923 = vmatpush1.msra.mxu0 0.0
        %4924 = vmatprep.subr.mxu0 0.0
        %4925 = vmatpush1.msra.mxu0 0.0
        %4926 = vmatprep.subr.mxu0 0.0
        %4927 = vmatpush1.msra.mxu0 0.0
        %4928 = vmatprep.subr.mxu0 0.0
        %4929 = vmatpush1.msra.mxu0 0.0
        %4930 = vmatprep.subr.mxu0 0.0
        %4931 = vmatpush1.msra.mxu0 0.0
        %4932 = vmatprep.subr.mxu0 0.0
        %4933 = vmatpush1.msra.mxu0 0.0
        %4934 = vmatprep.subr.mxu0 0.0
        %4935 = vmatpush1.msra.mxu0 0.0
        %4936 = vmatprep.subr.mxu0 0.0
        %4937 = vmatpush1.msra.mxu0 0.0
        %4938 = vmatprep.subr.mxu0 0.0
        %4939 = vmatpush1.msra.mxu0 0.0
        %4940 = vmatprep.subr.mxu0 0.0
        %4941 = vmatpush1.msra.mxu0 0.0
        %4942 = vmatprep.subr.mxu0 0.0
        %4943 = vmatpush1.msra.mxu0 0.0
        %4944 = vmatprep.subr.mxu0 0.0
        %4945 = vmatpush1.msra.mxu0 0.0
        %4946 = vmatprep.subr.mxu0 0.0
        %4947 = vmatpush1.msra.mxu0 0.0
        %4948 = vmatprep.mubr.f32.mxu0 0.0
        %4949 = vmatmul.mubr.f32.gmra.mrb[0].mxu0 %v4882
        %v4950 = vpop.f32.mrb[0].mxu0
        %v4951 = vadd.f32 0.0, %v4950
        %v4952 = vpop.f32.mrb[0].mxu0
        %4953 = vdwg.mxu0
        %v4954 = vadd.f32 %v4874, %v4951
        %v4955 = vld [vmem:[#allocation7 + $0x9] sm:$0x1]
        %s4956 = scalar_lea.vmem %s5, 288
        %v4957 = vld [vmem:[%s4956] sm:$0xff]
        %v4958 = vld [vmem:[%s4956 + $0x8] sm:$0xff]
        %v4959 = vld [vmem:[%s4956 + $0x10] sm:$0xff]
        %v4960 = vld [vmem:[%s4956 + $0x18] sm:$0xff]
        %v4962 = vsel %vm4202, %v4955, 0
        %4964 = vmatprep.subr.mxu0 0.0
        %4965 = vmatpush1.msra.mxu0 %v4957
        %4966 = vmatprep.subr.mxu0 0.0
        %4967 = vmatpush1.msra.mxu0 %v4958
        %4968 = vmatprep.subr.mxu0 0.0
        %4969 = vmatpush1.msra.mxu0 %v4959
        %4970 = vmatprep.subr.mxu0 0.0
        %4971 = vmatpush1.msra.mxu0 %v4960
        %4972 = vmatprep.subr.mxu0 0.0
        %4973 = vmatpush1.msra.mxu0 0.0
        %4974 = vmatprep.subr.mxu0 0.0
        %4975 = vmatpush1.msra.mxu0 0.0
        %4976 = vmatprep.subr.mxu0 0.0
        %4977 = vmatpush1.msra.mxu0 0.0
        %4978 = vmatprep.subr.mxu0 0.0
        %4979 = vmatpush1.msra.mxu0 0.0
        %4980 = vmatprep.subr.mxu0 0.0
        %4981 = vmatpush1.msra.mxu0 0.0
        %4982 = vmatprep.subr.mxu0 0.0
        %4983 = vmatpush1.msra.mxu0 0.0
        %4984 = vmatprep.subr.mxu0 0.0
        %4985 = vmatpush1.msra.mxu0 0.0
        %4986 = vmatprep.subr.mxu0 0.0
        %4987 = vmatpush1.msra.mxu0 0.0
        %4988 = vmatprep.subr.mxu0 0.0
        %4989 = vmatpush1.msra.mxu0 0.0
        %4990 = vmatprep.subr.mxu0 0.0
        %4991 = vmatpush1.msra.mxu0 0.0
        %4992 = vmatprep.subr.mxu0 0.0
        %4993 = vmatpush1.msra.mxu0 0.0
        %4994 = vmatprep.subr.mxu0 0.0
        %4995 = vmatpush1.msra.mxu0 0.0
        %4996 = vmatprep.subr.mxu0 0.0
        %4997 = vmatpush1.msra.mxu0 0.0
        %4998 = vmatprep.subr.mxu0 0.0
        %4999 = vmatpush1.msra.mxu0 0.0
        %5000 = vmatprep.subr.mxu0 0.0
        %5001 = vmatpush1.msra.mxu0 0.0
        %5002 = vmatprep.subr.mxu0 0.0
        %5003 = vmatpush1.msra.mxu0 0.0
        %5004 = vmatprep.subr.mxu0 0.0
        %5005 = vmatpush1.msra.mxu0 0.0
        %5006 = vmatprep.subr.mxu0 0.0
        %5007 = vmatpush1.msra.mxu0 0.0
        %5008 = vmatprep.subr.mxu0 0.0
        %5009 = vmatpush1.msra.mxu0 0.0
        %5010 = vmatprep.subr.mxu0 0.0
        %5011 = vmatpush1.msra.mxu0 0.0
        %5012 = vmatprep.subr.mxu0 0.0
        %5013 = vmatpush1.msra.mxu0 0.0
        %5014 = vmatprep.subr.mxu0 0.0
        %5015 = vmatpush1.msra.mxu0 0.0
        %5016 = vmatprep.subr.mxu0 0.0
        %5017 = vmatpush1.msra.mxu0 0.0
        %5018 = vmatprep.subr.mxu0 0.0
        %5019 = vmatpush1.msra.mxu0 0.0
        %5020 = vmatprep.subr.mxu0 0.0
        %5021 = vmatpush1.msra.mxu0 0.0
        %5022 = vmatprep.subr.mxu0 0.0
        %5023 = vmatpush1.msra.mxu0 0.0
        %5024 = vmatprep.subr.mxu0 0.0
        %5025 = vmatpush1.msra.mxu0 0.0
        %5026 = vmatprep.subr.mxu0 0.0
        %5027 = vmatpush1.msra.mxu0 0.0
        %5028 = vmatprep.mubr.f32.mxu0 0.0
        %5029 = vmatmul.mubr.f32.gmra.mrb[0].mxu0 %v4962
        %v5030 = vpop.f32.mrb[0].mxu0
        %v5031 = vadd.f32 0.0, %v5030
        %v5032 = vpop.f32.mrb[0].mxu0
        %5033 = vdwg.mxu0
        %v5034 = vadd.f32 %v4954, %v5031
        %v5035 = vld [vmem:[#allocation7 + $0xa] sm:$0x1]
        %s5036 = scalar_lea.vmem %s5, 320
        %v5037 = vld [vmem:[%s5036] sm:$0xff]
        %v5038 = vld [vmem:[%s5036 + $0x8] sm:$0xff]
        %v5039 = vld [vmem:[%s5036 + $0x10] sm:$0xff]
        %v5040 = vld [vmem:[%s5036 + $0x18] sm:$0xff]
        %v5042 = vsel %vm4202, %v5035, 0
        %5044 = vmatprep.subr.mxu0 0.0
        %5045 = vmatpush1.msra.mxu0 %v5037
        %5046 = vmatprep.subr.mxu0 0.0
        %5047 = vmatpush1.msra.mxu0 %v5038
        %5048 = vmatprep.subr.mxu0 0.0
        %5049 = vmatpush1.msra.mxu0 %v5039
        %5050 = vmatprep.subr.mxu0 0.0
        %5051 = vmatpush1.msra.mxu0 %v5040
        %5052 = vmatprep.subr.mxu0 0.0
        %5053 = vmatpush1.msra.mxu0 0.0
        %5054 = vmatprep.subr.mxu0 0.0
        %5055 = vmatpush1.msra.mxu0 0.0
        %5056 = vmatprep.subr.mxu0 0.0
        %5057 = vmatpush1.msra.mxu0 0.0
        %5058 = vmatprep.subr.mxu0 0.0
        %5059 = vmatpush1.msra.mxu0 0.0
        %5060 = vmatprep.subr.mxu0 0.0
        %5061 = vmatpush1.msra.mxu0 0.0
        %5062 = vmatprep.subr.mxu0 0.0
        %5063 = vmatpush1.msra.mxu0 0.0
        %5064 = vmatprep.subr.mxu0 0.0
        %5065 = vmatpush1.msra.mxu0 0.0
        %5066 = vmatprep.subr.mxu0 0.0
        %5067 = vmatpush1.msra.mxu0 0.0
        %5068 = vmatprep.subr.mxu0 0.0
        %5069 = vmatpush1.msra.mxu0 0.0
        %5070 = vmatprep.subr.mxu0 0.0
        %5071 = vmatpush1.msra.mxu0 0.0
        %5072 = vmatprep.subr.mxu0 0.0
        %5073 = vmatpush1.msra.mxu0 0.0
        %5074 = vmatprep.subr.mxu0 0.0
        %5075 = vmatpush1.msra.mxu0 0.0
        %5076 = vmatprep.subr.mxu0 0.0
        %5077 = vmatpush1.msra.mxu0 0.0
        %5078 = vmatprep.subr.mxu0 0.0
        %5079 = vmatpush1.msra.mxu0 0.0
        %5080 = vmatprep.subr.mxu0 0.0
        %5081 = vmatpush1.msra.mxu0 0.0
        %5082 = vmatprep.subr.mxu0 0.0
        %5083 = vmatpush1.msra.mxu0 0.0
        %5084 = vmatprep.subr.mxu0 0.0
        %5085 = vmatpush1.msra.mxu0 0.0
        %5086 = vmatprep.subr.mxu0 0.0
        %5087 = vmatpush1.msra.mxu0 0.0
        %5088 = vmatprep.subr.mxu0 0.0
        %5089 = vmatpush1.msra.mxu0 0.0
        %5090 = vmatprep.subr.mxu0 0.0
        %5091 = vmatpush1.msra.mxu0 0.0
        %5092 = vmatprep.subr.mxu0 0.0
        %5093 = vmatpush1.msra.mxu0 0.0
        %5094 = vmatprep.subr.mxu0 0.0
        %5095 = vmatpush1.msra.mxu0 0.0
        %5096 = vmatprep.subr.mxu0 0.0
        %5097 = vmatpush1.msra.mxu0 0.0
        %5098 = vmatprep.subr.mxu0 0.0
        %5099 = vmatpush1.msra.mxu0 0.0
        %5100 = vmatprep.subr.mxu0 0.0
        %5101 = vmatpush1.msra.mxu0 0.0
        %5102 = vmatprep.subr.mxu0 0.0
        %5103 = vmatpush1.msra.mxu0 0.0
        %5104 = vmatprep.subr.mxu0 0.0
        %5105 = vmatpush1.msra.mxu0 0.0
        %5106 = vmatprep.subr.mxu0 0.0
        %5107 = vmatpush1.msra.mxu0 0.0
        %5108 = vmatprep.mubr.f32.mxu0 0.0
        %5109 = vmatmul.mubr.f32.gmra.mrb[0].mxu0 %v5042
        %v5110 = vpop.f32.mrb[0].mxu0
        %v5111 = vadd.f32 0.0, %v5110
        %v5112 = vpop.f32.mrb[0].mxu0
        %5113 = vdwg.mxu0
        %v5114 = vadd.f32 %v5034, %v5111
        %v5115 = vld [vmem:[#allocation7 + $0xb] sm:$0x1]
        %s5116 = scalar_lea.vmem %s5, 352
        %v5117 = vld [vmem:[%s5116] sm:$0xff]
        %v5118 = vld [vmem:[%s5116 + $0x8] sm:$0xff]
        %v5119 = vld [vmem:[%s5116 + $0x10] sm:$0xff]
        %v5120 = vld [vmem:[%s5116 + $0x18] sm:$0xff]
        %v5122 = vsel %vm4202, %v5115, 0
        %5124 = vmatprep.subr.mxu0 0.0
        %5125 = vmatpush1.msra.mxu0 %v5117
        %5126 = vmatprep.subr.mxu0 0.0
        %5127 = vmatpush1.msra.mxu0 %v5118
        %5128 = vmatprep.subr.mxu0 0.0
        %5129 = vmatpush1.msra.mxu0 %v5119
        %5130 = vmatprep.subr.mxu0 0.0
        %5131 = vmatpush1.msra.mxu0 %v5120
        %5132 = vmatprep.subr.mxu0 0.0
        %5133 = vmatpush1.msra.mxu0 0.0
        %5134 = vmatprep.subr.mxu0 0.0
        %5135 = vmatpush1.msra.mxu0 0.0
        %5136 = vmatprep.subr.mxu0 0.0
        %5137 = vmatpush1.msra.mxu0 0.0
        %5138 = vmatprep.subr.mxu0 0.0
        %5139 = vmatpush1.msra.mxu0 0.0
        %5140 = vmatprep.subr.mxu0 0.0
        %5141 = vmatpush1.msra.mxu0 0.0
        %5142 = vmatprep.subr.mxu0 0.0
        %5143 = vmatpush1.msra.mxu0 0.0
        %5144 = vmatprep.subr.mxu0 0.0
        %5145 = vmatpush1.msra.mxu0 0.0
        %5146 = vmatprep.subr.mxu0 0.0
        %5147 = vmatpush1.msra.mxu0 0.0
        %5148 = vmatprep.subr.mxu0 0.0
        %5149 = vmatpush1.msra.mxu0 0.0
        %5150 = vmatprep.subr.mxu0 0.0
        %5151 = vmatpush1.msra.mxu0 0.0
        %5152 = vmatprep.subr.mxu0 0.0
        %5153 = vmatpush1.msra.mxu0 0.0
        %5154 = vmatprep.subr.mxu0 0.0
        %5155 = vmatpush1.msra.mxu0 0.0
        %5156 = vmatprep.subr.mxu0 0.0
        %5157 = vmatpush1.msra.mxu0 0.0
        %5158 = vmatprep.subr.mxu0 0.0
        %5159 = vmatpush1.msra.mxu0 0.0
        %5160 = vmatprep.subr.mxu0 0.0
        %5161 = vmatpush1.msra.mxu0 0.0
        %5162 = vmatprep.subr.mxu0 0.0
        %5163 = vmatpush1.msra.mxu0 0.0
        %5164 = vmatprep.subr.mxu0 0.0
        %5165 = vmatpush1.msra.mxu0 0.0
        %5166 = vmatprep.subr.mxu0 0.0
        %5167 = vmatpush1.msra.mxu0 0.0
        %5168 = vmatprep.subr.mxu0 0.0
        %5169 = vmatpush1.msra.mxu0 0.0
        %5170 = vmatprep.subr.mxu0 0.0
        %5171 = vmatpush1.msra.mxu0 0.0
        %5172 = vmatprep.subr.mxu0 0.0
        %5173 = vmatpush1.msra.mxu0 0.0
        %5174 = vmatprep.subr.mxu0 0.0
        %5175 = vmatpush1.msra.mxu0 0.0
        %5176 = vmatprep.subr.mxu0 0.0
        %5177 = vmatpush1.msra.mxu0 0.0
        %5178 = vmatprep.subr.mxu0 0.0
        %5179 = vmatpush1.msra.mxu0 0.0
        %5180 = vmatprep.subr.mxu0 0.0
        %5181 = vmatpush1.msra.mxu0 0.0
        %5182 = vmatprep.subr.mxu0 0.0
        %5183 = vmatpush1.msra.mxu0 0.0
        %5184 = vmatprep.subr.mxu0 0.0
        %5185 = vmatpush1.msra.mxu0 0.0
        %5186 = vmatprep.subr.mxu0 0.0
        %5187 = vmatpush1.msra.mxu0 0.0
        %5188 = vmatprep.mubr.f32.mxu0 0.0
        %5189 = vmatmul.mubr.f32.gmra.mrb[0].mxu0 %v5122
        %v5190 = vpop.f32.mrb[0].mxu0
        %v5191 = vadd.f32 0.0, %v5190
        %v5192 = vpop.f32.mrb[0].mxu0
        %5193 = vdwg.mxu0
        %v5194 = vadd.f32 %v5114, %v5191
        %v5195 = vld [vmem:[#allocation7 + $0xc] sm:$0x1]
        %s5196 = scalar_lea.vmem %s5, 384
        %v5197 = vld [vmem:[%s5196] sm:$0xff]
        %v5198 = vld [vmem:[%s5196 + $0x8] sm:$0xff]
        %v5199 = vld [vmem:[%s5196 + $0x10] sm:$0xff]
        %v5200 = vld [vmem:[%s5196 + $0x18] sm:$0xff]
        %v5202 = vsel %vm4202, %v5195, 0
        %5204 = vmatprep.subr.mxu0 0.0
        %5205 = vmatpush1.msra.mxu0 %v5197
        %5206 = vmatprep.subr.mxu0 0.0
        %5207 = vmatpush1.msra.mxu0 %v5198
        %5208 = vmatprep.subr.mxu0 0.0
        %5209 = vmatpush1.msra.mxu0 %v5199
        %5210 = vmatprep.subr.mxu0 0.0
        %5211 = vmatpush1.msra.mxu0 %v5200
        %5212 = vmatprep.subr.mxu0 0.0
        %5213 = vmatpush1.msra.mxu0 0.0
        %5214 = vmatprep.subr.mxu0 0.0
        %5215 = vmatpush1.msra.mxu0 0.0
        %5216 = vmatprep.subr.mxu0 0.0
        %5217 = vmatpush1.msra.mxu0 0.0
        %5218 = vmatprep.subr.mxu0 0.0
        %5219 = vmatpush1.msra.mxu0 0.0
        %5220 = vmatprep.subr.mxu0 0.0
        %5221 = vmatpush1.msra.mxu0 0.0
        %5222 = vmatprep.subr.mxu0 0.0
        %5223 = vmatpush1.msra.mxu0 0.0
        %5224 = vmatprep.subr.mxu0 0.0
        %5225 = vmatpush1.msra.mxu0 0.0
        %5226 = vmatprep.subr.mxu0 0.0
        %5227 = vmatpush1.msra.mxu0 0.0
        %5228 = vmatprep.subr.mxu0 0.0
        %5229 = vmatpush1.msra.mxu0 0.0
        %5230 = vmatprep.subr.mxu0 0.0
        %5231 = vmatpush1.msra.mxu0 0.0
        %5232 = vmatprep.subr.mxu0 0.0
        %5233 = vmatpush1.msra.mxu0 0.0
        %5234 = vmatprep.subr.mxu0 0.0
        %5235 = vmatpush1.msra.mxu0 0.0
        %5236 = vmatprep.subr.mxu0 0.0
        %5237 = vmatpush1.msra.mxu0 0.0
        %5238 = vmatprep.subr.mxu0 0.0
        %5239 = vmatpush1.msra.mxu0 0.0
        %5240 = vmatprep.subr.mxu0 0.0
        %5241 = vmatpush1.msra.mxu0 0.0
        %5242 = vmatprep.subr.mxu0 0.0
        %5243 = vmatpush1.msra.mxu0 0.0
        %5244 = vmatprep.subr.mxu0 0.0
        %5245 = vmatpush1.msra.mxu0 0.0
        %5246 = vmatprep.subr.mxu0 0.0
        %5247 = vmatpush1.msra.mxu0 0.0
        %5248 = vmatprep.subr.mxu0 0.0
        %5249 = vmatpush1.msra.mxu0 0.0
        %5250 = vmatprep.subr.mxu0 0.0
        %5251 = vmatpush1.msra.mxu0 0.0
        %5252 = vmatprep.subr.mxu0 0.0
        %5253 = vmatpush1.msra.mxu0 0.0
        %5254 = vmatprep.subr.mxu0 0.0
        %5255 = vmatpush1.msra.mxu0 0.0
        %5256 = vmatprep.subr.mxu0 0.0
        %5257 = vmatpush1.msra.mxu0 0.0
        %5258 = vmatprep.subr.mxu0 0.0
        %5259 = vmatpush1.msra.mxu0 0.0
        %5260 = vmatprep.subr.mxu0 0.0
        %5261 = vmatpush1.msra.mxu0 0.0
        %5262 = vmatprep.subr.mxu0 0.0
        %5263 = vmatpush1.msra.mxu0 0.0
        %5264 = vmatprep.subr.mxu0 0.0
        %5265 = vmatpush1.msra.mxu0 0.0
        %5266 = vmatprep.subr.mxu0 0.0
        %5267 = vmatpush1.msra.mxu0 0.0
        %5268 = vmatprep.mubr.f32.mxu0 0.0
        %5269 = vmatmul.mubr.f32.gmra.mrb[0].mxu0 %v5202
        %v5270 = vpop.f32.mrb[0].mxu0
        %v5271 = vadd.f32 0.0, %v5270
        %v5272 = vpop.f32.mrb[0].mxu0
        %5273 = vdwg.mxu0
        %v5274 = vadd.f32 %v5194, %v5271
        %v5275 = vld [vmem:[#allocation7 + $0xd] sm:$0x1]
        %s5276 = scalar_lea.vmem %s5, 416
        %v5277 = vld [vmem:[%s5276] sm:$0xff]
        %v5278 = vld [vmem:[%s5276 + $0x8] sm:$0xff]
        %v5279 = vld [vmem:[%s5276 + $0x10] sm:$0xff]
        %v5280 = vld [vmem:[%s5276 + $0x18] sm:$0xff]
        %v5282 = vsel %vm4202, %v5275, 0
        %5284 = vmatprep.subr.mxu0 0.0
        %5285 = vmatpush1.msra.mxu0 %v5277
        %5286 = vmatprep.subr.mxu0 0.0
        %5287 = vmatpush1.msra.mxu0 %v5278
        %5288 = vmatprep.subr.mxu0 0.0
        %5289 = vmatpush1.msra.mxu0 %v5279
        %5290 = vmatprep.subr.mxu0 0.0
        %5291 = vmatpush1.msra.mxu0 %v5280
        %5292 = vmatprep.subr.mxu0 0.0
        %5293 = vmatpush1.msra.mxu0 0.0
        %5294 = vmatprep.subr.mxu0 0.0
        %5295 = vmatpush1.msra.mxu0 0.0
        %5296 = vmatprep.subr.mxu0 0.0
        %5297 = vmatpush1.msra.mxu0 0.0
        %5298 = vmatprep.subr.mxu0 0.0
        %5299 = vmatpush1.msra.mxu0 0.0
        %5300 = vmatprep.subr.mxu0 0.0
        %5301 = vmatpush1.msra.mxu0 0.0
        %5302 = vmatprep.subr.mxu0 0.0
        %5303 = vmatpush1.msra.mxu0 0.0
        %5304 = vmatprep.subr.mxu0 0.0
        %5305 = vmatpush1.msra.mxu0 0.0
        %5306 = vmatprep.subr.mxu0 0.0
        %5307 = vmatpush1.msra.mxu0 0.0
        %5308 = vmatprep.subr.mxu0 0.0
        %5309 = vmatpush1.msra.mxu0 0.0
        %5310 = vmatprep.subr.mxu0 0.0
        %5311 = vmatpush1.msra.mxu0 0.0
        %5312 = vmatprep.subr.mxu0 0.0
        %5313 = vmatpush1.msra.mxu0 0.0
        %5314 = vmatprep.subr.mxu0 0.0
        %5315 = vmatpush1.msra.mxu0 0.0
        %5316 = vmatprep.subr.mxu0 0.0
        %5317 = vmatpush1.msra.mxu0 0.0
        %5318 = vmatprep.subr.mxu0 0.0
        %5319 = vmatpush1.msra.mxu0 0.0
        %5320 = vmatprep.subr.mxu0 0.0
        %5321 = vmatpush1.msra.mxu0 0.0
        %5322 = vmatprep.subr.mxu0 0.0
        %5323 = vmatpush1.msra.mxu0 0.0
        %5324 = vmatprep.subr.mxu0 0.0
        %5325 = vmatpush1.msra.mxu0 0.0
        %5326 = vmatprep.subr.mxu0 0.0
        %5327 = vmatpush1.msra.mxu0 0.0
        %5328 = vmatprep.subr.mxu0 0.0
        %5329 = vmatpush1.msra.mxu0 0.0
        %5330 = vmatprep.subr.mxu0 0.0
        %5331 = vmatpush1.msra.mxu0 0.0
        %5332 = vmatprep.subr.mxu0 0.0
        %5333 = vmatpush1.msra.mxu0 0.0
        %5334 = vmatprep.subr.mxu0 0.0
        %5335 = vmatpush1.msra.mxu0 0.0
        %5336 = vmatprep.subr.mxu0 0.0
        %5337 = vmatpush1.msra.mxu0 0.0
        %5338 = vmatprep.subr.mxu0 0.0
        %5339 = vmatpush1.msra.mxu0 0.0
        %5340 = vmatprep.subr.mxu0 0.0
        %5341 = vmatpush1.msra.mxu0 0.0
        %5342 = vmatprep.subr.mxu0 0.0
        %5343 = vmatpush1.msra.mxu0 0.0
        %5344 = vmatprep.subr.mxu0 0.0
        %5345 = vmatpush1.msra.mxu0 0.0
        %5346 = vmatprep.subr.mxu0 0.0
        %5347 = vmatpush1.msra.mxu0 0.0
        %5348 = vmatprep.mubr.f32.mxu0 0.0
        %5349 = vmatmul.mubr.f32.gmra.mrb[0].mxu0 %v5282
        %v5350 = vpop.f32.mrb[0].mxu0
        %v5351 = vadd.f32 0.0, %v5350
        %v5352 = vpop.f32.mrb[0].mxu0
        %5353 = vdwg.mxu0
        %v5354 = vadd.f32 %v5274, %v5351
        %v5355 = vld [vmem:[#allocation7 + $0xe] sm:$0x1]
        %s5356 = scalar_lea.vmem %s5, 448
        %v5357 = vld [vmem:[%s5356] sm:$0xff]
        %v5358 = vld [vmem:[%s5356 + $0x8] sm:$0xff]
        %v5359 = vld [vmem:[%s5356 + $0x10] sm:$0xff]
        %v5360 = vld [vmem:[%s5356 + $0x18] sm:$0xff]
        %v5362 = vsel %vm4202, %v5355, 0
        %5364 = vmatprep.subr.mxu0 0.0
        %5365 = vmatpush1.msra.mxu0 %v5357
        %5366 = vmatprep.subr.mxu0 0.0
        %5367 = vmatpush1.msra.mxu0 %v5358
        %5368 = vmatprep.subr.mxu0 0.0
        %5369 = vmatpush1.msra.mxu0 %v5359
        %5370 = vmatprep.subr.mxu0 0.0
        %5371 = vmatpush1.msra.mxu0 %v5360
        %5372 = vmatprep.subr.mxu0 0.0
        %5373 = vmatpush1.msra.mxu0 0.0
        %5374 = vmatprep.subr.mxu0 0.0
        %5375 = vmatpush1.msra.mxu0 0.0
        %5376 = vmatprep.subr.mxu0 0.0
        %5377 = vmatpush1.msra.mxu0 0.0
        %5378 = vmatprep.subr.mxu0 0.0
        %5379 = vmatpush1.msra.mxu0 0.0
        %5380 = vmatprep.subr.mxu0 0.0
        %5381 = vmatpush1.msra.mxu0 0.0
        %5382 = vmatprep.subr.mxu0 0.0
        %5383 = vmatpush1.msra.mxu0 0.0
        %5384 = vmatprep.subr.mxu0 0.0
        %5385 = vmatpush1.msra.mxu0 0.0
        %5386 = vmatprep.subr.mxu0 0.0
        %5387 = vmatpush1.msra.mxu0 0.0
        %5388 = vmatprep.subr.mxu0 0.0
        %5389 = vmatpush1.msra.mxu0 0.0
        %5390 = vmatprep.subr.mxu0 0.0
        %5391 = vmatpush1.msra.mxu0 0.0
        %5392 = vmatprep.subr.mxu0 0.0
        %5393 = vmatpush1.msra.mxu0 0.0
        %5394 = vmatprep.subr.mxu0 0.0
        %5395 = vmatpush1.msra.mxu0 0.0
        %5396 = vmatprep.subr.mxu0 0.0
        %5397 = vmatpush1.msra.mxu0 0.0
        %5398 = vmatprep.subr.mxu0 0.0
        %5399 = vmatpush1.msra.mxu0 0.0
        %5400 = vmatprep.subr.mxu0 0.0
        %5401 = vmatpush1.msra.mxu0 0.0
        %5402 = vmatprep.subr.mxu0 0.0
        %5403 = vmatpush1.msra.mxu0 0.0
        %5404 = vmatprep.subr.mxu0 0.0
        %5405 = vmatpush1.msra.mxu0 0.0
        %5406 = vmatprep.subr.mxu0 0.0
        %5407 = vmatpush1.msra.mxu0 0.0
        %5408 = vmatprep.subr.mxu0 0.0
        %5409 = vmatpush1.msra.mxu0 0.0
        %5410 = vmatprep.subr.mxu0 0.0
        %5411 = vmatpush1.msra.mxu0 0.0
        %5412 = vmatprep.subr.mxu0 0.0
        %5413 = vmatpush1.msra.mxu0 0.0
        %5414 = vmatprep.subr.mxu0 0.0
        %5415 = vmatpush1.msra.mxu0 0.0
        %5416 = vmatprep.subr.mxu0 0.0
        %5417 = vmatpush1.msra.mxu0 0.0
        %5418 = vmatprep.subr.mxu0 0.0
        %5419 = vmatpush1.msra.mxu0 0.0
        %5420 = vmatprep.subr.mxu0 0.0
        %5421 = vmatpush1.msra.mxu0 0.0
        %5422 = vmatprep.subr.mxu0 0.0
        %5423 = vmatpush1.msra.mxu0 0.0
        %5424 = vmatprep.subr.mxu0 0.0
        %5425 = vmatpush1.msra.mxu0 0.0
        %5426 = vmatprep.subr.mxu0 0.0
        %5427 = vmatpush1.msra.mxu0 0.0
        %5428 = vmatprep.mubr.f32.mxu0 0.0
        %5429 = vmatmul.mubr.f32.gmra.mrb[0].mxu0 %v5362
        %v5430 = vpop.f32.mrb[0].mxu0
        %v5431 = vadd.f32 0.0, %v5430
        %v5432 = vpop.f32.mrb[0].mxu0
        %5433 = vdwg.mxu0
        %v5434 = vadd.f32 %v5354, %v5431
        %v5435 = vld [vmem:[#allocation7 + $0xf] sm:$0x1]
        %s5436 = scalar_lea.vmem %s5, 480
        %v5437 = vld [vmem:[%s5436] sm:$0xff]
        %v5438 = vld [vmem:[%s5436 + $0x8] sm:$0xff]
        %v5439 = vld [vmem:[%s5436 + $0x10] sm:$0xff]
        %v5440 = vld [vmem:[%s5436 + $0x18] sm:$0xff]
        %v5442 = vsel %vm4202, %v5435, 0
        %5444 = vmatprep.subr.mxu0 0.0
        %5445 = vmatpush1.msra.mxu0 %v5437
        %5446 = vmatprep.subr.mxu0 0.0
        %5447 = vmatpush1.msra.mxu0 %v5438
        %5448 = vmatprep.subr.mxu0 0.0
        %5449 = vmatpush1.msra.mxu0 %v5439
        %5450 = vmatprep.subr.mxu0 0.0
        %5451 = vmatpush1.msra.mxu0 %v5440
        %5452 = vmatprep.subr.mxu0 0.0
        %5453 = vmatpush1.msra.mxu0 0.0
        %5454 = vmatprep.subr.mxu0 0.0
        %5455 = vmatpush1.msra.mxu0 0.0
        %5456 = vmatprep.subr.mxu0 0.0
        %5457 = vmatpush1.msra.mxu0 0.0
        %5458 = vmatprep.subr.mxu0 0.0
        %5459 = vmatpush1.msra.mxu0 0.0
        %5460 = vmatprep.subr.mxu0 0.0
        %5461 = vmatpush1.msra.mxu0 0.0
        %5462 = vmatprep.subr.mxu0 0.0
        %5463 = vmatpush1.msra.mxu0 0.0
        %5464 = vmatprep.subr.mxu0 0.0
        %5465 = vmatpush1.msra.mxu0 0.0
        %5466 = vmatprep.subr.mxu0 0.0
        %5467 = vmatpush1.msra.mxu0 0.0
        %5468 = vmatprep.subr.mxu0 0.0
        %5469 = vmatpush1.msra.mxu0 0.0
        %5470 = vmatprep.subr.mxu0 0.0
        %5471 = vmatpush1.msra.mxu0 0.0
        %5472 = vmatprep.subr.mxu0 0.0
        %5473 = vmatpush1.msra.mxu0 0.0
        %5474 = vmatprep.subr.mxu0 0.0
        %5475 = vmatpush1.msra.mxu0 0.0
        %5476 = vmatprep.subr.mxu0 0.0
        %5477 = vmatpush1.msra.mxu0 0.0
        %5478 = vmatprep.subr.mxu0 0.0
        %5479 = vmatpush1.msra.mxu0 0.0
        %5480 = vmatprep.subr.mxu0 0.0
        %5481 = vmatpush1.msra.mxu0 0.0
        %5482 = vmatprep.subr.mxu0 0.0
        %5483 = vmatpush1.msra.mxu0 0.0
        %5484 = vmatprep.subr.mxu0 0.0
        %5485 = vmatpush1.msra.mxu0 0.0
        %5486 = vmatprep.subr.mxu0 0.0
        %5487 = vmatpush1.msra.mxu0 0.0
        %5488 = vmatprep.subr.mxu0 0.0
        %5489 = vmatpush1.msra.mxu0 0.0
        %5490 = vmatprep.subr.mxu0 0.0
        %5491 = vmatpush1.msra.mxu0 0.0
        %5492 = vmatprep.subr.mxu0 0.0
        %5493 = vmatpush1.msra.mxu0 0.0
        %5494 = vmatprep.subr.mxu0 0.0
        %5495 = vmatpush1.msra.mxu0 0.0
        %5496 = vmatprep.subr.mxu0 0.0
        %5497 = vmatpush1.msra.mxu0 0.0
        %5498 = vmatprep.subr.mxu0 0.0
        %5499 = vmatpush1.msra.mxu0 0.0
        %5500 = vmatprep.subr.mxu0 0.0
        %5501 = vmatpush1.msra.mxu0 0.0
        %5502 = vmatprep.subr.mxu0 0.0
        %5503 = vmatpush1.msra.mxu0 0.0
        %5504 = vmatprep.subr.mxu0 0.0
        %5505 = vmatpush1.msra.mxu0 0.0
        %5506 = vmatprep.subr.mxu0 0.0
        %5507 = vmatpush1.msra.mxu0 0.0
        %5508 = vmatprep.mubr.f32.mxu0 0.0
        %5509 = vmatmul.mubr.f32.gmra.mrb[0].mxu0 %v5442
        %v5510 = vpop.f32.mrb[0].mxu0
        %v5511 = vadd.f32 0.0, %v5510
        %v5512 = vpop.f32.mrb[0].mxu0
        %5513 = vdwg.mxu0
        %v5514 = vadd.f32 %v5434, %v5511
        %v5515 = vld [vmem:[%s6] sm:$0x1]
        %v5516 = vadd.f32 %v5514, %v5515
        %v5517 = vmax.f32 %v5516, 0.0
        %v5518 = vld [vmem:[%s7] sm:$0xff]
        %v5519 = vld [vmem:[%s7 + $0x8] sm:$0xff]
        %v5520 = vld [vmem:[%s7 + $0x10] sm:$0xff]
        %v5521 = vld [vmem:[%s7 + $0x18] sm:$0xff]
        %v5522 = vld [vmem:[%s7 + $0x20] sm:$0xff]
        %v5523 = vld [vmem:[%s7 + $0x28] sm:$0xff]
        %v5524 = vld [vmem:[%s7 + $0x30] sm:$0xff]
        %v5525 = vld [vmem:[%s7 + $0x38] sm:$0xff]
        %v5526 = vld [vmem:[%s7 + $0x40] sm:$0xff]
        %v5527 = vld [vmem:[%s7 + $0x48] sm:$0xff]
        %v5528 = vld [vmem:[%s7 + $0x50] sm:$0xff]
        %v5529 = vld [vmem:[%s7 + $0x58] sm:$0xff]
        %v5530 = vld [vmem:[%s7 + $0x60] sm:$0xff]
        %v5531 = vld [vmem:[%s7 + $0x68] sm:$0xff]
        %v5532 = vld [vmem:[%s7 + $0x70] sm:$0xff]
        %v5533 = vld [vmem:[%s7 + $0x78] sm:$0xff]
        %v5534 = vld [vmem:[%s8] sm:$0x1]
        %5535 = vmatprep.subr.mxu0 0.0
        %5536 = vmatpush1.msra.mxu0 %v5518
        %5537 = vmatprep.subr.mxu0 0.0
        %5538 = vmatpush1.msra.mxu0 %v5519
        %5539 = vmatprep.subr.mxu0 0.0
        %5540 = vmatpush1.msra.mxu0 %v5520
        %5541 = vmatprep.subr.mxu0 0.0
        %5542 = vmatpush1.msra.mxu0 %v5521
        %5543 = vmatprep.subr.mxu0 0.0
        %5544 = vmatpush1.msra.mxu0 %v5522
        %5545 = vmatprep.subr.mxu0 0.0
        %5546 = vmatpush1.msra.mxu0 %v5523
        %5547 = vmatprep.subr.mxu0 0.0
        %5548 = vmatpush1.msra.mxu0 %v5524
        %5549 = vmatprep.subr.mxu0 0.0
        %5550 = vmatpush1.msra.mxu0 %v5525
        %5551 = vmatprep.subr.mxu0 0.0
        %5552 = vmatpush1.msra.mxu0 %v5526
        %5553 = vmatprep.subr.mxu0 0.0
        %5554 = vmatpush1.msra.mxu0 %v5527
        %5555 = vmatprep.subr.mxu0 0.0
        %5556 = vmatpush1.msra.mxu0 %v5528
        %5557 = vmatprep.subr.mxu0 0.0
        %5558 = vmatpush1.msra.mxu0 %v5529
        %5559 = vmatprep.subr.mxu0 0.0
        %5560 = vmatpush1.msra.mxu0 %v5530
        %5561 = vmatprep.subr.mxu0 0.0
        %5562 = vmatpush1.msra.mxu0 %v5531
        %5563 = vmatprep.subr.mxu0 0.0
        %5564 = vmatpush1.msra.mxu0 %v5532
        %5565 = vmatprep.subr.mxu0 0.0
        %5566 = vmatpush1.msra.mxu0 %v5533
        %5567 = vmatprep.subr.mxu0 0.0
        %5568 = vmatpush1.msra.mxu0 0.0
        %5569 = vmatprep.subr.mxu0 0.0
        %5570 = vmatpush1.msra.mxu0 0.0
        %5571 = vmatprep.subr.mxu0 0.0
        %5572 = vmatpush1.msra.mxu0 0.0
        %5573 = vmatprep.subr.mxu0 0.0
        %5574 = vmatpush1.msra.mxu0 0.0
        %5575 = vmatprep.subr.mxu0 0.0
        %5576 = vmatpush1.msra.mxu0 0.0
        %5577 = vmatprep.subr.mxu0 0.0
        %5578 = vmatpush1.msra.mxu0 0.0
        %5579 = vmatprep.subr.mxu0 0.0
        %5580 = vmatpush1.msra.mxu0 0.0
        %5581 = vmatprep.subr.mxu0 0.0
        %5582 = vmatpush1.msra.mxu0 0.0
        %5583 = vmatprep.subr.mxu0 0.0
        %5584 = vmatpush1.msra.mxu0 0.0
        %5585 = vmatprep.subr.mxu0 0.0
        %5586 = vmatpush1.msra.mxu0 0.0
        %5587 = vmatprep.subr.mxu0 0.0
        %5588 = vmatpush1.msra.mxu0 0.0
        %5589 = vmatprep.subr.mxu0 0.0
        %5590 = vmatpush1.msra.mxu0 0.0
        %5591 = vmatprep.subr.mxu0 0.0
        %5592 = vmatpush1.msra.mxu0 0.0
        %5593 = vmatprep.subr.mxu0 0.0
        %5594 = vmatpush1.msra.mxu0 0.0
        %5595 = vmatprep.subr.mxu0 0.0
        %5596 = vmatpush1.msra.mxu0 0.0
        %5597 = vmatprep.subr.mxu0 0.0
        %5598 = vmatpush1.msra.mxu0 0.0
        %5599 = vmatprep.mubr.f32.mxu0 0.0
        %5600 = vmatmul.mubr.f32.gmra.mrb[0].mxu0 %v5517
        %v5601 = vpop.f32.mrb[0].mxu0
        %v5602 = vadd.f32 %v5534, %v5601
        %v5603 = vpop.f32.mrb[0].mxu0
        %5604 = vdwg.mxu0
        %v5605 = vmul.f32 %v5602, %v5602
        %vm5606 = vcmask 516096
        %v5607 = vsel %vm5606, %v5605, 0.0
        %5608 = vadd.xlane.f32.xlu0 %v5607
        %v5609 = vpop.xlane.xlu0 %5608
        %v5610 = vmax.f32 %v5609, 1e-24
        %v5611 = vrsqrt.pop %v5610
        %v5612 = vmul.f32 %v5602, %v5611
        %5613 = vst.msk [vmem:[%s324] sm:$0x1] %vm5606, %v5612
        %s5614 = sand.u32 %s225, 1
        %s5615 = scalar_lea.sflag [#allocation9], %s5614
        %s5616 = sand.u32 %s225, 1
        %s5617 = scalar_lea.vmem [#allocation8], %s5616
        // Predicated region
        $region57: #{custom_cnn_minidrop_forward.1} parent=55 // pred_check
          %p5618 = pneg %p235
        $region58: #{custom_cnn_minidrop_forward.1} parent=55 // pred_check_branch
          %5620 = sbr.rel (%p5618) target = $region60
        $region59: #{custom_cnn_minidrop_forward.1} parent=55 // pred_region
          %s5622 = ssub.s32 16, 16
          %5623 = vsyncadd %s5615, %s5622
          %s5624 = smul.addr %s23, 16
          %s5625 = scalar_lea.hbm %s9, %s5624
          %s5627 = sshll.u32 %s5617, 4
          %s5628 = int_to_ptr.vmem [resolvable:$true] %s5627
          %5630 = dma.vmem_to_hbm [thread:$0]  %s5628, 16, %s5625, %s5615
        $region60: #{custom_cnn_minidrop_forward.1} parent=55 // pred_fallthru
          _
      $region56: #{custom_cnn_minidrop_forward.1} parent=5 // pred_fallthru
        _
      %p5631 = scmp.le.s32.totalorder 2, %s18
      // Predicated region
      $region61: #{custom_cnn_minidrop_forward.1} parent=5 // pred_check
        %p5632 = pneg %p5631
      $region62: #{custom_cnn_minidrop_forward.1} parent=5 // pred_check_branch
        %5634 = sbr.rel (%p5632) target = $region64
      $region63: #{custom_cnn_minidrop_forward.1} parent=5 // pred_region
        %s5635 = ssub.s32 %s18, 2
        // Predicated region
        $region65: #{custom_cnn_minidrop_forward.1} parent=63 // pred_check
          %p5636 = pneg %p241
        $region66: #{custom_cnn_minidrop_forward.1} parent=63 // pred_check_branch
          %5638 = sbr.rel (%p5636) target = $region68
        $region67: #{custom_cnn_minidrop_forward.1} parent=63 // pred_region
          %s5639 = sand.u32 %s226, 1
          %s5640 = scalar_lea.sflag [#allocation9], %s5639
          %s5641 = sand.u32 %s226, 1
          %s5642 = scalar_lea.vmem [#allocation8], %s5641
          %5643 = dma.done %s5640, 16
        $region68: #{custom_cnn_minidrop_forward.1} parent=63 // pred_fallthru
          _
      $region64: #{custom_cnn_minidrop_forward.1} parent=5 // pred_fallthru
        _
    $region6: #{custom_cnn_minidrop_forward.1} parent=1 // loop_footer
      %s22 = sadd.s32 1, %s18
    $region7: #{custom_cnn_minidrop_forward.1} parent=1 // loop_footer_branch
      %17 = sbr.rel target = $region3
    $region8: #{custom_cnn_minidrop_forward.1} parent=1 // loop_exit
      _
    %5644 = vsyncpa [#allocation9], 1
    %s5645 = scalar_lea.sflag [#allocation9], 1
    %5646 = vsyncpa %s5645, 1

</llo_original>
